<compile_context>
chip_gen: v7x
topology: tpu7x:2x2x1
jax: 0.10.0
libtpu: 0.0.40
codegen_flags: <defaults>
</compile_context>

<pallas_src>
import functools

import numpy as np
import jax
import jax.numpy as jnp
from jax import lax
from jax.experimental import pallas as pl
from jax.experimental.pallas import tpu as pltpu


_KERNEL_SIZES = (1, 3, 5, 7)   # agg0..agg3 (paddings 0, 1, 2, 3)
_KMAX = 7                      # tap-weight / mask tables laid out on a 7x7 grid
_RMAX = _KMAX // 2


def _aggregator_kernel(x_ref, mask_ref, wdw_ref, wpw_ref, bias_ref, o_ref,
                       *, H, W, C, group):
    """Fused Aggregator forward for one batch element.

    x_ref    : (C, H*W)   input; channels on sublanes, spatial on lanes
    mask_ref : (49, H*W)  per-tap border-validity masks (0/1)
    wdw_ref  : (C, 49)    depthwise weights on the 7x7 tap grid (zeros unused)
    wpw_ref  : (C, C)     block-diagonal pointwise weights with BN scale folded in
    bias_ref : (C, 1)     folded BatchNorm (eval-mode) bias
    o_ref    : (C, H*W)
    """
    HW = H * W
    seg = C // group

    # Depthwise convs: each group only runs its own k_g x k_g taps on its own
    # seg-channel sublane slice.  A tap offset (oy, ox) is a single lane roll
    # by oy*W + ox of the flattened (seg, H*W) slice; wrapped / out-of-image
    # lanes are zeroed by the per-tap mask, which also realizes the 'same'
    # zero padding without materializing a padded tensor.
    parts = []
    for g in range(group):
        k = _KERNEL_SIZES[g]
        rg = k // 2
        c0 = g * seg
        xg = x_ref[c0:c0 + seg, :]                       # (seg, HW), vreg-aligned
        accg = None
        for oy in range(-rg, rg + 1):
            for ox in range(-rg, rg + 1):
                t = (oy + _RMAX) * _KMAX + (ox + _RMAX)
                off = oy * W + ox
                w = wdw_ref[c0:c0 + seg, t:t + 1]        # (seg, 1) per-channel tap
                if off == 0:
                    term = xg * w                        # centre tap: no roll/mask
                else:
                    shifted = pltpu.roll(xg, (-off) % HW, 1)
                    term = shifted * w * mask_ref[t:t + 1, :]
                accg = term if accg is None else accg + term
        parts.append(accg)
    acc = jnp.concatenate(parts, axis=0)                 # (C, HW), sublane-aligned

    # Pointwise 1x1 convs of all 4 groups as one block-diagonal matmul with the
    # BN scale pre-folded into its rows: (C, C) @ (C, H*W) keeps N = H*W
    # lane-dense on the MXU and writes the already-concatenated layout.
    z = jnp.dot(wpw_ref[...], acc, preferred_element_type=jnp.float32)

    # Folded BatchNorm bias + Hardswish: y * relu6(y + 3) / 6.
    # TODO(synk): training-mode batch statistics are not computed in-kernel.
    y = z + bias_ref[...]
    o_ref[...] = y * jnp.clip(y + 3.0, 0.0, 6.0) * (1.0 / 6.0)


def _build_tap_masks(H, W):
    """(49, H*W) 0/1 masks marking in-image source pixels for each 7x7 tap."""
    yy = np.arange(H)[:, None]
    xx = np.arange(W)[None, :]
    masks = np.zeros((_KMAX * _KMAX, H * W), np.float32)
    for dy in range(_KMAX):
        for dx in range(_KMAX):
            oy, ox = dy - _RMAX, dx - _RMAX
            valid = ((yy + oy >= 0) & (yy + oy < H) &
                     (xx + ox >= 0) & (xx + ox < W))
            masks[dy * _KMAX + dx] = valid.reshape(-1).astype(np.float32)
    return jnp.asarray(masks)


def aggregator_forward(x_nchw, fused, group=4):
    """Aggregator.forward: x (B, C, H, W) -> (B, C, H, W)."""
    B, C, H, W = x_nchw.shape
    HW = H * W
    # NCHW is already contiguous as (B, C, H*W): free reshape, no transpose.
    x_flat = x_nchw.reshape(B, C, HW)
    masks = _build_tap_masks(H, W)
    nt = _KMAX * _KMAX

    kern = functools.partial(_aggregator_kernel, H=H, W=W, C=C, group=group)
    out = pl.pallas_call(
        kern,
        out_shape=jax.ShapeDtypeStruct((B, C, HW), jnp.float32),
        grid=(B,),
        in_specs=[
            pl.BlockSpec((None, C, HW), lambda b: (b, 0, 0)),
            pl.BlockSpec((nt, HW), lambda b: (0, 0)),
            pl.BlockSpec((C, nt), lambda b: (0, 0)),
            pl.BlockSpec((C, C), lambda b: (0, 0)),
            pl.BlockSpec((C, 1), lambda b: (0, 0)),
        ],
        out_specs=pl.BlockSpec((None, C, HW), lambda b: (b, 0, 0)),
        compiler_params=pltpu.CompilerParams(
            dimension_semantics=("parallel",)),
    )(x_flat, masks, fused['wdw'], fused['wpw'], fused['bias'])
    return out.reshape(B, C, H, W)


def make_params(key, dim, group=4):
    """Deterministic synthetic per-group parameters matching the PyTorch module."""
    assert dim % group == 0
    seg = dim // group
    eps = 1e-5
    params = []
    for g, k in enumerate(_KERNEL_SIZES[:group]):
        kg = jax.random.fold_in(key, g)
        k_dw, k_pw, k_g, k_b, k_m, k_v = jax.random.split(kg, 6)
        # PyTorch depthwise weight is (seg, 1, k, k); stored here as (k, k, seg).
        w_dw = 0.2 * jax.random.normal(k_dw, (k, k, seg), jnp.float32)
        # PyTorch pointwise weight is (out, in, 1, 1); stored as (out, in).
        w_pw_oi = 0.2 * jax.random.normal(k_pw, (seg, seg), jnp.float32)
        gamma = 1.0 + 0.1 * jax.random.normal(k_g, (seg,), jnp.float32)
        beta = 0.1 * jax.random.normal(k_b, (seg,), jnp.float32)
        r_mean = 0.1 * jax.random.normal(k_m, (seg,), jnp.float32)
        r_var = 0.5 + jnp.abs(jax.random.normal(k_v, (seg,), jnp.float32))
        scale = gamma / jnp.sqrt(r_var + eps)
        bias = beta - r_mean * scale
        params.append(dict(k=k, w_dw=w_dw, w_pw_oi=w_pw_oi,
                           scale=scale, bias=bias))
    return params


def fuse_params(group_params, dim):
    """Pack per-group params into the fused layout consumed by the kernel.

    The BN(eval) scale is folded into the pointwise-weight rows so the kernel
    only needs a bias add after the block-diagonal matmul.
    """
    group = len(group_params)
    seg = dim // group
    nt = _KMAX * _KMAX
    wdw = np.zeros((dim, nt), np.float32)
    wpw = np.zeros((dim, dim), np.float32)
    bias = np.zeros((dim, 1), np.float32)
    for g, p in enumerate(group_params):
        k = p['k']
        o = (_KMAX - k) // 2                      # center the kxk in the 7x7
        w_dw = np.asarray(p['w_dw'])              # (k, k, seg)
        for i in range(k):
            for j in range(k):
                wdw[g * seg:(g + 1) * seg, (o + i) * _KMAX + (o + j)] = w_dw[i, j, :]
        scale = np.asarray(p['scale'])            # (seg,)
        wpw[g * seg:(g + 1) * seg, g * seg:(g + 1) * seg] = (
            scale[:, None] * np.asarray(p['w_pw_oi']))
        bias[g * seg:(g + 1) * seg, 0] = np.asarray(p['bias'])
    return dict(wdw=jnp.asarray(wdw), wpw=jnp.asarray(wpw),
                bias=jnp.asarray(bias))


def reference_forward(x_nchw, group_params):
    """Pure-JAX reference (lax convs, per group) for correctness check."""
    B, C, H, W = x_nchw.shape
    group = len(group_params)
    seg = C // group
    x_nhwc = jnp.transpose(x_nchw, (0, 2, 3, 1))
    outs = []
    for g, p in enumerate(group_params):
        k = p['k']
        pad = (k - 1) // 2
        xg = x_nhwc[..., g * seg:(g + 1) * seg]
        dw = p['w_dw'].reshape(k, k, 1, seg)
        z = lax.conv_general_dilated(
            xg, dw, (1, 1), [(pad, pad), (pad, pad)],
            dimension_numbers=('NHWC', 'HWIO', 'NHWC'),
            feature_group_count=seg)
        pw = jnp.transpose(p['w_pw_oi']).reshape(1, 1, seg, seg)   # HWIO
        z = lax.conv_general_dilated(
            z, pw, (1, 1), [(0, 0), (0, 0)],
            dimension_numbers=('NHWC', 'HWIO', 'NHWC'))
        y = z * p['scale'].reshape(1, 1, 1, seg) + p['bias'].reshape(1, 1, 1, seg)
        y = y * jnp.clip(y + 3.0, 0.0, 6.0) / 6.0
        outs.append(y)
    return jnp.transpose(jnp.concatenate(outs, axis=-1), (0, 3, 1, 2))


if __name__ == "__main__":
    key = jax.random.PRNGKey(0)
    k_x, k_p = jax.random.split(key)

    B, dim, H, W = 2, 32, 16, 16            # group=4 -> seg_dim=8, H*W=256
    x = jax.random.normal(k_x, (B, dim, H, W), jnp.float32)
    gparams = make_params(k_p, dim, group=4)
    fused = fuse_params(gparams, dim)

    out = jax.block_until_ready(aggregator_forward(x, fused, group=4))
    ref = jax.block_until_ready(reference_forward(x, gparams))

    assert out.shape == (B, dim, H, W)
    np.testing.assert_allclose(np.asarray(out), np.asarray(ref),
                               rtol=1e-4, atol=1e-4)
    print("KERNEL_OK")
</pallas_src>

<mosaic_0001>
module attributes {stable_mosaic.version = 11 : i64} {
  func.func @_aggregator_kernel(%arg0: i32, %arg1: memref<1x32x256xf32, #tpu.memory_space<vmem>>, %arg2: memref<49x256xf32, #tpu.memory_space<vmem>>, %arg3: memref<32x49xf32, #tpu.memory_space<vmem>>, %arg4: memref<32x32xf32, #tpu.memory_space<vmem>>, %arg5: memref<32x1xf32, #tpu.memory_space<vmem>>, %arg6: memref<1x32x256xf32, #tpu.memory_space<vmem>>) attributes {dimension_semantics = [#tpu.dimension_semantics<parallel>], iteration_bounds = array<i64: 2>, scalar_prefetch = 0 : i64, scratch_operands = 0 : i64, tpu.core_type = #tpu.core_type<tc>, window_params = [{transform_indices = @transform_0, window_bounds = array<i64: 1, 32, 256>}, {pipeline_mode = #tpu.pipeline_mode<synchronous>, transform_indices = @transform_1, window_bounds = array<i64: 49, 256>}, {pipeline_mode = #tpu.pipeline_mode<synchronous>, transform_indices = @transform_2, window_bounds = array<i64: 32, 49>}, {pipeline_mode = #tpu.pipeline_mode<synchronous>, transform_indices = @transform_3, window_bounds = array<i64: 32, 32>}, {pipeline_mode = #tpu.pipeline_mode<synchronous>, transform_indices = @transform_4, window_bounds = array<i64: 32, 1>}, {transform_indices = @transform_5, window_bounds = array<i64: 1, 32, 256>}]} {
    %c0 = arith.constant 0 : index
    %c0_0 = arith.constant 0 : index
    %c0_1 = arith.constant 0 : index
    %0 = vector.load %arg1[%c0, %c0_0, %c0_1] : memref<1x32x256xf32, #tpu.memory_space<vmem>>, vector<1x8x256xf32>
    %1 = vector.shape_cast %0 : vector<1x8x256xf32> to vector<8x256xf32>
    %c0_2 = arith.constant 0 : index
    %c24 = arith.constant 24 : index
    %2 = vector.load %arg3[%c0_2, %c24] : memref<32x49xf32, #tpu.memory_space<vmem>>, vector<8x1xf32>
    %3 = vector.broadcast %2 : vector<8x1xf32> to vector<8x256xf32>
    %4 = arith.mulf %1, %3 : vector<8x256xf32>
    %c0_3 = arith.constant 0 : index
    %c8 = arith.constant 8 : index
    %c0_4 = arith.constant 0 : index
    %5 = vector.load %arg1[%c0_3, %c8, %c0_4] : memref<1x32x256xf32, #tpu.memory_space<vmem>>, vector<1x8x256xf32>
    %6 = vector.shape_cast %5 : vector<1x8x256xf32> to vector<8x256xf32>
    %c8_5 = arith.constant 8 : index
    %c16 = arith.constant 16 : index
    %7 = vector.load %arg3[%c8_5, %c16] : memref<32x49xf32, #tpu.memory_space<vmem>>, vector<8x1xf32>
    %c17_i32 = arith.constant 17 : i32
    %8 = tpu.dynamic_rotate %6 by %c17_i32 dim 1 : vector<8x256xf32>, i32 -> vector<8x256xf32>
    %9 = vector.broadcast %7 : vector<8x1xf32> to vector<8x256xf32>
    %10 = arith.mulf %8, %9 : vector<8x256xf32>
    %c16_6 = arith.constant 16 : index
    %c0_7 = arith.constant 0 : index
    %11 = vector.load %arg2[%c16_6, %c0_7] : memref<49x256xf32, #tpu.memory_space<vmem>>, vector<1x256xf32>
    %12 = vector.broadcast %11 : vector<1x256xf32> to vector<8x256xf32>
    %13 = arith.mulf %10, %12 : vector<8x256xf32>
    %c8_8 = arith.constant 8 : index
    %c17 = arith.constant 17 : index
    %14 = vector.load %arg3[%c8_8, %c17] : memref<32x49xf32, #tpu.memory_space<vmem>>, vector<8x1xf32>
    %c16_i32 = arith.constant 16 : i32
    %15 = tpu.dynamic_rotate %6 by %c16_i32 dim 1 : vector<8x256xf32>, i32 -> vector<8x256xf32>
    %16 = vector.broadcast %14 : vector<8x1xf32> to vector<8x256xf32>
    %17 = arith.mulf %15, %16 : vector<8x256xf32>
    %c17_9 = arith.constant 17 : index
    %c0_10 = arith.constant 0 : index
    %18 = vector.load %arg2[%c17_9, %c0_10] : memref<49x256xf32, #tpu.memory_space<vmem>>, vector<1x256xf32>
    %19 = vector.broadcast %18 : vector<1x256xf32> to vector<8x256xf32>
    %20 = arith.mulf %17, %19 : vector<8x256xf32>
    %21 = arith.addf %13, %20 : vector<8x256xf32>
    %c8_11 = arith.constant 8 : index
    %c18 = arith.constant 18 : index
    %22 = vector.load %arg3[%c8_11, %c18] : memref<32x49xf32, #tpu.memory_space<vmem>>, vector<8x1xf32>
    %c15_i32 = arith.constant 15 : i32
    %23 = tpu.dynamic_rotate %6 by %c15_i32 dim 1 : vector<8x256xf32>, i32 -> vector<8x256xf32>
    %24 = vector.broadcast %22 : vector<8x1xf32> to vector<8x256xf32>
    %25 = arith.mulf %23, %24 : vector<8x256xf32>
    %c18_12 = arith.constant 18 : index
    %c0_13 = arith.constant 0 : index
    %26 = vector.load %arg2[%c18_12, %c0_13] : memref<49x256xf32, #tpu.memory_space<vmem>>, vector<1x256xf32>
    %27 = vector.broadcast %26 : vector<1x256xf32> to vector<8x256xf32>
    %28 = arith.mulf %25, %27 : vector<8x256xf32>
    %29 = arith.addf %21, %28 : vector<8x256xf32>
    %c8_14 = arith.constant 8 : index
    %c23 = arith.constant 23 : index
    %30 = vector.load %arg3[%c8_14, %c23] : memref<32x49xf32, #tpu.memory_space<vmem>>, vector<8x1xf32>
    %c1_i32 = arith.constant 1 : i32
    %31 = tpu.dynamic_rotate %6 by %c1_i32 dim 1 : vector<8x256xf32>, i32 -> vector<8x256xf32>
    %32 = vector.broadcast %30 : vector<8x1xf32> to vector<8x256xf32>
    %33 = arith.mulf %31, %32 : vector<8x256xf32>
    %c23_15 = arith.constant 23 : index
    %c0_16 = arith.constant 0 : index
    %34 = vector.load %arg2[%c23_15, %c0_16] : memref<49x256xf32, #tpu.memory_space<vmem>>, vector<1x256xf32>
    %35 = vector.broadcast %34 : vector<1x256xf32> to vector<8x256xf32>
    %36 = arith.mulf %33, %35 : vector<8x256xf32>
    %37 = arith.addf %29, %36 : vector<8x256xf32>
    %c8_17 = arith.constant 8 : index
    %c24_18 = arith.constant 24 : index
    %38 = vector.load %arg3[%c8_17, %c24_18] : memref<32x49xf32, #tpu.memory_space<vmem>>, vector<8x1xf32>
    %39 = vector.broadcast %38 : vector<8x1xf32> to vector<8x256xf32>
    %40 = arith.mulf %6, %39 : vector<8x256xf32>
    %41 = arith.addf %37, %40 : vector<8x256xf32>
    %c8_19 = arith.constant 8 : index
    %c25 = arith.constant 25 : index
    %42 = vector.load %arg3[%c8_19, %c25] : memref<32x49xf32, #tpu.memory_space<vmem>>, vector<8x1xf32>
    %c255_i32 = arith.constant 255 : i32
    %43 = tpu.dynamic_rotate %6 by %c255_i32 dim 1 : vector<8x256xf32>, i32 -> vector<8x256xf32>
    %44 = vector.broadcast %42 : vector<8x1xf32> to vector<8x256xf32>
    %45 = arith.mulf %43, %44 : vector<8x256xf32>
    %c25_20 = arith.constant 25 : index
    %c0_21 = arith.constant 0 : index
    %46 = vector.load %arg2[%c25_20, %c0_21] : memref<49x256xf32, #tpu.memory_space<vmem>>, vector<1x256xf32>
    %47 = vector.broadcast %46 : vector<1x256xf32> to vector<8x256xf32>
    %48 = arith.mulf %45, %47 : vector<8x256xf32>
    %49 = arith.addf %41, %48 : vector<8x256xf32>
    %c8_22 = arith.constant 8 : index
    %c30 = arith.constant 30 : index
    %50 = vector.load %arg3[%c8_22, %c30] : memref<32x49xf32, #tpu.memory_space<vmem>>, vector<8x1xf32>
    %c241_i32 = arith.constant 241 : i32
    %51 = tpu.dynamic_rotate %6 by %c241_i32 dim 1 : vector<8x256xf32>, i32 -> vector<8x256xf32>
    %52 = vector.broadcast %50 : vector<8x1xf32> to vector<8x256xf32>
    %53 = arith.mulf %51, %52 : vector<8x256xf32>
    %c30_23 = arith.constant 30 : index
    %c0_24 = arith.constant 0 : index
    %54 = vector.load %arg2[%c30_23, %c0_24] : memref<49x256xf32, #tpu.memory_space<vmem>>, vector<1x256xf32>
    %55 = vector.broadcast %54 : vector<1x256xf32> to vector<8x256xf32>
    %56 = arith.mulf %53, %55 : vector<8x256xf32>
    %57 = arith.addf %49, %56 : vector<8x256xf32>
    %c8_25 = arith.constant 8 : index
    %c31 = arith.constant 31 : index
    %58 = vector.load %arg3[%c8_25, %c31] : memref<32x49xf32, #tpu.memory_space<vmem>>, vector<8x1xf32>
    %c240_i32 = arith.constant 240 : i32
    %59 = tpu.dynamic_rotate %6 by %c240_i32 dim 1 : vector<8x256xf32>, i32 -> vector<8x256xf32>
    %60 = vector.broadcast %58 : vector<8x1xf32> to vector<8x256xf32>
    %61 = arith.mulf %59, %60 : vector<8x256xf32>
    %c31_26 = arith.constant 31 : index
    %c0_27 = arith.constant 0 : index
    %62 = vector.load %arg2[%c31_26, %c0_27] : memref<49x256xf32, #tpu.memory_space<vmem>>, vector<1x256xf32>
    %63 = vector.broadcast %62 : vector<1x256xf32> to vector<8x256xf32>
    %64 = arith.mulf %61, %63 : vector<8x256xf32>
    %65 = arith.addf %57, %64 : vector<8x256xf32>
    %c8_28 = arith.constant 8 : index
    %c32 = arith.constant 32 : index
    %66 = vector.load %arg3[%c8_28, %c32] : memref<32x49xf32, #tpu.memory_space<vmem>>, vector<8x1xf32>
    %c239_i32 = arith.constant 239 : i32
    %67 = tpu.dynamic_rotate %6 by %c239_i32 dim 1 : vector<8x256xf32>, i32 -> vector<8x256xf32>
    %68 = vector.broadcast %66 : vector<8x1xf32> to vector<8x256xf32>
    %69 = arith.mulf %67, %68 : vector<8x256xf32>
    %c32_29 = arith.constant 32 : index
    %c0_30 = arith.constant 0 : index
    %70 = vector.load %arg2[%c32_29, %c0_30] : memref<49x256xf32, #tpu.memory_space<vmem>>, vector<1x256xf32>
    %71 = vector.broadcast %70 : vector<1x256xf32> to vector<8x256xf32>
    %72 = arith.mulf %69, %71 : vector<8x256xf32>
    %73 = arith.addf %65, %72 : vector<8x256xf32>
    %c0_31 = arith.constant 0 : index
    %c16_32 = arith.constant 16 : index
    %c0_33 = arith.constant 0 : index
    %74 = vector.load %arg1[%c0_31, %c16_32, %c0_33] : memref<1x32x256xf32, #tpu.memory_space<vmem>>, vector<1x8x256xf32>
    %75 = vector.shape_cast %74 : vector<1x8x256xf32> to vector<8x256xf32>
    %c16_34 = arith.constant 16 : index
    %c8_35 = arith.constant 8 : index
    %76 = vector.load %arg3[%c16_34, %c8_35] : memref<32x49xf32, #tpu.memory_space<vmem>>, vector<8x1xf32>
    %c34_i32 = arith.constant 34 : i32
    %77 = tpu.dynamic_rotate %75 by %c34_i32 dim 1 : vector<8x256xf32>, i32 -> vector<8x256xf32>
    %78 = vector.broadcast %76 : vector<8x1xf32> to vector<8x256xf32>
    %79 = arith.mulf %77, %78 : vector<8x256xf32>
    %c8_36 = arith.constant 8 : index
    %c0_37 = arith.constant 0 : index
    %80 = vector.load %arg2[%c8_36, %c0_37] : memref<49x256xf32, #tpu.memory_space<vmem>>, vector<1x256xf32>
    %81 = vector.broadcast %80 : vector<1x256xf32> to vector<8x256xf32>
    %82 = arith.mulf %79, %81 : vector<8x256xf32>
    %c16_38 = arith.constant 16 : index
    %c9 = arith.constant 9 : index
    %83 = vector.load %arg3[%c16_38, %c9] : memref<32x49xf32, #tpu.memory_space<vmem>>, vector<8x1xf32>
    %c33_i32 = arith.constant 33 : i32
    %84 = tpu.dynamic_rotate %75 by %c33_i32 dim 1 : vector<8x256xf32>, i32 -> vector<8x256xf32>
    %85 = vector.broadcast %83 : vector<8x1xf32> to vector<8x256xf32>
    %86 = arith.mulf %84, %85 : vector<8x256xf32>
    %c9_39 = arith.constant 9 : index
    %c0_40 = arith.constant 0 : index
    %87 = vector.load %arg2[%c9_39, %c0_40] : memref<49x256xf32, #tpu.memory_space<vmem>>, vector<1x256xf32>
    %88 = vector.broadcast %87 : vector<1x256xf32> to vector<8x256xf32>
    %89 = arith.mulf %86, %88 : vector<8x256xf32>
    %90 = arith.addf %82, %89 : vector<8x256xf32>
    %c16_41 = arith.constant 16 : index
    %c10 = arith.constant 10 : index
    %91 = vector.load %arg3[%c16_41, %c10] : memref<32x49xf32, #tpu.memory_space<vmem>>, vector<8x1xf32>
    %c32_i32 = arith.constant 32 : i32
    %92 = tpu.dynamic_rotate %75 by %c32_i32 dim 1 : vector<8x256xf32>, i32 -> vector<8x256xf32>
    %93 = vector.broadcast %91 : vector<8x1xf32> to vector<8x256xf32>
    %94 = arith.mulf %92, %93 : vector<8x256xf32>
    %c10_42 = arith.constant 10 : index
    %c0_43 = arith.constant 0 : index
    %95 = vector.load %arg2[%c10_42, %c0_43] : memref<49x256xf32, #tpu.memory_space<vmem>>, vector<1x256xf32>
    %96 = vector.broadcast %95 : vector<1x256xf32> to vector<8x256xf32>
    %97 = arith.mulf %94, %96 : vector<8x256xf32>
    %98 = arith.addf %90, %97 : vector<8x256xf32>
    %c16_44 = arith.constant 16 : index
    %c11 = arith.constant 11 : index
    %99 = vector.load %arg3[%c16_44, %c11] : memref<32x49xf32, #tpu.memory_space<vmem>>, vector<8x1xf32>
    %c31_i32 = arith.constant 31 : i32
    %100 = tpu.dynamic_rotate %75 by %c31_i32 dim 1 : vector<8x256xf32>, i32 -> vector<8x256xf32>
    %101 = vector.broadcast %99 : vector<8x1xf32> to vector<8x256xf32>
    %102 = arith.mulf %100, %101 : vector<8x256xf32>
    %c11_45 = arith.constant 11 : index
    %c0_46 = arith.constant 0 : index
    %103 = vector.load %arg2[%c11_45, %c0_46] : memref<49x256xf32, #tpu.memory_space<vmem>>, vector<1x256xf32>
    %104 = vector.broadcast %103 : vector<1x256xf32> to vector<8x256xf32>
    %105 = arith.mulf %102, %104 : vector<8x256xf32>
    %106 = arith.addf %98, %105 : vector<8x256xf32>
    %c16_47 = arith.constant 16 : index
    %c12 = arith.constant 12 : index
    %107 = vector.load %arg3[%c16_47, %c12] : memref<32x49xf32, #tpu.memory_space<vmem>>, vector<8x1xf32>
    %c30_i32 = arith.constant 30 : i32
    %108 = tpu.dynamic_rotate %75 by %c30_i32 dim 1 : vector<8x256xf32>, i32 -> vector<8x256xf32>
    %109 = vector.broadcast %107 : vector<8x1xf32> to vector<8x256xf32>
    %110 = arith.mulf %108, %109 : vector<8x256xf32>
    %c12_48 = arith.constant 12 : index
    %c0_49 = arith.constant 0 : index
    %111 = vector.load %arg2[%c12_48, %c0_49] : memref<49x256xf32, #tpu.memory_space<vmem>>, vector<1x256xf32>
    %112 = vector.broadcast %111 : vector<1x256xf32> to vector<8x256xf32>
    %113 = arith.mulf %110, %112 : vector<8x256xf32>
    %114 = arith.addf %106, %113 : vector<8x256xf32>
    %c16_50 = arith.constant 16 : index
    %c15 = arith.constant 15 : index
    %115 = vector.load %arg3[%c16_50, %c15] : memref<32x49xf32, #tpu.memory_space<vmem>>, vector<8x1xf32>
    %c18_i32 = arith.constant 18 : i32
    %116 = tpu.dynamic_rotate %75 by %c18_i32 dim 1 : vector<8x256xf32>, i32 -> vector<8x256xf32>
    %117 = vector.broadcast %115 : vector<8x1xf32> to vector<8x256xf32>
    %118 = arith.mulf %116, %117 : vector<8x256xf32>
    %c15_51 = arith.constant 15 : index
    %c0_52 = arith.constant 0 : index
    %119 = vector.load %arg2[%c15_51, %c0_52] : memref<49x256xf32, #tpu.memory_space<vmem>>, vector<1x256xf32>
    %120 = vector.broadcast %119 : vector<1x256xf32> to vector<8x256xf32>
    %121 = arith.mulf %118, %120 : vector<8x256xf32>
    %122 = arith.addf %114, %121 : vector<8x256xf32>
    %c16_53 = arith.constant 16 : index
    %c16_54 = arith.constant 16 : index
    %123 = vector.load %arg3[%c16_53, %c16_54] : memref<32x49xf32, #tpu.memory_space<vmem>>, vector<8x1xf32>
    %c17_i32_55 = arith.constant 17 : i32
    %124 = tpu.dynamic_rotate %75 by %c17_i32_55 dim 1 : vector<8x256xf32>, i32 -> vector<8x256xf32>
    %125 = vector.broadcast %123 : vector<8x1xf32> to vector<8x256xf32>
    %126 = arith.mulf %124, %125 : vector<8x256xf32>
    %c16_56 = arith.constant 16 : index
    %c0_57 = arith.constant 0 : index
    %127 = vector.load %arg2[%c16_56, %c0_57] : memref<49x256xf32, #tpu.memory_space<vmem>>, vector<1x256xf32>
    %128 = vector.broadcast %127 : vector<1x256xf32> to vector<8x256xf32>
    %129 = arith.mulf %126, %128 : vector<8x256xf32>
    %130 = arith.addf %122, %129 : vector<8x256xf32>
    %c16_58 = arith.constant 16 : index
    %c17_59 = arith.constant 17 : index
    %131 = vector.load %arg3[%c16_58, %c17_59] : memref<32x49xf32, #tpu.memory_space<vmem>>, vector<8x1xf32>
    %c16_i32_60 = arith.constant 16 : i32
    %132 = tpu.dynamic_rotate %75 by %c16_i32_60 dim 1 : vector<8x256xf32>, i32 -> vector<8x256xf32>
    %133 = vector.broadcast %131 : vector<8x1xf32> to vector<8x256xf32>
    %134 = arith.mulf %132, %133 : vector<8x256xf32>
    %c17_61 = arith.constant 17 : index
    %c0_62 = arith.constant 0 : index
    %135 = vector.load %arg2[%c17_61, %c0_62] : memref<49x256xf32, #tpu.memory_space<vmem>>, vector<1x256xf32>
    %136 = vector.broadcast %135 : vector<1x256xf32> to vector<8x256xf32>
    %137 = arith.mulf %134, %136 : vector<8x256xf32>
    %138 = arith.addf %130, %137 : vector<8x256xf32>
    %c16_63 = arith.constant 16 : index
    %c18_64 = arith.constant 18 : index
    %139 = vector.load %arg3[%c16_63, %c18_64] : memref<32x49xf32, #tpu.memory_space<vmem>>, vector<8x1xf32>
    %c15_i32_65 = arith.constant 15 : i32
    %140 = tpu.dynamic_rotate %75 by %c15_i32_65 dim 1 : vector<8x256xf32>, i32 -> vector<8x256xf32>
    %141 = vector.broadcast %139 : vector<8x1xf32> to vector<8x256xf32>
    %142 = arith.mulf %140, %141 : vector<8x256xf32>
    %c18_66 = arith.constant 18 : index
    %c0_67 = arith.constant 0 : index
    %143 = vector.load %arg2[%c18_66, %c0_67] : memref<49x256xf32, #tpu.memory_space<vmem>>, vector<1x256xf32>
    %144 = vector.broadcast %143 : vector<1x256xf32> to vector<8x256xf32>
    %145 = arith.mulf %142, %144 : vector<8x256xf32>
    %146 = arith.addf %138, %145 : vector<8x256xf32>
    %c16_68 = arith.constant 16 : index
    %c19 = arith.constant 19 : index
    %147 = vector.load %arg3[%c16_68, %c19] : memref<32x49xf32, #tpu.memory_space<vmem>>, vector<8x1xf32>
    %c14_i32 = arith.constant 14 : i32
    %148 = tpu.dynamic_rotate %75 by %c14_i32 dim 1 : vector<8x256xf32>, i32 -> vector<8x256xf32>
    %149 = vector.broadcast %147 : vector<8x1xf32> to vector<8x256xf32>
    %150 = arith.mulf %148, %149 : vector<8x256xf32>
    %c19_69 = arith.constant 19 : index
    %c0_70 = arith.constant 0 : index
    %151 = vector.load %arg2[%c19_69, %c0_70] : memref<49x256xf32, #tpu.memory_space<vmem>>, vector<1x256xf32>
    %152 = vector.broadcast %151 : vector<1x256xf32> to vector<8x256xf32>
    %153 = arith.mulf %150, %152 : vector<8x256xf32>
    %154 = arith.addf %146, %153 : vector<8x256xf32>
    %c16_71 = arith.constant 16 : index
    %c22 = arith.constant 22 : index
    %155 = vector.load %arg3[%c16_71, %c22] : memref<32x49xf32, #tpu.memory_space<vmem>>, vector<8x1xf32>
    %c2_i32 = arith.constant 2 : i32
    %156 = tpu.dynamic_rotate %75 by %c2_i32 dim 1 : vector<8x256xf32>, i32 -> vector<8x256xf32>
    %157 = vector.broadcast %155 : vector<8x1xf32> to vector<8x256xf32>
    %158 = arith.mulf %156, %157 : vector<8x256xf32>
    %c22_72 = arith.constant 22 : index
    %c0_73 = arith.constant 0 : index
    %159 = vector.load %arg2[%c22_72, %c0_73] : memref<49x256xf32, #tpu.memory_space<vmem>>, vector<1x256xf32>
    %160 = vector.broadcast %159 : vector<1x256xf32> to vector<8x256xf32>
    %161 = arith.mulf %158, %160 : vector<8x256xf32>
    %162 = arith.addf %154, %161 : vector<8x256xf32>
    %c16_74 = arith.constant 16 : index
    %c23_75 = arith.constant 23 : index
    %163 = vector.load %arg3[%c16_74, %c23_75] : memref<32x49xf32, #tpu.memory_space<vmem>>, vector<8x1xf32>
    %c1_i32_76 = arith.constant 1 : i32
    %164 = tpu.dynamic_rotate %75 by %c1_i32_76 dim 1 : vector<8x256xf32>, i32 -> vector<8x256xf32>
    %165 = vector.broadcast %163 : vector<8x1xf32> to vector<8x256xf32>
    %166 = arith.mulf %164, %165 : vector<8x256xf32>
    %c23_77 = arith.constant 23 : index
    %c0_78 = arith.constant 0 : index
    %167 = vector.load %arg2[%c23_77, %c0_78] : memref<49x256xf32, #tpu.memory_space<vmem>>, vector<1x256xf32>
    %168 = vector.broadcast %167 : vector<1x256xf32> to vector<8x256xf32>
    %169 = arith.mulf %166, %168 : vector<8x256xf32>
    %170 = arith.addf %162, %169 : vector<8x256xf32>
    %c16_79 = arith.constant 16 : index
    %c24_80 = arith.constant 24 : index
    %171 = vector.load %arg3[%c16_79, %c24_80] : memref<32x49xf32, #tpu.memory_space<vmem>>, vector<8x1xf32>
    %172 = vector.broadcast %171 : vector<8x1xf32> to vector<8x256xf32>
    %173 = arith.mulf %75, %172 : vector<8x256xf32>
    %174 = arith.addf %170, %173 : vector<8x256xf32>
    %c16_81 = arith.constant 16 : index
    %c25_82 = arith.constant 25 : index
    %175 = vector.load %arg3[%c16_81, %c25_82] : memref<32x49xf32, #tpu.memory_space<vmem>>, vector<8x1xf32>
    %c255_i32_83 = arith.constant 255 : i32
    %176 = tpu.dynamic_rotate %75 by %c255_i32_83 dim 1 : vector<8x256xf32>, i32 -> vector<8x256xf32>
    %177 = vector.broadcast %175 : vector<8x1xf32> to vector<8x256xf32>
    %178 = arith.mulf %176, %177 : vector<8x256xf32>
    %c25_84 = arith.constant 25 : index
    %c0_85 = arith.constant 0 : index
    %179 = vector.load %arg2[%c25_84, %c0_85] : memref<49x256xf32, #tpu.memory_space<vmem>>, vector<1x256xf32>
    %180 = vector.broadcast %179 : vector<1x256xf32> to vector<8x256xf32>
    %181 = arith.mulf %178, %180 : vector<8x256xf32>
    %182 = arith.addf %174, %181 : vector<8x256xf32>
    %c16_86 = arith.constant 16 : index
    %c26 = arith.constant 26 : index
    %183 = vector.load %arg3[%c16_86, %c26] : memref<32x49xf32, #tpu.memory_space<vmem>>, vector<8x1xf32>
    %c254_i32 = arith.constant 254 : i32
    %184 = tpu.dynamic_rotate %75 by %c254_i32 dim 1 : vector<8x256xf32>, i32 -> vector<8x256xf32>
    %185 = vector.broadcast %183 : vector<8x1xf32> to vector<8x256xf32>
    %186 = arith.mulf %184, %185 : vector<8x256xf32>
    %c26_87 = arith.constant 26 : index
    %c0_88 = arith.constant 0 : index
    %187 = vector.load %arg2[%c26_87, %c0_88] : memref<49x256xf32, #tpu.memory_space<vmem>>, vector<1x256xf32>
    %188 = vector.broadcast %187 : vector<1x256xf32> to vector<8x256xf32>
    %189 = arith.mulf %186, %188 : vector<8x256xf32>
    %190 = arith.addf %182, %189 : vector<8x256xf32>
    %c16_89 = arith.constant 16 : index
    %c29 = arith.constant 29 : index
    %191 = vector.load %arg3[%c16_89, %c29] : memref<32x49xf32, #tpu.memory_space<vmem>>, vector<8x1xf32>
    %c242_i32 = arith.constant 242 : i32
    %192 = tpu.dynamic_rotate %75 by %c242_i32 dim 1 : vector<8x256xf32>, i32 -> vector<8x256xf32>
    %193 = vector.broadcast %191 : vector<8x1xf32> to vector<8x256xf32>
    %194 = arith.mulf %192, %193 : vector<8x256xf32>
    %c29_90 = arith.constant 29 : index
    %c0_91 = arith.constant 0 : index
    %195 = vector.load %arg2[%c29_90, %c0_91] : memref<49x256xf32, #tpu.memory_space<vmem>>, vector<1x256xf32>
    %196 = vector.broadcast %195 : vector<1x256xf32> to vector<8x256xf32>
    %197 = arith.mulf %194, %196 : vector<8x256xf32>
    %198 = arith.addf %190, %197 : vector<8x256xf32>
    %c16_92 = arith.constant 16 : index
    %c30_93 = arith.constant 30 : index
    %199 = vector.load %arg3[%c16_92, %c30_93] : memref<32x49xf32, #tpu.memory_space<vmem>>, vector<8x1xf32>
    %c241_i32_94 = arith.constant 241 : i32
    %200 = tpu.dynamic_rotate %75 by %c241_i32_94 dim 1 : vector<8x256xf32>, i32 -> vector<8x256xf32>
    %201 = vector.broadcast %199 : vector<8x1xf32> to vector<8x256xf32>
    %202 = arith.mulf %200, %201 : vector<8x256xf32>
    %c30_95 = arith.constant 30 : index
    %c0_96 = arith.constant 0 : index
    %203 = vector.load %arg2[%c30_95, %c0_96] : memref<49x256xf32, #tpu.memory_space<vmem>>, vector<1x256xf32>
    %204 = vector.broadcast %203 : vector<1x256xf32> to vector<8x256xf32>
    %205 = arith.mulf %202, %204 : vector<8x256xf32>
    %206 = arith.addf %198, %205 : vector<8x256xf32>
    %c16_97 = arith.constant 16 : index
    %c31_98 = arith.constant 31 : index
    %207 = vector.load %arg3[%c16_97, %c31_98] : memref<32x49xf32, #tpu.memory_space<vmem>>, vector<8x1xf32>
    %c240_i32_99 = arith.constant 240 : i32
    %208 = tpu.dynamic_rotate %75 by %c240_i32_99 dim 1 : vector<8x256xf32>, i32 -> vector<8x256xf32>
    %209 = vector.broadcast %207 : vector<8x1xf32> to vector<8x256xf32>
    %210 = arith.mulf %208, %209 : vector<8x256xf32>
    %c31_100 = arith.constant 31 : index
    %c0_101 = arith.constant 0 : index
    %211 = vector.load %arg2[%c31_100, %c0_101] : memref<49x256xf32, #tpu.memory_space<vmem>>, vector<1x256xf32>
    %212 = vector.broadcast %211 : vector<1x256xf32> to vector<8x256xf32>
    %213 = arith.mulf %210, %212 : vector<8x256xf32>
    %214 = arith.addf %206, %213 : vector<8x256xf32>
    %c16_102 = arith.constant 16 : index
    %c32_103 = arith.constant 32 : index
    %215 = vector.load %arg3[%c16_102, %c32_103] : memref<32x49xf32, #tpu.memory_space<vmem>>, vector<8x1xf32>
    %c239_i32_104 = arith.constant 239 : i32
    %216 = tpu.dynamic_rotate %75 by %c239_i32_104 dim 1 : vector<8x256xf32>, i32 -> vector<8x256xf32>
    %217 = vector.broadcast %215 : vector<8x1xf32> to vector<8x256xf32>
    %218 = arith.mulf %216, %217 : vector<8x256xf32>
    %c32_105 = arith.constant 32 : index
    %c0_106 = arith.constant 0 : index
    %219 = vector.load %arg2[%c32_105, %c0_106] : memref<49x256xf32, #tpu.memory_space<vmem>>, vector<1x256xf32>
    %220 = vector.broadcast %219 : vector<1x256xf32> to vector<8x256xf32>
    %221 = arith.mulf %218, %220 : vector<8x256xf32>
    %222 = arith.addf %214, %221 : vector<8x256xf32>
    %c16_107 = arith.constant 16 : index
    %c33 = arith.constant 33 : index
    %223 = vector.load %arg3[%c16_107, %c33] : memref<32x49xf32, #tpu.memory_space<vmem>>, vector<8x1xf32>
    %c238_i32 = arith.constant 238 : i32
    %224 = tpu.dynamic_rotate %75 by %c238_i32 dim 1 : vector<8x256xf32>, i32 -> vector<8x256xf32>
    %225 = vector.broadcast %223 : vector<8x1xf32> to vector<8x256xf32>
    %226 = arith.mulf %224, %225 : vector<8x256xf32>
    %c33_108 = arith.constant 33 : index
    %c0_109 = arith.constant 0 : index
    %227 = vector.load %arg2[%c33_108, %c0_109] : memref<49x256xf32, #tpu.memory_space<vmem>>, vector<1x256xf32>
    %228 = vector.broadcast %227 : vector<1x256xf32> to vector<8x256xf32>
    %229 = arith.mulf %226, %228 : vector<8x256xf32>
    %230 = arith.addf %222, %229 : vector<8x256xf32>
    %c16_110 = arith.constant 16 : index
    %c36 = arith.constant 36 : index
    %231 = vector.load %arg3[%c16_110, %c36] : memref<32x49xf32, #tpu.memory_space<vmem>>, vector<8x1xf32>
    %c226_i32 = arith.constant 226 : i32
    %232 = tpu.dynamic_rotate %75 by %c226_i32 dim 1 : vector<8x256xf32>, i32 -> vector<8x256xf32>
    %233 = vector.broadcast %231 : vector<8x1xf32> to vector<8x256xf32>
    %234 = arith.mulf %232, %233 : vector<8x256xf32>
    %c36_111 = arith.constant 36 : index
    %c0_112 = arith.constant 0 : index
    %235 = vector.load %arg2[%c36_111, %c0_112] : memref<49x256xf32, #tpu.memory_space<vmem>>, vector<1x256xf32>
    %236 = vector.broadcast %235 : vector<1x256xf32> to vector<8x256xf32>
    %237 = arith.mulf %234, %236 : vector<8x256xf32>
    %238 = arith.addf %230, %237 : vector<8x256xf32>
    %c16_113 = arith.constant 16 : index
    %c37 = arith.constant 37 : index
    %239 = vector.load %arg3[%c16_113, %c37] : memref<32x49xf32, #tpu.memory_space<vmem>>, vector<8x1xf32>
    %c225_i32 = arith.constant 225 : i32
    %240 = tpu.dynamic_rotate %75 by %c225_i32 dim 1 : vector<8x256xf32>, i32 -> vector<8x256xf32>
    %241 = vector.broadcast %239 : vector<8x1xf32> to vector<8x256xf32>
    %242 = arith.mulf %240, %241 : vector<8x256xf32>
    %c37_114 = arith.constant 37 : index
    %c0_115 = arith.constant 0 : index
    %243 = vector.load %arg2[%c37_114, %c0_115] : memref<49x256xf32, #tpu.memory_space<vmem>>, vector<1x256xf32>
    %244 = vector.broadcast %243 : vector<1x256xf32> to vector<8x256xf32>
    %245 = arith.mulf %242, %244 : vector<8x256xf32>
    %246 = arith.addf %238, %245 : vector<8x256xf32>
    %c16_116 = arith.constant 16 : index
    %c38 = arith.constant 38 : index
    %247 = vector.load %arg3[%c16_116, %c38] : memref<32x49xf32, #tpu.memory_space<vmem>>, vector<8x1xf32>
    %c224_i32 = arith.constant 224 : i32
    %248 = tpu.dynamic_rotate %75 by %c224_i32 dim 1 : vector<8x256xf32>, i32 -> vector<8x256xf32>
    %249 = vector.broadcast %247 : vector<8x1xf32> to vector<8x256xf32>
    %250 = arith.mulf %248, %249 : vector<8x256xf32>
    %c38_117 = arith.constant 38 : index
    %c0_118 = arith.constant 0 : index
    %251 = vector.load %arg2[%c38_117, %c0_118] : memref<49x256xf32, #tpu.memory_space<vmem>>, vector<1x256xf32>
    %252 = vector.broadcast %251 : vector<1x256xf32> to vector<8x256xf32>
    %253 = arith.mulf %250, %252 : vector<8x256xf32>
    %254 = arith.addf %246, %253 : vector<8x256xf32>
    %c16_119 = arith.constant 16 : index
    %c39 = arith.constant 39 : index
    %255 = vector.load %arg3[%c16_119, %c39] : memref<32x49xf32, #tpu.memory_space<vmem>>, vector<8x1xf32>
    %c223_i32 = arith.constant 223 : i32
    %256 = tpu.dynamic_rotate %75 by %c223_i32 dim 1 : vector<8x256xf32>, i32 -> vector<8x256xf32>
    %257 = vector.broadcast %255 : vector<8x1xf32> to vector<8x256xf32>
    %258 = arith.mulf %256, %257 : vector<8x256xf32>
    %c39_120 = arith.constant 39 : index
    %c0_121 = arith.constant 0 : index
    %259 = vector.load %arg2[%c39_120, %c0_121] : memref<49x256xf32, #tpu.memory_space<vmem>>, vector<1x256xf32>
    %260 = vector.broadcast %259 : vector<1x256xf32> to vector<8x256xf32>
    %261 = arith.mulf %258, %260 : vector<8x256xf32>
    %262 = arith.addf %254, %261 : vector<8x256xf32>
    %c16_122 = arith.constant 16 : index
    %c40 = arith.constant 40 : index
    %263 = vector.load %arg3[%c16_122, %c40] : memref<32x49xf32, #tpu.memory_space<vmem>>, vector<8x1xf32>
    %c222_i32 = arith.constant 222 : i32
    %264 = tpu.dynamic_rotate %75 by %c222_i32 dim 1 : vector<8x256xf32>, i32 -> vector<8x256xf32>
    %265 = vector.broadcast %263 : vector<8x1xf32> to vector<8x256xf32>
    %266 = arith.mulf %264, %265 : vector<8x256xf32>
    %c40_123 = arith.constant 40 : index
    %c0_124 = arith.constant 0 : index
    %267 = vector.load %arg2[%c40_123, %c0_124] : memref<49x256xf32, #tpu.memory_space<vmem>>, vector<1x256xf32>
    %268 = vector.broadcast %267 : vector<1x256xf32> to vector<8x256xf32>
    %269 = arith.mulf %266, %268 : vector<8x256xf32>
    %270 = arith.addf %262, %269 : vector<8x256xf32>
    %c0_125 = arith.constant 0 : index
    %c24_126 = arith.constant 24 : index
    %c0_127 = arith.constant 0 : index
    %271 = vector.load %arg1[%c0_125, %c24_126, %c0_127] : memref<1x32x256xf32, #tpu.memory_space<vmem>>, vector<1x8x256xf32>
    %272 = vector.shape_cast %271 : vector<1x8x256xf32> to vector<8x256xf32>
    %c24_128 = arith.constant 24 : index
    %c0_129 = arith.constant 0 : index
    %273 = vector.load %arg3[%c24_128, %c0_129] : memref<32x49xf32, #tpu.memory_space<vmem>>, vector<8x1xf32>
    %c51_i32 = arith.constant 51 : i32
    %274 = tpu.dynamic_rotate %272 by %c51_i32 dim 1 : vector<8x256xf32>, i32 -> vector<8x256xf32>
    %275 = vector.broadcast %273 : vector<8x1xf32> to vector<8x256xf32>
    %276 = arith.mulf %274, %275 : vector<8x256xf32>
    %c0_130 = arith.constant 0 : index
    %c0_131 = arith.constant 0 : index
    %277 = vector.load %arg2[%c0_130, %c0_131] : memref<49x256xf32, #tpu.memory_space<vmem>>, vector<1x256xf32>
    %278 = vector.broadcast %277 : vector<1x256xf32> to vector<8x256xf32>
    %279 = arith.mulf %276, %278 : vector<8x256xf32>
    %c24_132 = arith.constant 24 : index
    %c1 = arith.constant 1 : index
    %280 = vector.load %arg3[%c24_132, %c1] : memref<32x49xf32, #tpu.memory_space<vmem>>, vector<8x1xf32>
    %c50_i32 = arith.constant 50 : i32
    %281 = tpu.dynamic_rotate %272 by %c50_i32 dim 1 : vector<8x256xf32>, i32 -> vector<8x256xf32>
    %282 = vector.broadcast %280 : vector<8x1xf32> to vector<8x256xf32>
    %283 = arith.mulf %281, %282 : vector<8x256xf32>
    %c1_133 = arith.constant 1 : index
    %c0_134 = arith.constant 0 : index
    %284 = vector.load %arg2[%c1_133, %c0_134] : memref<49x256xf32, #tpu.memory_space<vmem>>, vector<1x256xf32>
    %285 = vector.broadcast %284 : vector<1x256xf32> to vector<8x256xf32>
    %286 = arith.mulf %283, %285 : vector<8x256xf32>
    %287 = arith.addf %279, %286 : vector<8x256xf32>
    %c24_135 = arith.constant 24 : index
    %c2 = arith.constant 2 : index
    %288 = vector.load %arg3[%c24_135, %c2] : memref<32x49xf32, #tpu.memory_space<vmem>>, vector<8x1xf32>
    %c49_i32 = arith.constant 49 : i32
    %289 = tpu.dynamic_rotate %272 by %c49_i32 dim 1 : vector<8x256xf32>, i32 -> vector<8x256xf32>
    %290 = vector.broadcast %288 : vector<8x1xf32> to vector<8x256xf32>
    %291 = arith.mulf %289, %290 : vector<8x256xf32>
    %c2_136 = arith.constant 2 : index
    %c0_137 = arith.constant 0 : index
    %292 = vector.load %arg2[%c2_136, %c0_137] : memref<49x256xf32, #tpu.memory_space<vmem>>, vector<1x256xf32>
    %293 = vector.broadcast %292 : vector<1x256xf32> to vector<8x256xf32>
    %294 = arith.mulf %291, %293 : vector<8x256xf32>
    %295 = arith.addf %287, %294 : vector<8x256xf32>
    %c24_138 = arith.constant 24 : index
    %c3 = arith.constant 3 : index
    %296 = vector.load %arg3[%c24_138, %c3] : memref<32x49xf32, #tpu.memory_space<vmem>>, vector<8x1xf32>
    %c48_i32 = arith.constant 48 : i32
    %297 = tpu.dynamic_rotate %272 by %c48_i32 dim 1 : vector<8x256xf32>, i32 -> vector<8x256xf32>
    %298 = vector.broadcast %296 : vector<8x1xf32> to vector<8x256xf32>
    %299 = arith.mulf %297, %298 : vector<8x256xf32>
    %c3_139 = arith.constant 3 : index
    %c0_140 = arith.constant 0 : index
    %300 = vector.load %arg2[%c3_139, %c0_140] : memref<49x256xf32, #tpu.memory_space<vmem>>, vector<1x256xf32>
    %301 = vector.broadcast %300 : vector<1x256xf32> to vector<8x256xf32>
    %302 = arith.mulf %299, %301 : vector<8x256xf32>
    %303 = arith.addf %295, %302 : vector<8x256xf32>
    %c24_141 = arith.constant 24 : index
    %c4 = arith.constant 4 : index
    %304 = vector.load %arg3[%c24_141, %c4] : memref<32x49xf32, #tpu.memory_space<vmem>>, vector<8x1xf32>
    %c47_i32 = arith.constant 47 : i32
    %305 = tpu.dynamic_rotate %272 by %c47_i32 dim 1 : vector<8x256xf32>, i32 -> vector<8x256xf32>
    %306 = vector.broadcast %304 : vector<8x1xf32> to vector<8x256xf32>
    %307 = arith.mulf %305, %306 : vector<8x256xf32>
    %c4_142 = arith.constant 4 : index
    %c0_143 = arith.constant 0 : index
    %308 = vector.load %arg2[%c4_142, %c0_143] : memref<49x256xf32, #tpu.memory_space<vmem>>, vector<1x256xf32>
    %309 = vector.broadcast %308 : vector<1x256xf32> to vector<8x256xf32>
    %310 = arith.mulf %307, %309 : vector<8x256xf32>
    %311 = arith.addf %303, %310 : vector<8x256xf32>
    %c24_144 = arith.constant 24 : index
    %c5 = arith.constant 5 : index
    %312 = vector.load %arg3[%c24_144, %c5] : memref<32x49xf32, #tpu.memory_space<vmem>>, vector<8x1xf32>
    %c46_i32 = arith.constant 46 : i32
    %313 = tpu.dynamic_rotate %272 by %c46_i32 dim 1 : vector<8x256xf32>, i32 -> vector<8x256xf32>
    %314 = vector.broadcast %312 : vector<8x1xf32> to vector<8x256xf32>
    %315 = arith.mulf %313, %314 : vector<8x256xf32>
    %c5_145 = arith.constant 5 : index
    %c0_146 = arith.constant 0 : index
    %316 = vector.load %arg2[%c5_145, %c0_146] : memref<49x256xf32, #tpu.memory_space<vmem>>, vector<1x256xf32>
    %317 = vector.broadcast %316 : vector<1x256xf32> to vector<8x256xf32>
    %318 = arith.mulf %315, %317 : vector<8x256xf32>
    %319 = arith.addf %311, %318 : vector<8x256xf32>
    %c24_147 = arith.constant 24 : index
    %c6 = arith.constant 6 : index
    %320 = vector.load %arg3[%c24_147, %c6] : memref<32x49xf32, #tpu.memory_space<vmem>>, vector<8x1xf32>
    %c45_i32 = arith.constant 45 : i32
    %321 = tpu.dynamic_rotate %272 by %c45_i32 dim 1 : vector<8x256xf32>, i32 -> vector<8x256xf32>
    %322 = vector.broadcast %320 : vector<8x1xf32> to vector<8x256xf32>
    %323 = arith.mulf %321, %322 : vector<8x256xf32>
    %c6_148 = arith.constant 6 : index
    %c0_149 = arith.constant 0 : index
    %324 = vector.load %arg2[%c6_148, %c0_149] : memref<49x256xf32, #tpu.memory_space<vmem>>, vector<1x256xf32>
    %325 = vector.broadcast %324 : vector<1x256xf32> to vector<8x256xf32>
    %326 = arith.mulf %323, %325 : vector<8x256xf32>
    %327 = arith.addf %319, %326 : vector<8x256xf32>
    %c24_150 = arith.constant 24 : index
    %c7 = arith.constant 7 : index
    %328 = vector.load %arg3[%c24_150, %c7] : memref<32x49xf32, #tpu.memory_space<vmem>>, vector<8x1xf32>
    %c35_i32 = arith.constant 35 : i32
    %329 = tpu.dynamic_rotate %272 by %c35_i32 dim 1 : vector<8x256xf32>, i32 -> vector<8x256xf32>
    %330 = vector.broadcast %328 : vector<8x1xf32> to vector<8x256xf32>
    %331 = arith.mulf %329, %330 : vector<8x256xf32>
    %c7_151 = arith.constant 7 : index
    %c0_152 = arith.constant 0 : index
    %332 = vector.load %arg2[%c7_151, %c0_152] : memref<49x256xf32, #tpu.memory_space<vmem>>, vector<1x256xf32>
    %333 = vector.broadcast %332 : vector<1x256xf32> to vector<8x256xf32>
    %334 = arith.mulf %331, %333 : vector<8x256xf32>
    %335 = arith.addf %327, %334 : vector<8x256xf32>
    %c24_153 = arith.constant 24 : index
    %c8_154 = arith.constant 8 : index
    %336 = vector.load %arg3[%c24_153, %c8_154] : memref<32x49xf32, #tpu.memory_space<vmem>>, vector<8x1xf32>
    %c34_i32_155 = arith.constant 34 : i32
    %337 = tpu.dynamic_rotate %272 by %c34_i32_155 dim 1 : vector<8x256xf32>, i32 -> vector<8x256xf32>
    %338 = vector.broadcast %336 : vector<8x1xf32> to vector<8x256xf32>
    %339 = arith.mulf %337, %338 : vector<8x256xf32>
    %c8_156 = arith.constant 8 : index
    %c0_157 = arith.constant 0 : index
    %340 = vector.load %arg2[%c8_156, %c0_157] : memref<49x256xf32, #tpu.memory_space<vmem>>, vector<1x256xf32>
    %341 = vector.broadcast %340 : vector<1x256xf32> to vector<8x256xf32>
    %342 = arith.mulf %339, %341 : vector<8x256xf32>
    %343 = arith.addf %335, %342 : vector<8x256xf32>
    %c24_158 = arith.constant 24 : index
    %c9_159 = arith.constant 9 : index
    %344 = vector.load %arg3[%c24_158, %c9_159] : memref<32x49xf32, #tpu.memory_space<vmem>>, vector<8x1xf32>
    %c33_i32_160 = arith.constant 33 : i32
    %345 = tpu.dynamic_rotate %272 by %c33_i32_160 dim 1 : vector<8x256xf32>, i32 -> vector<8x256xf32>
    %346 = vector.broadcast %344 : vector<8x1xf32> to vector<8x256xf32>
    %347 = arith.mulf %345, %346 : vector<8x256xf32>
    %c9_161 = arith.constant 9 : index
    %c0_162 = arith.constant 0 : index
    %348 = vector.load %arg2[%c9_161, %c0_162] : memref<49x256xf32, #tpu.memory_space<vmem>>, vector<1x256xf32>
    %349 = vector.broadcast %348 : vector<1x256xf32> to vector<8x256xf32>
    %350 = arith.mulf %347, %349 : vector<8x256xf32>
    %351 = arith.addf %343, %350 : vector<8x256xf32>
    %c24_163 = arith.constant 24 : index
    %c10_164 = arith.constant 10 : index
    %352 = vector.load %arg3[%c24_163, %c10_164] : memref<32x49xf32, #tpu.memory_space<vmem>>, vector<8x1xf32>
    %c32_i32_165 = arith.constant 32 : i32
    %353 = tpu.dynamic_rotate %272 by %c32_i32_165 dim 1 : vector<8x256xf32>, i32 -> vector<8x256xf32>
    %354 = vector.broadcast %352 : vector<8x1xf32> to vector<8x256xf32>
    %355 = arith.mulf %353, %354 : vector<8x256xf32>
    %c10_166 = arith.constant 10 : index
    %c0_167 = arith.constant 0 : index
    %356 = vector.load %arg2[%c10_166, %c0_167] : memref<49x256xf32, #tpu.memory_space<vmem>>, vector<1x256xf32>
    %357 = vector.broadcast %356 : vector<1x256xf32> to vector<8x256xf32>
    %358 = arith.mulf %355, %357 : vector<8x256xf32>
    %359 = arith.addf %351, %358 : vector<8x256xf32>
    %c24_168 = arith.constant 24 : index
    %c11_169 = arith.constant 11 : index
    %360 = vector.load %arg3[%c24_168, %c11_169] : memref<32x49xf32, #tpu.memory_space<vmem>>, vector<8x1xf32>
    %c31_i32_170 = arith.constant 31 : i32
    %361 = tpu.dynamic_rotate %272 by %c31_i32_170 dim 1 : vector<8x256xf32>, i32 -> vector<8x256xf32>
    %362 = vector.broadcast %360 : vector<8x1xf32> to vector<8x256xf32>
    %363 = arith.mulf %361, %362 : vector<8x256xf32>
    %c11_171 = arith.constant 11 : index
    %c0_172 = arith.constant 0 : index
    %364 = vector.load %arg2[%c11_171, %c0_172] : memref<49x256xf32, #tpu.memory_space<vmem>>, vector<1x256xf32>
    %365 = vector.broadcast %364 : vector<1x256xf32> to vector<8x256xf32>
    %366 = arith.mulf %363, %365 : vector<8x256xf32>
    %367 = arith.addf %359, %366 : vector<8x256xf32>
    %c24_173 = arith.constant 24 : index
    %c12_174 = arith.constant 12 : index
    %368 = vector.load %arg3[%c24_173, %c12_174] : memref<32x49xf32, #tpu.memory_space<vmem>>, vector<8x1xf32>
    %c30_i32_175 = arith.constant 30 : i32
    %369 = tpu.dynamic_rotate %272 by %c30_i32_175 dim 1 : vector<8x256xf32>, i32 -> vector<8x256xf32>
    %370 = vector.broadcast %368 : vector<8x1xf32> to vector<8x256xf32>
    %371 = arith.mulf %369, %370 : vector<8x256xf32>
    %c12_176 = arith.constant 12 : index
    %c0_177 = arith.constant 0 : index
    %372 = vector.load %arg2[%c12_176, %c0_177] : memref<49x256xf32, #tpu.memory_space<vmem>>, vector<1x256xf32>
    %373 = vector.broadcast %372 : vector<1x256xf32> to vector<8x256xf32>
    %374 = arith.mulf %371, %373 : vector<8x256xf32>
    %375 = arith.addf %367, %374 : vector<8x256xf32>
    %c24_178 = arith.constant 24 : index
    %c13 = arith.constant 13 : index
    %376 = vector.load %arg3[%c24_178, %c13] : memref<32x49xf32, #tpu.memory_space<vmem>>, vector<8x1xf32>
    %c29_i32 = arith.constant 29 : i32
    %377 = tpu.dynamic_rotate %272 by %c29_i32 dim 1 : vector<8x256xf32>, i32 -> vector<8x256xf32>
    %378 = vector.broadcast %376 : vector<8x1xf32> to vector<8x256xf32>
    %379 = arith.mulf %377, %378 : vector<8x256xf32>
    %c13_179 = arith.constant 13 : index
    %c0_180 = arith.constant 0 : index
    %380 = vector.load %arg2[%c13_179, %c0_180] : memref<49x256xf32, #tpu.memory_space<vmem>>, vector<1x256xf32>
    %381 = vector.broadcast %380 : vector<1x256xf32> to vector<8x256xf32>
    %382 = arith.mulf %379, %381 : vector<8x256xf32>
    %383 = arith.addf %375, %382 : vector<8x256xf32>
    %c24_181 = arith.constant 24 : index
    %c14 = arith.constant 14 : index
    %384 = vector.load %arg3[%c24_181, %c14] : memref<32x49xf32, #tpu.memory_space<vmem>>, vector<8x1xf32>
    %c19_i32 = arith.constant 19 : i32
    %385 = tpu.dynamic_rotate %272 by %c19_i32 dim 1 : vector<8x256xf32>, i32 -> vector<8x256xf32>
    %386 = vector.broadcast %384 : vector<8x1xf32> to vector<8x256xf32>
    %387 = arith.mulf %385, %386 : vector<8x256xf32>
    %c14_182 = arith.constant 14 : index
    %c0_183 = arith.constant 0 : index
    %388 = vector.load %arg2[%c14_182, %c0_183] : memref<49x256xf32, #tpu.memory_space<vmem>>, vector<1x256xf32>
    %389 = vector.broadcast %388 : vector<1x256xf32> to vector<8x256xf32>
    %390 = arith.mulf %387, %389 : vector<8x256xf32>
    %391 = arith.addf %383, %390 : vector<8x256xf32>
    %c24_184 = arith.constant 24 : index
    %c15_185 = arith.constant 15 : index
    %392 = vector.load %arg3[%c24_184, %c15_185] : memref<32x49xf32, #tpu.memory_space<vmem>>, vector<8x1xf32>
    %c18_i32_186 = arith.constant 18 : i32
    %393 = tpu.dynamic_rotate %272 by %c18_i32_186 dim 1 : vector<8x256xf32>, i32 -> vector<8x256xf32>
    %394 = vector.broadcast %392 : vector<8x1xf32> to vector<8x256xf32>
    %395 = arith.mulf %393, %394 : vector<8x256xf32>
    %c15_187 = arith.constant 15 : index
    %c0_188 = arith.constant 0 : index
    %396 = vector.load %arg2[%c15_187, %c0_188] : memref<49x256xf32, #tpu.memory_space<vmem>>, vector<1x256xf32>
    %397 = vector.broadcast %396 : vector<1x256xf32> to vector<8x256xf32>
    %398 = arith.mulf %395, %397 : vector<8x256xf32>
    %399 = arith.addf %391, %398 : vector<8x256xf32>
    %c24_189 = arith.constant 24 : index
    %c16_190 = arith.constant 16 : index
    %400 = vector.load %arg3[%c24_189, %c16_190] : memref<32x49xf32, #tpu.memory_space<vmem>>, vector<8x1xf32>
    %c17_i32_191 = arith.constant 17 : i32
    %401 = tpu.dynamic_rotate %272 by %c17_i32_191 dim 1 : vector<8x256xf32>, i32 -> vector<8x256xf32>
    %402 = vector.broadcast %400 : vector<8x1xf32> to vector<8x256xf32>
    %403 = arith.mulf %401, %402 : vector<8x256xf32>
    %c16_192 = arith.constant 16 : index
    %c0_193 = arith.constant 0 : index
    %404 = vector.load %arg2[%c16_192, %c0_193] : memref<49x256xf32, #tpu.memory_space<vmem>>, vector<1x256xf32>
    %405 = vector.broadcast %404 : vector<1x256xf32> to vector<8x256xf32>
    %406 = arith.mulf %403, %405 : vector<8x256xf32>
    %407 = arith.addf %399, %406 : vector<8x256xf32>
    %c24_194 = arith.constant 24 : index
    %c17_195 = arith.constant 17 : index
    %408 = vector.load %arg3[%c24_194, %c17_195] : memref<32x49xf32, #tpu.memory_space<vmem>>, vector<8x1xf32>
    %c16_i32_196 = arith.constant 16 : i32
    %409 = tpu.dynamic_rotate %272 by %c16_i32_196 dim 1 : vector<8x256xf32>, i32 -> vector<8x256xf32>
    %410 = vector.broadcast %408 : vector<8x1xf32> to vector<8x256xf32>
    %411 = arith.mulf %409, %410 : vector<8x256xf32>
    %c17_197 = arith.constant 17 : index
    %c0_198 = arith.constant 0 : index
    %412 = vector.load %arg2[%c17_197, %c0_198] : memref<49x256xf32, #tpu.memory_space<vmem>>, vector<1x256xf32>
    %413 = vector.broadcast %412 : vector<1x256xf32> to vector<8x256xf32>
    %414 = arith.mulf %411, %413 : vector<8x256xf32>
    %415 = arith.addf %407, %414 : vector<8x256xf32>
    %c24_199 = arith.constant 24 : index
    %c18_200 = arith.constant 18 : index
    %416 = vector.load %arg3[%c24_199, %c18_200] : memref<32x49xf32, #tpu.memory_space<vmem>>, vector<8x1xf32>
    %c15_i32_201 = arith.constant 15 : i32
    %417 = tpu.dynamic_rotate %272 by %c15_i32_201 dim 1 : vector<8x256xf32>, i32 -> vector<8x256xf32>
    %418 = vector.broadcast %416 : vector<8x1xf32> to vector<8x256xf32>
    %419 = arith.mulf %417, %418 : vector<8x256xf32>
    %c18_202 = arith.constant 18 : index
    %c0_203 = arith.constant 0 : index
    %420 = vector.load %arg2[%c18_202, %c0_203] : memref<49x256xf32, #tpu.memory_space<vmem>>, vector<1x256xf32>
    %421 = vector.broadcast %420 : vector<1x256xf32> to vector<8x256xf32>
    %422 = arith.mulf %419, %421 : vector<8x256xf32>
    %423 = arith.addf %415, %422 : vector<8x256xf32>
    %c24_204 = arith.constant 24 : index
    %c19_205 = arith.constant 19 : index
    %424 = vector.load %arg3[%c24_204, %c19_205] : memref<32x49xf32, #tpu.memory_space<vmem>>, vector<8x1xf32>
    %c14_i32_206 = arith.constant 14 : i32
    %425 = tpu.dynamic_rotate %272 by %c14_i32_206 dim 1 : vector<8x256xf32>, i32 -> vector<8x256xf32>
    %426 = vector.broadcast %424 : vector<8x1xf32> to vector<8x256xf32>
    %427 = arith.mulf %425, %426 : vector<8x256xf32>
    %c19_207 = arith.constant 19 : index
    %c0_208 = arith.constant 0 : index
    %428 = vector.load %arg2[%c19_207, %c0_208] : memref<49x256xf32, #tpu.memory_space<vmem>>, vector<1x256xf32>
    %429 = vector.broadcast %428 : vector<1x256xf32> to vector<8x256xf32>
    %430 = arith.mulf %427, %429 : vector<8x256xf32>
    %431 = arith.addf %423, %430 : vector<8x256xf32>
    %c24_209 = arith.constant 24 : index
    %c20 = arith.constant 20 : index
    %432 = vector.load %arg3[%c24_209, %c20] : memref<32x49xf32, #tpu.memory_space<vmem>>, vector<8x1xf32>
    %c13_i32 = arith.constant 13 : i32
    %433 = tpu.dynamic_rotate %272 by %c13_i32 dim 1 : vector<8x256xf32>, i32 -> vector<8x256xf32>
    %434 = vector.broadcast %432 : vector<8x1xf32> to vector<8x256xf32>
    %435 = arith.mulf %433, %434 : vector<8x256xf32>
    %c20_210 = arith.constant 20 : index
    %c0_211 = arith.constant 0 : index
    %436 = vector.load %arg2[%c20_210, %c0_211] : memref<49x256xf32, #tpu.memory_space<vmem>>, vector<1x256xf32>
    %437 = vector.broadcast %436 : vector<1x256xf32> to vector<8x256xf32>
    %438 = arith.mulf %435, %437 : vector<8x256xf32>
    %439 = arith.addf %431, %438 : vector<8x256xf32>
    %c24_212 = arith.constant 24 : index
    %c21 = arith.constant 21 : index
    %440 = vector.load %arg3[%c24_212, %c21] : memref<32x49xf32, #tpu.memory_space<vmem>>, vector<8x1xf32>
    %c3_i32 = arith.constant 3 : i32
    %441 = tpu.dynamic_rotate %272 by %c3_i32 dim 1 : vector<8x256xf32>, i32 -> vector<8x256xf32>
    %442 = vector.broadcast %440 : vector<8x1xf32> to vector<8x256xf32>
    %443 = arith.mulf %441, %442 : vector<8x256xf32>
    %c21_213 = arith.constant 21 : index
    %c0_214 = arith.constant 0 : index
    %444 = vector.load %arg2[%c21_213, %c0_214] : memref<49x256xf32, #tpu.memory_space<vmem>>, vector<1x256xf32>
    %445 = vector.broadcast %444 : vector<1x256xf32> to vector<8x256xf32>
    %446 = arith.mulf %443, %445 : vector<8x256xf32>
    %447 = arith.addf %439, %446 : vector<8x256xf32>
    %c24_215 = arith.constant 24 : index
    %c22_216 = arith.constant 22 : index
    %448 = vector.load %arg3[%c24_215, %c22_216] : memref<32x49xf32, #tpu.memory_space<vmem>>, vector<8x1xf32>
    %c2_i32_217 = arith.constant 2 : i32
    %449 = tpu.dynamic_rotate %272 by %c2_i32_217 dim 1 : vector<8x256xf32>, i32 -> vector<8x256xf32>
    %450 = vector.broadcast %448 : vector<8x1xf32> to vector<8x256xf32>
    %451 = arith.mulf %449, %450 : vector<8x256xf32>
    %c22_218 = arith.constant 22 : index
    %c0_219 = arith.constant 0 : index
    %452 = vector.load %arg2[%c22_218, %c0_219] : memref<49x256xf32, #tpu.memory_space<vmem>>, vector<1x256xf32>
    %453 = vector.broadcast %452 : vector<1x256xf32> to vector<8x256xf32>
    %454 = arith.mulf %451, %453 : vector<8x256xf32>
    %455 = arith.addf %447, %454 : vector<8x256xf32>
    %c24_220 = arith.constant 24 : index
    %c23_221 = arith.constant 23 : index
    %456 = vector.load %arg3[%c24_220, %c23_221] : memref<32x49xf32, #tpu.memory_space<vmem>>, vector<8x1xf32>
    %c1_i32_222 = arith.constant 1 : i32
    %457 = tpu.dynamic_rotate %272 by %c1_i32_222 dim 1 : vector<8x256xf32>, i32 -> vector<8x256xf32>
    %458 = vector.broadcast %456 : vector<8x1xf32> to vector<8x256xf32>
    %459 = arith.mulf %457, %458 : vector<8x256xf32>
    %c23_223 = arith.constant 23 : index
    %c0_224 = arith.constant 0 : index
    %460 = vector.load %arg2[%c23_223, %c0_224] : memref<49x256xf32, #tpu.memory_space<vmem>>, vector<1x256xf32>
    %461 = vector.broadcast %460 : vector<1x256xf32> to vector<8x256xf32>
    %462 = arith.mulf %459, %461 : vector<8x256xf32>
    %463 = arith.addf %455, %462 : vector<8x256xf32>
    %c24_225 = arith.constant 24 : index
    %c24_226 = arith.constant 24 : index
    %464 = vector.load %arg3[%c24_225, %c24_226] : memref<32x49xf32, #tpu.memory_space<vmem>>, vector<8x1xf32>
    %465 = vector.broadcast %464 : vector<8x1xf32> to vector<8x256xf32>
    %466 = arith.mulf %272, %465 : vector<8x256xf32>
    %467 = arith.addf %463, %466 : vector<8x256xf32>
    %c24_227 = arith.constant 24 : index
    %c25_228 = arith.constant 25 : index
    %468 = vector.load %arg3[%c24_227, %c25_228] : memref<32x49xf32, #tpu.memory_space<vmem>>, vector<8x1xf32>
    %c255_i32_229 = arith.constant 255 : i32
    %469 = tpu.dynamic_rotate %272 by %c255_i32_229 dim 1 : vector<8x256xf32>, i32 -> vector<8x256xf32>
    %470 = vector.broadcast %468 : vector<8x1xf32> to vector<8x256xf32>
    %471 = arith.mulf %469, %470 : vector<8x256xf32>
    %c25_230 = arith.constant 25 : index
    %c0_231 = arith.constant 0 : index
    %472 = vector.load %arg2[%c25_230, %c0_231] : memref<49x256xf32, #tpu.memory_space<vmem>>, vector<1x256xf32>
    %473 = vector.broadcast %472 : vector<1x256xf32> to vector<8x256xf32>
    %474 = arith.mulf %471, %473 : vector<8x256xf32>
    %475 = arith.addf %467, %474 : vector<8x256xf32>
    %c24_232 = arith.constant 24 : index
    %c26_233 = arith.constant 26 : index
    %476 = vector.load %arg3[%c24_232, %c26_233] : memref<32x49xf32, #tpu.memory_space<vmem>>, vector<8x1xf32>
    %c254_i32_234 = arith.constant 254 : i32
    %477 = tpu.dynamic_rotate %272 by %c254_i32_234 dim 1 : vector<8x256xf32>, i32 -> vector<8x256xf32>
    %478 = vector.broadcast %476 : vector<8x1xf32> to vector<8x256xf32>
    %479 = arith.mulf %477, %478 : vector<8x256xf32>
    %c26_235 = arith.constant 26 : index
    %c0_236 = arith.constant 0 : index
    %480 = vector.load %arg2[%c26_235, %c0_236] : memref<49x256xf32, #tpu.memory_space<vmem>>, vector<1x256xf32>
    %481 = vector.broadcast %480 : vector<1x256xf32> to vector<8x256xf32>
    %482 = arith.mulf %479, %481 : vector<8x256xf32>
    %483 = arith.addf %475, %482 : vector<8x256xf32>
    %c24_237 = arith.constant 24 : index
    %c27 = arith.constant 27 : index
    %484 = vector.load %arg3[%c24_237, %c27] : memref<32x49xf32, #tpu.memory_space<vmem>>, vector<8x1xf32>
    %c253_i32 = arith.constant 253 : i32
    %485 = tpu.dynamic_rotate %272 by %c253_i32 dim 1 : vector<8x256xf32>, i32 -> vector<8x256xf32>
    %486 = vector.broadcast %484 : vector<8x1xf32> to vector<8x256xf32>
    %487 = arith.mulf %485, %486 : vector<8x256xf32>
    %c27_238 = arith.constant 27 : index
    %c0_239 = arith.constant 0 : index
    %488 = vector.load %arg2[%c27_238, %c0_239] : memref<49x256xf32, #tpu.memory_space<vmem>>, vector<1x256xf32>
    %489 = vector.broadcast %488 : vector<1x256xf32> to vector<8x256xf32>
    %490 = arith.mulf %487, %489 : vector<8x256xf32>
    %491 = arith.addf %483, %490 : vector<8x256xf32>
    %c24_240 = arith.constant 24 : index
    %c28 = arith.constant 28 : index
    %492 = vector.load %arg3[%c24_240, %c28] : memref<32x49xf32, #tpu.memory_space<vmem>>, vector<8x1xf32>
    %c243_i32 = arith.constant 243 : i32
    %493 = tpu.dynamic_rotate %272 by %c243_i32 dim 1 : vector<8x256xf32>, i32 -> vector<8x256xf32>
    %494 = vector.broadcast %492 : vector<8x1xf32> to vector<8x256xf32>
    %495 = arith.mulf %493, %494 : vector<8x256xf32>
    %c28_241 = arith.constant 28 : index
    %c0_242 = arith.constant 0 : index
    %496 = vector.load %arg2[%c28_241, %c0_242] : memref<49x256xf32, #tpu.memory_space<vmem>>, vector<1x256xf32>
    %497 = vector.broadcast %496 : vector<1x256xf32> to vector<8x256xf32>
    %498 = arith.mulf %495, %497 : vector<8x256xf32>
    %499 = arith.addf %491, %498 : vector<8x256xf32>
    %c24_243 = arith.constant 24 : index
    %c29_244 = arith.constant 29 : index
    %500 = vector.load %arg3[%c24_243, %c29_244] : memref<32x49xf32, #tpu.memory_space<vmem>>, vector<8x1xf32>
    %c242_i32_245 = arith.constant 242 : i32
    %501 = tpu.dynamic_rotate %272 by %c242_i32_245 dim 1 : vector<8x256xf32>, i32 -> vector<8x256xf32>
    %502 = vector.broadcast %500 : vector<8x1xf32> to vector<8x256xf32>
    %503 = arith.mulf %501, %502 : vector<8x256xf32>
    %c29_246 = arith.constant 29 : index
    %c0_247 = arith.constant 0 : index
    %504 = vector.load %arg2[%c29_246, %c0_247] : memref<49x256xf32, #tpu.memory_space<vmem>>, vector<1x256xf32>
    %505 = vector.broadcast %504 : vector<1x256xf32> to vector<8x256xf32>
    %506 = arith.mulf %503, %505 : vector<8x256xf32>
    %507 = arith.addf %499, %506 : vector<8x256xf32>
    %c24_248 = arith.constant 24 : index
    %c30_249 = arith.constant 30 : index
    %508 = vector.load %arg3[%c24_248, %c30_249] : memref<32x49xf32, #tpu.memory_space<vmem>>, vector<8x1xf32>
    %c241_i32_250 = arith.constant 241 : i32
    %509 = tpu.dynamic_rotate %272 by %c241_i32_250 dim 1 : vector<8x256xf32>, i32 -> vector<8x256xf32>
    %510 = vector.broadcast %508 : vector<8x1xf32> to vector<8x256xf32>
    %511 = arith.mulf %509, %510 : vector<8x256xf32>
    %c30_251 = arith.constant 30 : index
    %c0_252 = arith.constant 0 : index
    %512 = vector.load %arg2[%c30_251, %c0_252] : memref<49x256xf32, #tpu.memory_space<vmem>>, vector<1x256xf32>
    %513 = vector.broadcast %512 : vector<1x256xf32> to vector<8x256xf32>
    %514 = arith.mulf %511, %513 : vector<8x256xf32>
    %515 = arith.addf %507, %514 : vector<8x256xf32>
    %c24_253 = arith.constant 24 : index
    %c31_254 = arith.constant 31 : index
    %516 = vector.load %arg3[%c24_253, %c31_254] : memref<32x49xf32, #tpu.memory_space<vmem>>, vector<8x1xf32>
    %c240_i32_255 = arith.constant 240 : i32
    %517 = tpu.dynamic_rotate %272 by %c240_i32_255 dim 1 : vector<8x256xf32>, i32 -> vector<8x256xf32>
    %518 = vector.broadcast %516 : vector<8x1xf32> to vector<8x256xf32>
    %519 = arith.mulf %517, %518 : vector<8x256xf32>
    %c31_256 = arith.constant 31 : index
    %c0_257 = arith.constant 0 : index
    %520 = vector.load %arg2[%c31_256, %c0_257] : memref<49x256xf32, #tpu.memory_space<vmem>>, vector<1x256xf32>
    %521 = vector.broadcast %520 : vector<1x256xf32> to vector<8x256xf32>
    %522 = arith.mulf %519, %521 : vector<8x256xf32>
    %523 = arith.addf %515, %522 : vector<8x256xf32>
    %c24_258 = arith.constant 24 : index
    %c32_259 = arith.constant 32 : index
    %524 = vector.load %arg3[%c24_258, %c32_259] : memref<32x49xf32, #tpu.memory_space<vmem>>, vector<8x1xf32>
    %c239_i32_260 = arith.constant 239 : i32
    %525 = tpu.dynamic_rotate %272 by %c239_i32_260 dim 1 : vector<8x256xf32>, i32 -> vector<8x256xf32>
    %526 = vector.broadcast %524 : vector<8x1xf32> to vector<8x256xf32>
    %527 = arith.mulf %525, %526 : vector<8x256xf32>
    %c32_261 = arith.constant 32 : index
    %c0_262 = arith.constant 0 : index
    %528 = vector.load %arg2[%c32_261, %c0_262] : memref<49x256xf32, #tpu.memory_space<vmem>>, vector<1x256xf32>
    %529 = vector.broadcast %528 : vector<1x256xf32> to vector<8x256xf32>
    %530 = arith.mulf %527, %529 : vector<8x256xf32>
    %531 = arith.addf %523, %530 : vector<8x256xf32>
    %c24_263 = arith.constant 24 : index
    %c33_264 = arith.constant 33 : index
    %532 = vector.load %arg3[%c24_263, %c33_264] : memref<32x49xf32, #tpu.memory_space<vmem>>, vector<8x1xf32>
    %c238_i32_265 = arith.constant 238 : i32
    %533 = tpu.dynamic_rotate %272 by %c238_i32_265 dim 1 : vector<8x256xf32>, i32 -> vector<8x256xf32>
    %534 = vector.broadcast %532 : vector<8x1xf32> to vector<8x256xf32>
    %535 = arith.mulf %533, %534 : vector<8x256xf32>
    %c33_266 = arith.constant 33 : index
    %c0_267 = arith.constant 0 : index
    %536 = vector.load %arg2[%c33_266, %c0_267] : memref<49x256xf32, #tpu.memory_space<vmem>>, vector<1x256xf32>
    %537 = vector.broadcast %536 : vector<1x256xf32> to vector<8x256xf32>
    %538 = arith.mulf %535, %537 : vector<8x256xf32>
    %539 = arith.addf %531, %538 : vector<8x256xf32>
    %c24_268 = arith.constant 24 : index
    %c34 = arith.constant 34 : index
    %540 = vector.load %arg3[%c24_268, %c34] : memref<32x49xf32, #tpu.memory_space<vmem>>, vector<8x1xf32>
    %c237_i32 = arith.constant 237 : i32
    %541 = tpu.dynamic_rotate %272 by %c237_i32 dim 1 : vector<8x256xf32>, i32 -> vector<8x256xf32>
    %542 = vector.broadcast %540 : vector<8x1xf32> to vector<8x256xf32>
    %543 = arith.mulf %541, %542 : vector<8x256xf32>
    %c34_269 = arith.constant 34 : index
    %c0_270 = arith.constant 0 : index
    %544 = vector.load %arg2[%c34_269, %c0_270] : memref<49x256xf32, #tpu.memory_space<vmem>>, vector<1x256xf32>
    %545 = vector.broadcast %544 : vector<1x256xf32> to vector<8x256xf32>
    %546 = arith.mulf %543, %545 : vector<8x256xf32>
    %547 = arith.addf %539, %546 : vector<8x256xf32>
    %c24_271 = arith.constant 24 : index
    %c35 = arith.constant 35 : index
    %548 = vector.load %arg3[%c24_271, %c35] : memref<32x49xf32, #tpu.memory_space<vmem>>, vector<8x1xf32>
    %c227_i32 = arith.constant 227 : i32
    %549 = tpu.dynamic_rotate %272 by %c227_i32 dim 1 : vector<8x256xf32>, i32 -> vector<8x256xf32>
    %550 = vector.broadcast %548 : vector<8x1xf32> to vector<8x256xf32>
    %551 = arith.mulf %549, %550 : vector<8x256xf32>
    %c35_272 = arith.constant 35 : index
    %c0_273 = arith.constant 0 : index
    %552 = vector.load %arg2[%c35_272, %c0_273] : memref<49x256xf32, #tpu.memory_space<vmem>>, vector<1x256xf32>
    %553 = vector.broadcast %552 : vector<1x256xf32> to vector<8x256xf32>
    %554 = arith.mulf %551, %553 : vector<8x256xf32>
    %555 = arith.addf %547, %554 : vector<8x256xf32>
    %c24_274 = arith.constant 24 : index
    %c36_275 = arith.constant 36 : index
    %556 = vector.load %arg3[%c24_274, %c36_275] : memref<32x49xf32, #tpu.memory_space<vmem>>, vector<8x1xf32>
    %c226_i32_276 = arith.constant 226 : i32
    %557 = tpu.dynamic_rotate %272 by %c226_i32_276 dim 1 : vector<8x256xf32>, i32 -> vector<8x256xf32>
    %558 = vector.broadcast %556 : vector<8x1xf32> to vector<8x256xf32>
    %559 = arith.mulf %557, %558 : vector<8x256xf32>
    %c36_277 = arith.constant 36 : index
    %c0_278 = arith.constant 0 : index
    %560 = vector.load %arg2[%c36_277, %c0_278] : memref<49x256xf32, #tpu.memory_space<vmem>>, vector<1x256xf32>
    %561 = vector.broadcast %560 : vector<1x256xf32> to vector<8x256xf32>
    %562 = arith.mulf %559, %561 : vector<8x256xf32>
    %563 = arith.addf %555, %562 : vector<8x256xf32>
    %c24_279 = arith.constant 24 : index
    %c37_280 = arith.constant 37 : index
    %564 = vector.load %arg3[%c24_279, %c37_280] : memref<32x49xf32, #tpu.memory_space<vmem>>, vector<8x1xf32>
    %c225_i32_281 = arith.constant 225 : i32
    %565 = tpu.dynamic_rotate %272 by %c225_i32_281 dim 1 : vector<8x256xf32>, i32 -> vector<8x256xf32>
    %566 = vector.broadcast %564 : vector<8x1xf32> to vector<8x256xf32>
    %567 = arith.mulf %565, %566 : vector<8x256xf32>
    %c37_282 = arith.constant 37 : index
    %c0_283 = arith.constant 0 : index
    %568 = vector.load %arg2[%c37_282, %c0_283] : memref<49x256xf32, #tpu.memory_space<vmem>>, vector<1x256xf32>
    %569 = vector.broadcast %568 : vector<1x256xf32> to vector<8x256xf32>
    %570 = arith.mulf %567, %569 : vector<8x256xf32>
    %571 = arith.addf %563, %570 : vector<8x256xf32>
    %c24_284 = arith.constant 24 : index
    %c38_285 = arith.constant 38 : index
    %572 = vector.load %arg3[%c24_284, %c38_285] : memref<32x49xf32, #tpu.memory_space<vmem>>, vector<8x1xf32>
    %c224_i32_286 = arith.constant 224 : i32
    %573 = tpu.dynamic_rotate %272 by %c224_i32_286 dim 1 : vector<8x256xf32>, i32 -> vector<8x256xf32>
    %574 = vector.broadcast %572 : vector<8x1xf32> to vector<8x256xf32>
    %575 = arith.mulf %573, %574 : vector<8x256xf32>
    %c38_287 = arith.constant 38 : index
    %c0_288 = arith.constant 0 : index
    %576 = vector.load %arg2[%c38_287, %c0_288] : memref<49x256xf32, #tpu.memory_space<vmem>>, vector<1x256xf32>
    %577 = vector.broadcast %576 : vector<1x256xf32> to vector<8x256xf32>
    %578 = arith.mulf %575, %577 : vector<8x256xf32>
    %579 = arith.addf %571, %578 : vector<8x256xf32>
    %c24_289 = arith.constant 24 : index
    %c39_290 = arith.constant 39 : index
    %580 = vector.load %arg3[%c24_289, %c39_290] : memref<32x49xf32, #tpu.memory_space<vmem>>, vector<8x1xf32>
    %c223_i32_291 = arith.constant 223 : i32
    %581 = tpu.dynamic_rotate %272 by %c223_i32_291 dim 1 : vector<8x256xf32>, i32 -> vector<8x256xf32>
    %582 = vector.broadcast %580 : vector<8x1xf32> to vector<8x256xf32>
    %583 = arith.mulf %581, %582 : vector<8x256xf32>
    %c39_292 = arith.constant 39 : index
    %c0_293 = arith.constant 0 : index
    %584 = vector.load %arg2[%c39_292, %c0_293] : memref<49x256xf32, #tpu.memory_space<vmem>>, vector<1x256xf32>
    %585 = vector.broadcast %584 : vector<1x256xf32> to vector<8x256xf32>
    %586 = arith.mulf %583, %585 : vector<8x256xf32>
    %587 = arith.addf %579, %586 : vector<8x256xf32>
    %c24_294 = arith.constant 24 : index
    %c40_295 = arith.constant 40 : index
    %588 = vector.load %arg3[%c24_294, %c40_295] : memref<32x49xf32, #tpu.memory_space<vmem>>, vector<8x1xf32>
    %c222_i32_296 = arith.constant 222 : i32
    %589 = tpu.dynamic_rotate %272 by %c222_i32_296 dim 1 : vector<8x256xf32>, i32 -> vector<8x256xf32>
    %590 = vector.broadcast %588 : vector<8x1xf32> to vector<8x256xf32>
    %591 = arith.mulf %589, %590 : vector<8x256xf32>
    %c40_297 = arith.constant 40 : index
    %c0_298 = arith.constant 0 : index
    %592 = vector.load %arg2[%c40_297, %c0_298] : memref<49x256xf32, #tpu.memory_space<vmem>>, vector<1x256xf32>
    %593 = vector.broadcast %592 : vector<1x256xf32> to vector<8x256xf32>
    %594 = arith.mulf %591, %593 : vector<8x256xf32>
    %595 = arith.addf %587, %594 : vector<8x256xf32>
    %c24_299 = arith.constant 24 : index
    %c41 = arith.constant 41 : index
    %596 = vector.load %arg3[%c24_299, %c41] : memref<32x49xf32, #tpu.memory_space<vmem>>, vector<8x1xf32>
    %c221_i32 = arith.constant 221 : i32
    %597 = tpu.dynamic_rotate %272 by %c221_i32 dim 1 : vector<8x256xf32>, i32 -> vector<8x256xf32>
    %598 = vector.broadcast %596 : vector<8x1xf32> to vector<8x256xf32>
    %599 = arith.mulf %597, %598 : vector<8x256xf32>
    %c41_300 = arith.constant 41 : index
    %c0_301 = arith.constant 0 : index
    %600 = vector.load %arg2[%c41_300, %c0_301] : memref<49x256xf32, #tpu.memory_space<vmem>>, vector<1x256xf32>
    %601 = vector.broadcast %600 : vector<1x256xf32> to vector<8x256xf32>
    %602 = arith.mulf %599, %601 : vector<8x256xf32>
    %603 = arith.addf %595, %602 : vector<8x256xf32>
    %c24_302 = arith.constant 24 : index
    %c42 = arith.constant 42 : index
    %604 = vector.load %arg3[%c24_302, %c42] : memref<32x49xf32, #tpu.memory_space<vmem>>, vector<8x1xf32>
    %c211_i32 = arith.constant 211 : i32
    %605 = tpu.dynamic_rotate %272 by %c211_i32 dim 1 : vector<8x256xf32>, i32 -> vector<8x256xf32>
    %606 = vector.broadcast %604 : vector<8x1xf32> to vector<8x256xf32>
    %607 = arith.mulf %605, %606 : vector<8x256xf32>
    %c42_303 = arith.constant 42 : index
    %c0_304 = arith.constant 0 : index
    %608 = vector.load %arg2[%c42_303, %c0_304] : memref<49x256xf32, #tpu.memory_space<vmem>>, vector<1x256xf32>
    %609 = vector.broadcast %608 : vector<1x256xf32> to vector<8x256xf32>
    %610 = arith.mulf %607, %609 : vector<8x256xf32>
    %611 = arith.addf %603, %610 : vector<8x256xf32>
    %c24_305 = arith.constant 24 : index
    %c43 = arith.constant 43 : index
    %612 = vector.load %arg3[%c24_305, %c43] : memref<32x49xf32, #tpu.memory_space<vmem>>, vector<8x1xf32>
    %c210_i32 = arith.constant 210 : i32
    %613 = tpu.dynamic_rotate %272 by %c210_i32 dim 1 : vector<8x256xf32>, i32 -> vector<8x256xf32>
    %614 = vector.broadcast %612 : vector<8x1xf32> to vector<8x256xf32>
    %615 = arith.mulf %613, %614 : vector<8x256xf32>
    %c43_306 = arith.constant 43 : index
    %c0_307 = arith.constant 0 : index
    %616 = vector.load %arg2[%c43_306, %c0_307] : memref<49x256xf32, #tpu.memory_space<vmem>>, vector<1x256xf32>
    %617 = vector.broadcast %616 : vector<1x256xf32> to vector<8x256xf32>
    %618 = arith.mulf %615, %617 : vector<8x256xf32>
    %619 = arith.addf %611, %618 : vector<8x256xf32>
    %c24_308 = arith.constant 24 : index
    %c44 = arith.constant 44 : index
    %620 = vector.load %arg3[%c24_308, %c44] : memref<32x49xf32, #tpu.memory_space<vmem>>, vector<8x1xf32>
    %c209_i32 = arith.constant 209 : i32
    %621 = tpu.dynamic_rotate %272 by %c209_i32 dim 1 : vector<8x256xf32>, i32 -> vector<8x256xf32>
    %622 = vector.broadcast %620 : vector<8x1xf32> to vector<8x256xf32>
    %623 = arith.mulf %621, %622 : vector<8x256xf32>
    %c44_309 = arith.constant 44 : index
    %c0_310 = arith.constant 0 : index
    %624 = vector.load %arg2[%c44_309, %c0_310] : memref<49x256xf32, #tpu.memory_space<vmem>>, vector<1x256xf32>
    %625 = vector.broadcast %624 : vector<1x256xf32> to vector<8x256xf32>
    %626 = arith.mulf %623, %625 : vector<8x256xf32>
    %627 = arith.addf %619, %626 : vector<8x256xf32>
    %c24_311 = arith.constant 24 : index
    %c45 = arith.constant 45 : index
    %628 = vector.load %arg3[%c24_311, %c45] : memref<32x49xf32, #tpu.memory_space<vmem>>, vector<8x1xf32>
    %c208_i32 = arith.constant 208 : i32
    %629 = tpu.dynamic_rotate %272 by %c208_i32 dim 1 : vector<8x256xf32>, i32 -> vector<8x256xf32>
    %630 = vector.broadcast %628 : vector<8x1xf32> to vector<8x256xf32>
    %631 = arith.mulf %629, %630 : vector<8x256xf32>
    %c45_312 = arith.constant 45 : index
    %c0_313 = arith.constant 0 : index
    %632 = vector.load %arg2[%c45_312, %c0_313] : memref<49x256xf32, #tpu.memory_space<vmem>>, vector<1x256xf32>
    %633 = vector.broadcast %632 : vector<1x256xf32> to vector<8x256xf32>
    %634 = arith.mulf %631, %633 : vector<8x256xf32>
    %635 = arith.addf %627, %634 : vector<8x256xf32>
    %c24_314 = arith.constant 24 : index
    %c46 = arith.constant 46 : index
    %636 = vector.load %arg3[%c24_314, %c46] : memref<32x49xf32, #tpu.memory_space<vmem>>, vector<8x1xf32>
    %c207_i32 = arith.constant 207 : i32
    %637 = tpu.dynamic_rotate %272 by %c207_i32 dim 1 : vector<8x256xf32>, i32 -> vector<8x256xf32>
    %638 = vector.broadcast %636 : vector<8x1xf32> to vector<8x256xf32>
    %639 = arith.mulf %637, %638 : vector<8x256xf32>
    %c46_315 = arith.constant 46 : index
    %c0_316 = arith.constant 0 : index
    %640 = vector.load %arg2[%c46_315, %c0_316] : memref<49x256xf32, #tpu.memory_space<vmem>>, vector<1x256xf32>
    %641 = vector.broadcast %640 : vector<1x256xf32> to vector<8x256xf32>
    %642 = arith.mulf %639, %641 : vector<8x256xf32>
    %643 = arith.addf %635, %642 : vector<8x256xf32>
    %c24_317 = arith.constant 24 : index
    %c47 = arith.constant 47 : index
    %644 = vector.load %arg3[%c24_317, %c47] : memref<32x49xf32, #tpu.memory_space<vmem>>, vector<8x1xf32>
    %c206_i32 = arith.constant 206 : i32
    %645 = tpu.dynamic_rotate %272 by %c206_i32 dim 1 : vector<8x256xf32>, i32 -> vector<8x256xf32>
    %646 = vector.broadcast %644 : vector<8x1xf32> to vector<8x256xf32>
    %647 = arith.mulf %645, %646 : vector<8x256xf32>
    %c47_318 = arith.constant 47 : index
    %c0_319 = arith.constant 0 : index
    %648 = vector.load %arg2[%c47_318, %c0_319] : memref<49x256xf32, #tpu.memory_space<vmem>>, vector<1x256xf32>
    %649 = vector.broadcast %648 : vector<1x256xf32> to vector<8x256xf32>
    %650 = arith.mulf %647, %649 : vector<8x256xf32>
    %651 = arith.addf %643, %650 : vector<8x256xf32>
    %c24_320 = arith.constant 24 : index
    %c48 = arith.constant 48 : index
    %652 = vector.load %arg3[%c24_320, %c48] : memref<32x49xf32, #tpu.memory_space<vmem>>, vector<8x1xf32>
    %c205_i32 = arith.constant 205 : i32
    %653 = tpu.dynamic_rotate %272 by %c205_i32 dim 1 : vector<8x256xf32>, i32 -> vector<8x256xf32>
    %654 = vector.broadcast %652 : vector<8x1xf32> to vector<8x256xf32>
    %655 = arith.mulf %653, %654 : vector<8x256xf32>
    %c48_321 = arith.constant 48 : index
    %c0_322 = arith.constant 0 : index
    %656 = vector.load %arg2[%c48_321, %c0_322] : memref<49x256xf32, #tpu.memory_space<vmem>>, vector<1x256xf32>
    %657 = vector.broadcast %656 : vector<1x256xf32> to vector<8x256xf32>
    %658 = arith.mulf %655, %657 : vector<8x256xf32>
    %659 = arith.addf %651, %658 : vector<8x256xf32>
    %660 = tpu.concatenate %4, %73, %270, %659 in 0 : vector<8x256xf32>, vector<8x256xf32>, vector<8x256xf32>, vector<8x256xf32> -> vector<32x256xf32>
    %c0_323 = arith.constant 0 : index
    %c0_324 = arith.constant 0 : index
    %661 = vector.load %arg4[%c0_323, %c0_324] : memref<32x32xf32, #tpu.memory_space<vmem>>, vector<32x32xf32>
    %cst = arith.constant dense<0.000000e+00> : vector<32x256xf32>
    %662 = tpu.matmul %661, %660, %cst {dimension_numbers = #tpu.dot_dimension_numbers<[1], [0], [0], [1], [0, 0, 1, 1], [], []>} : vector<32x32xf32>, vector<32x256xf32>, vector<32x256xf32> -> vector<32x256xf32>
    %c0_325 = arith.constant 0 : index
    %c0_326 = arith.constant 0 : index
    %663 = vector.load %arg5[%c0_325, %c0_326] : memref<32x1xf32, #tpu.memory_space<vmem>>, vector<32x1xf32>
    %664 = vector.broadcast %663 : vector<32x1xf32> to vector<32x256xf32>
    %665 = arith.addf %662, %664 : vector<32x256xf32>
    %cst_327 = arith.constant 3.000000e+00 : f32
    %666 = vector.broadcast %cst_327 : f32 to vector<32x256xf32>
    %667 = arith.addf %665, %666 : vector<32x256xf32>
    %cst_328 = arith.constant 0.000000e+00 : f32
    %cst_329 = arith.constant 6.000000e+00 : f32
    %668 = vector.broadcast %cst_328 : f32 to vector<32x256xf32>
    %669 = arith.maximumf %668, %667 : vector<32x256xf32>
    %670 = vector.broadcast %cst_329 : f32 to vector<32x256xf32>
    %671 = arith.minimumf %670, %669 : vector<32x256xf32>
    %672 = arith.mulf %665, %671 : vector<32x256xf32>
    %cst_330 = arith.constant 0.166666672 : f32
    %673 = vector.broadcast %cst_330 : f32 to vector<32x256xf32>
    %674 = arith.mulf %672, %673 : vector<32x256xf32>
    %c0_331 = arith.constant 0 : index
    %c0_332 = arith.constant 0 : index
    %c0_333 = arith.constant 0 : index
    %675 = vector.load %arg6[%c0_331, %c0_332, %c0_333] : memref<1x32x256xf32, #tpu.memory_space<vmem>>, vector<1x32x256xf32>
    %676 = vector.shape_cast %675 : vector<1x32x256xf32> to vector<32x256xf32>
    %677 = vector.shape_cast %674 : vector<32x256xf32> to vector<1x32x256xf32>
    tpu.vector_store %arg6[%c0_331, %c0_332, %c0_333], %677 {strides = array<i32>} : memref<1x32x256xf32, #tpu.memory_space<vmem>>, vector<1x32x256xf32>,
    return
  }
  func.func @transform_0(%arg0: i32) -> (i32, i32, i32) {
    %c0_i32 = arith.constant 0 : i32
    %c0_i32_0 = arith.constant 0 : i32
    %c0_i32_1 = arith.constant 0 : i32
    return %arg0, %c0_i32, %c0_i32_0 : i32, i32, i32
  }
  func.func @transform_1(%arg0: i32) -> (i32, i32) {
    %c0_i32 = arith.constant 0 : i32
    %c0_i32_0 = arith.constant 0 : i32
    %c0_i32_1 = arith.constant 0 : i32
    return %c0_i32, %c0_i32_0 : i32, i32
  }
  func.func @transform_2(%arg0: i32) -> (i32, i32) {
    %c0_i32 = arith.constant 0 : i32
    %c0_i32_0 = arith.constant 0 : i32
    %c0_i32_1 = arith.constant 0 : i32
    return %c0_i32, %c0_i32_0 : i32, i32
  }
  func.func @transform_3(%arg0: i32) -> (i32, i32) {
    %c0_i32 = arith.constant 0 : i32
    %c0_i32_0 = arith.constant 0 : i32
    %c0_i32_1 = arith.constant 0 : i32
    return %c0_i32, %c0_i32_0 : i32, i32
  }
  func.func @transform_4(%arg0: i32) -> (i32, i32) {
    %c0_i32 = arith.constant 0 : i32
    %c0_i32_0 = arith.constant 0 : i32
    %c0_i32_1 = arith.constant 0 : i32
    return %c0_i32, %c0_i32_0 : i32, i32
  }
  func.func @transform_5(%arg0: i32) -> (i32, i32, i32) {
    %c0_i32 = arith.constant 0 : i32
    %c0_i32_0 = arith.constant 0 : i32
    %c0_i32_1 = arith.constant 0 : i32
    return %arg0, %c0_i32, %c0_i32_0 : i32, i32, i32
  }
}

</mosaic_0001>

<llo_original>
// kernel: tpu_custom_call.1
$region0: #{tpu_custom_call.1}
  #allocation0 [shape = 'u32[]', space=smem, size = 0x4, offset = 0x4, fixed_abs, tag = 'smem constant byte address 0x4 - core index']
  #allocation1 [shape = 'u32[144,128]{1,0:T(1,128)}', space=vmem, size = 0x12000, scoped, tag = 'internal scratch']
  %s0 = inlined_call_operand.hbm [shape: f32[2,32,256], index: 0, kind: input, shape index: {}]
  %s1 = inlined_call_operand.hbm [shape: f32[49,256], index: 1, kind: input, shape index: {}]
  %s2 = inlined_call_operand.vmem [shape: f32[32,49], index: 2, kind: input, shape index: {}]
  %s3 = inlined_call_operand.hbm [shape: f32[32,32], index: 3, kind: input, shape index: {}]
  %s4 = inlined_call_operand.vmem [shape: f32[32,1], index: 4, kind: input, shape index: {}]
  %s5 = inlined_call_operand.hbm [shape: f32[2,32,256], index: 5, kind: output, shape index: {}]
  %s6 = sld [smem:[#allocation0]]
  $region65: #{tpu_custom_call.1} parent=0
    _
  %s8 = ssub.s32 1, %s6
  %s9 = scalar_select 0, %s8, %s6
  $region1: #{tpu_custom_call.1} parent=0
    #allocation2 [shape = 'u8[65536]{0}', space=vmem, size = 0x10000, scoped, tag = 'input window, operand 0']
    #allocation3 [shape = 's32[2]{0}', space=sflag, size = 0x8, scoped, tag = 'scoped memory for tpu_custom_call.1']
    #allocation4 [shape = 's32[2]{0}', space=sflag, size = 0x8, scoped, tag = 'scoped memory for tpu_custom_call.1']
    #allocation5 [shape = 'u8[57344]{0}', space=vmem, size = 0xe000, scoped, tag = 'input window, operand 1, single buffered']
    #allocation6 [shape = 's32[1]{0}', space=sflag, size = 0x4, scoped, tag = 'scoped memory for tpu_custom_call.1']
    #allocation7 [shape = 'u8[16384]{0}', space=vmem, size = 0x4000, scoped, tag = 'input window, operand 3, single buffered']
    #allocation8 [shape = 'u8[65536]{0}', space=vmem, size = 0x10000, scoped, tag = 'output window, operand 0']
    %10 = vsyncpa [#allocation3], 0
    %s11 = scalar_lea.sflag [#allocation3], 1
    %12 = vsyncpa %s11, 0
    %13 = vsyncpa [#allocation6], 0
    %14 = vsyncpa [#allocation4], 0
    %s15 = scalar_lea.sflag [#allocation4], 1
    %16 = vsyncpa %s15, 0
    loop: start=0, step=1, limit=4
    $region2: #{tpu_custom_call.1} parent=1 // loop_pre_header
      _
    $region3: #{tpu_custom_call.1} parent=1 // loop_header
      %s18 = sphi 0, %s22
      %p19 = scmp.ge.s32.totalorder %s18, 4
      %s28 = sphi 0, %s30
      %s31 = sphi 0, %s28
      %s32 = sphi 0, %s31
      %s48 = sphi 0, %s32
      %s52 = sphi 0, %s52
      %s54 = sphi 0, %s52
      %s55 = sphi 0, %s54
      %s69 = sphi 0, %s55
      %s73 = sphi 0, %s73
      %s75 = sphi 0, %s73
      %s76 = sphi 0, %s75
      %s90 = sphi 0, %s76
      %s94 = sphi 0, %s94
      %s96 = sphi 0, %s94
      %s97 = sphi 0, %s96
      %s111 = sphi 0, %s97
      %s115 = sphi 0, %s115
      %s117 = sphi 0, %s115
      %s118 = sphi 0, %s117
      %s132 = sphi 0, %s118
      %s138 = sphi 0, %s140
      %s141 = sphi 0, %s138
      %s142 = sphi 0, %s141
      %s158 = sphi 0, %s142
    $region4: #{tpu_custom_call.1} parent=1 // loop_header_branch
      %21 = sbr.rel (%p19) target = $region8
    $region5: #{tpu_custom_call.1} parent=1 // loop_body
      %s23 = ssub.s32 %s18, 1
      %s24 = ssub.s32 %s18, 2
      %s25 = sadd.s32 %s18, 1
      %s26 = ssub.s32 %s18, %s25
      %p27 = scmp.eq.s32.totalorder %s26, 0
      %s29 = sadd.s32 %s28, 1
      %s30 = scalar_select %p27, %s28, %s29
      %p33 = pneg %p27
      %p34 = scmp.eq.s32.totalorder %s18, 1
      %p35 = por %p33, %p34
      %p36 = scmp.ne.s32.totalorder %s28, %s31
      %p37 = scmp.eq.s32.totalorder %s18, 0
      %p38 = por %p36, %p37
      %p39 = scmp.ne.s32.totalorder %s28, %s31
      %p40 = scmp.eq.s32.totalorder %s23, 1
      %p41 = por %p39, %p40
      %p42 = scmp.ne.s32.totalorder %s31, %s32
      %p43 = scmp.eq.s32.totalorder %s23, 0
      %p44 = por %p42, %p43
      %p45 = scmp.ne.s32.totalorder %s31, %s32
      %p46 = scmp.eq.s32.totalorder %s24, 1
      %p47 = por %p45, %p46
      %p49 = scmp.ne.s32.totalorder %s32, %s48
      %p50 = scmp.eq.s32.totalorder %s24, 0
      %p51 = por %p49, %p50
      %s53 = sadd.s32 %s52, 1
      %p56 = scmp.eq.s32.totalorder %s18, 1
      %p57 = scmp.ne.s32.totalorder %s52, %s54
      %p58 = scmp.eq.s32.totalorder %s18, 0
      %p59 = por %p57, %p58
      %p60 = scmp.ne.s32.totalorder %s52, %s54
      %p61 = scmp.eq.s32.totalorder %s23, 1
      %p62 = por %p60, %p61
      %p63 = scmp.ne.s32.totalorder %s54, %s55
      %p64 = scmp.eq.s32.totalorder %s23, 0
      %p65 = por %p63, %p64
      %p66 = scmp.ne.s32.totalorder %s54, %s55
      %p67 = scmp.eq.s32.totalorder %s24, 1
      %p68 = por %p66, %p67
      %p70 = scmp.ne.s32.totalorder %s55, %s69
      %p71 = scmp.eq.s32.totalorder %s24, 0
      %p72 = por %p70, %p71
      %s74 = sadd.s32 %s73, 1
      %p77 = scmp.eq.s32.totalorder %s18, 1
      %p78 = scmp.ne.s32.totalorder %s73, %s75
      %p79 = scmp.eq.s32.totalorder %s18, 0
      %p80 = por %p78, %p79
      %p81 = scmp.ne.s32.totalorder %s73, %s75
      %p82 = scmp.eq.s32.totalorder %s23, 1
      %p83 = por %p81, %p82
      %p84 = scmp.ne.s32.totalorder %s75, %s76
      %p85 = scmp.eq.s32.totalorder %s23, 0
      %p86 = por %p84, %p85
      %p87 = scmp.ne.s32.totalorder %s75, %s76
      %p88 = scmp.eq.s32.totalorder %s24, 1
      %p89 = por %p87, %p88
      %p91 = scmp.ne.s32.totalorder %s76, %s90
      %p92 = scmp.eq.s32.totalorder %s24, 0
      %p93 = por %p91, %p92
      %s95 = sadd.s32 %s94, 1
      %p98 = scmp.eq.s32.totalorder %s18, 1
      %p99 = scmp.ne.s32.totalorder %s94, %s96
      %p100 = scmp.eq.s32.totalorder %s18, 0
      %p101 = por %p99, %p100
      %p102 = scmp.ne.s32.totalorder %s94, %s96
      %p103 = scmp.eq.s32.totalorder %s23, 1
      %p104 = por %p102, %p103
      %p105 = scmp.ne.s32.totalorder %s96, %s97
      %p106 = scmp.eq.s32.totalorder %s23, 0
      %p107 = por %p105, %p106
      %p108 = scmp.ne.s32.totalorder %s96, %s97
      %p109 = scmp.eq.s32.totalorder %s24, 1
      %p110 = por %p108, %p109
      %p112 = scmp.ne.s32.totalorder %s97, %s111
      %p113 = scmp.eq.s32.totalorder %s24, 0
      %p114 = por %p112, %p113
      %s116 = sadd.s32 %s115, 1
      %p119 = scmp.eq.s32.totalorder %s18, 1
      %p120 = scmp.ne.s32.totalorder %s115, %s117
      %p121 = scmp.eq.s32.totalorder %s18, 0
      %p122 = por %p120, %p121
      %p123 = scmp.ne.s32.totalorder %s115, %s117
      %p124 = scmp.eq.s32.totalorder %s23, 1
      %p125 = por %p123, %p124
      %p126 = scmp.ne.s32.totalorder %s117, %s118
      %p127 = scmp.eq.s32.totalorder %s23, 0
      %p128 = por %p126, %p127
      %p129 = scmp.ne.s32.totalorder %s117, %s118
      %p130 = scmp.eq.s32.totalorder %s24, 1
      %p131 = por %p129, %p130
      %p133 = scmp.ne.s32.totalorder %s118, %s132
      %p134 = scmp.eq.s32.totalorder %s24, 0
      %p135 = por %p133, %p134
      %s136 = ssub.s32 %s18, %s25
      %p137 = scmp.eq.s32.totalorder %s136, 0
      %s139 = sadd.s32 %s138, 1
      %s140 = scalar_select %p137, %s138, %s139
      %p143 = pneg %p137
      %p144 = scmp.eq.s32.totalorder %s18, 1
      %p145 = por %p143, %p144
      %p146 = scmp.ne.s32.totalorder %s138, %s141
      %p147 = scmp.eq.s32.totalorder %s18, 0
      %p148 = por %p146, %p147
      %p149 = scmp.ne.s32.totalorder %s138, %s141
      %p150 = scmp.eq.s32.totalorder %s23, 1
      %p151 = por %p149, %p150
      %p152 = scmp.ne.s32.totalorder %s141, %s142
      %p153 = scmp.eq.s32.totalorder %s23, 0
      %p154 = por %p152, %p153
      %p155 = scmp.ne.s32.totalorder %s141, %s142
      %p156 = scmp.eq.s32.totalorder %s24, 1
      %p157 = por %p155, %p156
      %p159 = scmp.ne.s32.totalorder %s142, %s158
      %p160 = scmp.eq.s32.totalorder %s24, 0
      %p161 = por %p159, %p160
      %p162 = scmp.le.s32.totalorder 1, %s18
      %p163 = scmp.lt.s32.totalorder %s18, 3
      %p164 = pnand %p162, %p163
      %p165 = pneg %p164
      // Predicated region
      $region9: #{tpu_custom_call.1} parent=5 // pred_check
        _
      $region10: #{tpu_custom_call.1} parent=5 // pred_check_branch
        %167 = sbr.rel (%p164) target = $region12
      $region11: #{tpu_custom_call.1} parent=5 // pred_region
        %s168 = ssub.s32 %s18, 1
        // Predicated region
        $region13: #{tpu_custom_call.1} parent=11 // pred_check
          %p169 = pneg %p65
        $region14: #{tpu_custom_call.1} parent=11 // pred_check_branch
          %171 = sbr.rel (%p169) target = $region16
        $region15: #{tpu_custom_call.1} parent=11 // pred_region
          %s173 = ssub.s32 1792, 1792
          %174 = vsyncadd [#allocation6], %s173
          %s175 = sshll.u32 [#allocation5], 4
          %s176 = int_to_ptr.vmem [resolvable:$true] %s175
          %181 = dma.hbm_to_vmem [thread:$0]  %s1, 1792, %s176, [#allocation6], 256, 256, 16
        $region16: #{tpu_custom_call.1} parent=11 // pred_fallthru
          _
        // Predicated region
        $region17: #{tpu_custom_call.1} parent=11 // pred_check
          %p182 = pneg %p86
        $region18: #{tpu_custom_call.1} parent=11 // pred_check_branch
          %184 = sbr.rel (%p182) target = $region20
        $region19: #{tpu_custom_call.1} parent=11 // pred_region
          _
        $region20: #{tpu_custom_call.1} parent=11 // pred_fallthru
          _
        // Predicated region
        $region21: #{tpu_custom_call.1} parent=11 // pred_check
          %p185 = pneg %p107
        $region22: #{tpu_custom_call.1} parent=11 // pred_check_branch
          %187 = sbr.rel (%p185) target = $region24
        $region23: #{tpu_custom_call.1} parent=11 // pred_region
          %s189 = ssub.s32 512, 512
          %190 = vsyncadd [#allocation6], %s189
          %s191 = sshll.u32 [#allocation7], 4
          %s192 = int_to_ptr.vmem [resolvable:$true] %s191
          %197 = dma.hbm_to_vmem [thread:$0]  %s3, 512, %s192, [#allocation6], 128, 128, 8
        $region24: #{tpu_custom_call.1} parent=11 // pred_fallthru
          _
        // Predicated region
        $region25: #{tpu_custom_call.1} parent=11 // pred_check
          %p198 = pneg %p128
        $region26: #{tpu_custom_call.1} parent=11 // pred_check_branch
          %200 = sbr.rel (%p198) target = $region28
        $region27: #{tpu_custom_call.1} parent=11 // pred_region
          _
        $region28: #{tpu_custom_call.1} parent=11 // pred_fallthru
          _
      $region12: #{tpu_custom_call.1} parent=5 // pred_fallthru
        _
      %p201 = scmp.lt.s32.totalorder %s18, 2
      // Predicated region
      $region29: #{tpu_custom_call.1} parent=5 // pred_check
        %p202 = pneg %p201
      $region30: #{tpu_custom_call.1} parent=5 // pred_check_branch
        %204 = sbr.rel (%p202) target = $region32
      $region31: #{tpu_custom_call.1} parent=5 // pred_region
        // Predicated region
        $region33: #{tpu_custom_call.1} parent=31 // pred_check
          %p205 = pneg %p38
        $region34: #{tpu_custom_call.1} parent=31 // pred_check_branch
          %207 = sbr.rel (%p205) target = $region36
        $region35: #{tpu_custom_call.1} parent=31 // pred_region
          %s208 = sand.u32 %s28, 1
          %s209 = scalar_lea.sflag [#allocation3], %s208
          %s210 = sand.u32 %s28, 1
          %s211 = smul.addr %s210, 64
          %s212 = scalar_lea.vmem [#allocation2], %s211
          %s214 = ssub.s32 1024, 1024
          %215 = vsyncadd %s209, %s214
          %s216 = smul.addr %s18, 8
          %s217 = smul.addr %s216, 128
          %s218 = scalar_lea.hbm %s0, %s217
          %s219 = sshll.u32 %s212, 4
          %s220 = int_to_ptr.vmem [resolvable:$true] %s219
          %225 = dma.hbm_to_vmem [thread:$0]  %s218, 1024, %s220, %s209, 256, 256, 16
        $region36: #{tpu_custom_call.1} parent=31 // pred_fallthru
          _
      $region32: #{tpu_custom_call.1} parent=5 // pred_fallthru
        _
      %p226 = scmp.le.s32.totalorder 1, %s18
      %p227 = scmp.lt.s32.totalorder %s18, 3
      %p228 = pnand %p226, %p227
      %p229 = pneg %p228
      // Predicated region
      $region37: #{tpu_custom_call.1} parent=5 // pred_check
        _
      $region38: #{tpu_custom_call.1} parent=5 // pred_check_branch
        %231 = sbr.rel (%p228) target = $region40
      $region39: #{tpu_custom_call.1} parent=5 // pred_region
        %s232 = ssub.s32 %s18, 1
        %s233 = sand.u32 %s31, 1
        %s234 = scalar_lea.sflag [#allocation3], %s233
        %s235 = sand.u32 %s31, 1
        %s236 = smul.addr %s235, 64
        %s237 = scalar_lea.vmem [#allocation2], %s236
        // Predicated region
        $region41: #{tpu_custom_call.1} parent=39 // pred_check
          %p238 = pneg %p44
        $region42: #{tpu_custom_call.1} parent=39 // pred_check_branch
          %240 = sbr.rel (%p238) target = $region44
        $region43: #{tpu_custom_call.1} parent=39 // pred_region
          %241 = dma.done %s234, 1024
        $region44: #{tpu_custom_call.1} parent=39 // pred_fallthru
          _
        // Predicated region
        $region45: #{tpu_custom_call.1} parent=39 // pred_check
          %p242 = pneg %p65
        $region46: #{tpu_custom_call.1} parent=39 // pred_check_branch
          %244 = sbr.rel (%p242) target = $region48
        $region47: #{tpu_custom_call.1} parent=39 // pred_region
          %245 = dma.done [#allocation6], 1792
        $region48: #{tpu_custom_call.1} parent=39 // pred_fallthru
          _
        // Predicated region
        $region49: #{tpu_custom_call.1} parent=39 // pred_check
          %p246 = pneg %p107
        $region50: #{tpu_custom_call.1} parent=39 // pred_check_branch
          %248 = sbr.rel (%p246) target = $region52
        $region51: #{tpu_custom_call.1} parent=39 // pred_region
          %249 = dma.done [#allocation6], 512
        $region52: #{tpu_custom_call.1} parent=39 // pred_fallthru
          _
        %s250 = sand.u32 %s31, 1
        %s251 = scalar_lea.sflag [#allocation3], %s250
        %s252 = sand.u32 %s31, 1
        %s253 = smul.addr %s252, 64
        %s254 = scalar_lea.vmem [#allocation2], %s253
        %p255 = pneg %p44
        %p256 = pneg %p41
        %p257 = pneg %p65
        %p258 = pneg %p62
        %p259 = pneg %p86
        %p260 = pneg %p83
        %p261 = pneg %p107
        %p262 = pneg %p104
        %p263 = pneg %p128
        %p264 = pneg %p125
        %p265 = pneg %p154
        %p266 = pneg %p151
        %s267 = sand.u32 %s141, 1
        %s268 = scalar_lea.sflag [#allocation4], %s267
        %s269 = sand.u32 %s141, 1
        %s270 = smul.addr %s269, 64
        %s271 = scalar_lea.vmem [#allocation8], %s270
        %v272 = vld [vmem:[%s237] sm:$0xff]
        %v273 = vld [vmem:[%s237 + $0x8] sm:$0xff]
        %v274 = vld [vmem:[%s2] sm:$0xff]
        %276 = vset.pattern.permute.xlu0 24
        %277 = vperm.xlu0 %276, %v274
        %v278 = vpop.permute.xlu0 %277
        %v280 = vmul.f32 %v272, %v278
        %v281 = vmul.f32 %v273, %v278
        %v282 = vld [vmem:[%s237 + $0x10] sm:$0xff]
        %v283 = vld [vmem:[%s237 + $0x18] sm:$0xff]
        %v284 = vld [vmem:[%s2 + $0x8] sm:$0xff]
        %285 = vrot.lane.b32.xlu0 %v282, 17
        %v286 = vpop.permute.xlu0 %285
        %287 = vrot.lane.b32.xlu0 %v283, 17
        %v288 = vpop.permute.xlu0 %287
        %v289 = vlaneseq
        %v290 = vand.u32 %v289, 127
        %vm291 = vcmp.lt.s32.totalorder %v290, 17
        %v292 = vsel %vm291, %v286, %v288
        %v293 = vsel %vm291, %v288, %v286
        %295 = vset.pattern.permute.xlu0 16
        %296 = vperm.xlu0 %295, %v284
        %v297 = vpop.permute.xlu0 %296
        %v299 = vmul.f32 %v293, %v297
        %v300 = vmul.f32 %v292, %v297
        %s301 = scalar_lea.vmem [#allocation5], 32
        %v302 = vld [vmem:[%s301] ss:$8 sm:$0x3]
        %v304 = vlaneseq
        %v305 = vshrl.u32 %v304, 7
        %v306 = vsub.s32 0, %v305
        %v307 = vrot.slane %v302, %v306
        %v308 = vlaneseq
        %v309 = vshrl.u32 %v308, 7
        %v310 = vsub.s32 1, %v309
        %v311 = vrot.slane %v302, %v310
        %v314 = vmul.f32 %v299, %v307
        %v315 = vmul.f32 %v300, %v311
        %316 = vrot.lane.b32.xlu0 %v282, 16
        %v317 = vpop.permute.xlu0 %316
        %318 = vrot.lane.b32.xlu0 %v283, 16
        %v319 = vpop.permute.xlu0 %318
        %vm320 = vcmp.lt.s32.totalorder %v290, 16
        %v321 = vsel %vm320, %v317, %v319
        %v322 = vsel %vm320, %v319, %v317
        %323 = vset.pattern.permute.xlu0 17
        %324 = vperm.xlu0 %323, %v284
        %v325 = vpop.permute.xlu0 %324
        %v327 = vmul.f32 %v322, %v325
        %v328 = vmul.f32 %v321, %v325
        %s329 = scalar_lea.vmem [#allocation5], 33
        %v330 = vld [vmem:[%s329] ss:$8 sm:$0x3]
        %v332 = vlaneseq
        %v333 = vshrl.u32 %v332, 7
        %v334 = vsub.s32 0, %v333
        %v335 = vrot.slane %v330, %v334
        %v336 = vlaneseq
        %v337 = vshrl.u32 %v336, 7
        %v338 = vsub.s32 1, %v337
        %v339 = vrot.slane %v330, %v338
        %v342 = vmul.f32 %v327, %v335
        %v343 = vmul.f32 %v328, %v339
        %v344 = vadd.f32 %v314, %v342
        %v345 = vadd.f32 %v315, %v343
        %346 = vrot.lane.b32.xlu0 %v282, 15
        %v347 = vpop.permute.xlu0 %346
        %348 = vrot.lane.b32.xlu0 %v283, 15
        %v349 = vpop.permute.xlu0 %348
        %vm350 = vcmp.lt.s32.totalorder %v290, 15
        %v351 = vsel %vm350, %v347, %v349
        %v352 = vsel %vm350, %v349, %v347
        %353 = vset.pattern.permute.xlu0 18
        %354 = vperm.xlu0 %353, %v284
        %v355 = vpop.permute.xlu0 %354
        %v357 = vmul.f32 %v352, %v355
        %v358 = vmul.f32 %v351, %v355
        %s359 = scalar_lea.vmem [#allocation5], 34
        %v360 = vld [vmem:[%s359] ss:$8 sm:$0x3]
        %v362 = vlaneseq
        %v363 = vshrl.u32 %v362, 7
        %v364 = vsub.s32 0, %v363
        %v365 = vrot.slane %v360, %v364
        %v366 = vlaneseq
        %v367 = vshrl.u32 %v366, 7
        %v368 = vsub.s32 1, %v367
        %v369 = vrot.slane %v360, %v368
        %v372 = vmul.f32 %v357, %v365
        %v373 = vmul.f32 %v358, %v369
        %v374 = vadd.f32 %v344, %v372
        %v375 = vadd.f32 %v345, %v373
        %376 = vrot.lane.b32.xlu0 %v282, 1
        %v377 = vpop.permute.xlu0 %376
        %378 = vrot.lane.b32.xlu0 %v283, 1
        %v379 = vpop.permute.xlu0 %378
        %vm380 = vcmp.lt.s32.totalorder %v290, 1
        %v381 = vsel %vm380, %v377, %v379
        %v382 = vsel %vm380, %v379, %v377
        %383 = vset.pattern.permute.xlu0 23
        %384 = vperm.xlu0 %383, %v284
        %v385 = vpop.permute.xlu0 %384
        %v387 = vmul.f32 %v382, %v385
        %v388 = vmul.f32 %v381, %v385
        %s389 = scalar_lea.vmem [#allocation5], 39
        %v390 = vld [vmem:[%s389] ss:$8 sm:$0x3]
        %v392 = vlaneseq
        %v393 = vshrl.u32 %v392, 7
        %v394 = vsub.s32 0, %v393
        %v395 = vrot.slane %v390, %v394
        %v396 = vlaneseq
        %v397 = vshrl.u32 %v396, 7
        %v398 = vsub.s32 1, %v397
        %v399 = vrot.slane %v390, %v398
        %v402 = vmul.f32 %v387, %v395
        %v403 = vmul.f32 %v388, %v399
        %v404 = vadd.f32 %v374, %v402
        %v405 = vadd.f32 %v375, %v403
        %406 = vset.pattern.permute.xlu0 24
        %407 = vperm.xlu0 %406, %v284
        %v408 = vpop.permute.xlu0 %407
        %v410 = vmul.f32 %v282, %v408
        %v411 = vmul.f32 %v283, %v408
        %v412 = vadd.f32 %v404, %v410
        %v413 = vadd.f32 %v405, %v411
        %414 = vrot.lane.b32.xlu0 %v282, 127
        %v415 = vpop.permute.xlu0 %414
        %416 = vrot.lane.b32.xlu0 %v283, 127
        %v417 = vpop.permute.xlu0 %416
        %vm418 = vcmp.lt.s32.totalorder %v290, 127
        %v419 = vsel %vm418, %v415, %v417
        %v420 = vsel %vm418, %v417, %v415
        %421 = vset.pattern.permute.xlu0 25
        %422 = vperm.xlu0 %421, %v284
        %v423 = vpop.permute.xlu0 %422
        %v425 = vmul.f32 %v419, %v423
        %v426 = vmul.f32 %v420, %v423
        %s427 = scalar_lea.vmem [#allocation5], 49
        %v428 = vld [vmem:[%s427] ss:$8 sm:$0x3]
        %v430 = vlaneseq
        %v431 = vshrl.u32 %v430, 7
        %v432 = vsub.s32 0, %v431
        %v433 = vrot.slane %v428, %v432
        %v434 = vlaneseq
        %v435 = vshrl.u32 %v434, 7
        %v436 = vsub.s32 1, %v435
        %v437 = vrot.slane %v428, %v436
        %v440 = vmul.f32 %v425, %v433
        %v441 = vmul.f32 %v426, %v437
        %v442 = vadd.f32 %v412, %v440
        %v443 = vadd.f32 %v413, %v441
        %444 = vrot.lane.b32.xlu0 %v282, 113
        %v445 = vpop.permute.xlu0 %444
        %446 = vrot.lane.b32.xlu0 %v283, 113
        %v447 = vpop.permute.xlu0 %446
        %vm448 = vcmp.lt.s32.totalorder %v290, 113
        %v449 = vsel %vm448, %v445, %v447
        %v450 = vsel %vm448, %v447, %v445
        %451 = vset.pattern.permute.xlu0 30
        %452 = vperm.xlu0 %451, %v284
        %v453 = vpop.permute.xlu0 %452
        %v455 = vmul.f32 %v449, %v453
        %v456 = vmul.f32 %v450, %v453
        %s457 = scalar_lea.vmem [#allocation5], 54
        %v458 = vld [vmem:[%s457] ss:$8 sm:$0x3]
        %v460 = vlaneseq
        %v461 = vshrl.u32 %v460, 7
        %v462 = vsub.s32 0, %v461
        %v463 = vrot.slane %v458, %v462
        %v464 = vlaneseq
        %v465 = vshrl.u32 %v464, 7
        %v466 = vsub.s32 1, %v465
        %v467 = vrot.slane %v458, %v466
        %v470 = vmul.f32 %v455, %v463
        %v471 = vmul.f32 %v456, %v467
        %v472 = vadd.f32 %v442, %v470
        %v473 = vadd.f32 %v443, %v471
        %474 = vrot.lane.b32.xlu0 %v282, 112
        %v475 = vpop.permute.xlu0 %474
        %476 = vrot.lane.b32.xlu0 %v283, 112
        %v477 = vpop.permute.xlu0 %476
        %vm478 = vcmp.lt.s32.totalorder %v290, 112
        %v479 = vsel %vm478, %v475, %v477
        %v480 = vsel %vm478, %v477, %v475
        %481 = vset.pattern.permute.xlu0 31
        %482 = vperm.xlu0 %481, %v284
        %v483 = vpop.permute.xlu0 %482
        %v485 = vmul.f32 %v479, %v483
        %v486 = vmul.f32 %v480, %v483
        %s487 = scalar_lea.vmem [#allocation5], 55
        %v488 = vld [vmem:[%s487] ss:$8 sm:$0x3]
        %v490 = vlaneseq
        %v491 = vshrl.u32 %v490, 7
        %v492 = vsub.s32 0, %v491
        %v493 = vrot.slane %v488, %v492
        %v494 = vlaneseq
        %v495 = vshrl.u32 %v494, 7
        %v496 = vsub.s32 1, %v495
        %v497 = vrot.slane %v488, %v496
        %v500 = vmul.f32 %v485, %v493
        %v501 = vmul.f32 %v486, %v497
        %v502 = vadd.f32 %v472, %v500
        %v503 = vadd.f32 %v473, %v501
        %504 = vrot.lane.b32.xlu0 %v282, 111
        %v505 = vpop.permute.xlu0 %504
        %506 = vrot.lane.b32.xlu0 %v283, 111
        %v507 = vpop.permute.xlu0 %506
        %vm508 = vcmp.lt.s32.totalorder %v290, 111
        %v509 = vsel %vm508, %v505, %v507
        %v510 = vsel %vm508, %v507, %v505
        %511 = vset.pattern.permute.xlu0 32
        %512 = vperm.xlu0 %511, %v284
        %v513 = vpop.permute.xlu0 %512
        %v515 = vmul.f32 %v509, %v513
        %v516 = vmul.f32 %v510, %v513
        %s517 = scalar_lea.vmem [#allocation5], 64
        %v518 = vld [vmem:[%s517] ss:$8 sm:$0x3]
        %v520 = vlaneseq
        %v521 = vshrl.u32 %v520, 7
        %v522 = vsub.s32 0, %v521
        %v523 = vrot.slane %v518, %v522
        %v524 = vlaneseq
        %v525 = vshrl.u32 %v524, 7
        %v526 = vsub.s32 1, %v525
        %v527 = vrot.slane %v518, %v526
        %v530 = vmul.f32 %v515, %v523
        %v531 = vmul.f32 %v516, %v527
        %v532 = vadd.f32 %v502, %v530
        %v533 = vadd.f32 %v503, %v531
        %v534 = vld [vmem:[%s237 + $0x20] sm:$0xff]
        %v535 = vld [vmem:[%s237 + $0x28] sm:$0xff]
        %v536 = vld [vmem:[%s2 + $0x10] sm:$0xff]
        %537 = vrot.lane.b32.xlu0 %v534, 34
        %v538 = vpop.permute.xlu0 %537
        %539 = vrot.lane.b32.xlu0 %v535, 34
        %v540 = vpop.permute.xlu0 %539
        %vm541 = vcmp.lt.s32.totalorder %v290, 34
        %v542 = vsel %vm541, %v538, %v540
        %v543 = vsel %vm541, %v540, %v538
        %545 = vset.pattern.permute.xlu0 8
        %546 = vperm.xlu0 %545, %v536
        %v547 = vpop.permute.xlu0 %546
        %v549 = vmul.f32 %v543, %v547
        %v550 = vmul.f32 %v542, %v547
        %s551 = scalar_lea.vmem [#allocation5], 16
        %v552 = vld [vmem:[%s551] ss:$8 sm:$0x3]
        %v554 = vlaneseq
        %v555 = vshrl.u32 %v554, 7
        %v556 = vsub.s32 0, %v555
        %v557 = vrot.slane %v552, %v556
        %v558 = vlaneseq
        %v559 = vshrl.u32 %v558, 7
        %v560 = vsub.s32 1, %v559
        %v561 = vrot.slane %v552, %v560
        %v564 = vmul.f32 %v549, %v557
        %v565 = vmul.f32 %v550, %v561
        %566 = vrot.lane.b32.xlu0 %v534, 33
        %v567 = vpop.permute.xlu0 %566
        %568 = vrot.lane.b32.xlu0 %v535, 33
        %v569 = vpop.permute.xlu0 %568
        %vm570 = vcmp.lt.s32.totalorder %v290, 33
        %v571 = vsel %vm570, %v567, %v569
        %v572 = vsel %vm570, %v569, %v567
        %573 = vset.pattern.permute.xlu0 9
        %574 = vperm.xlu0 %573, %v536
        %v575 = vpop.permute.xlu0 %574
        %v577 = vmul.f32 %v572, %v575
        %v578 = vmul.f32 %v571, %v575
        %s579 = scalar_lea.vmem [#allocation5], 17
        %v580 = vld [vmem:[%s579] ss:$8 sm:$0x3]
        %v582 = vlaneseq
        %v583 = vshrl.u32 %v582, 7
        %v584 = vsub.s32 0, %v583
        %v585 = vrot.slane %v580, %v584
        %v586 = vlaneseq
        %v587 = vshrl.u32 %v586, 7
        %v588 = vsub.s32 1, %v587
        %v589 = vrot.slane %v580, %v588
        %v592 = vmul.f32 %v577, %v585
        %v593 = vmul.f32 %v578, %v589
        %v594 = vadd.f32 %v564, %v592
        %v595 = vadd.f32 %v565, %v593
        %596 = vrot.lane.b32.xlu0 %v534, 32
        %v597 = vpop.permute.xlu0 %596
        %598 = vrot.lane.b32.xlu0 %v535, 32
        %v599 = vpop.permute.xlu0 %598
        %vm600 = vcmp.lt.s32.totalorder %v290, 32
        %v601 = vsel %vm600, %v597, %v599
        %v602 = vsel %vm600, %v599, %v597
        %603 = vset.pattern.permute.xlu0 10
        %604 = vperm.xlu0 %603, %v536
        %v605 = vpop.permute.xlu0 %604
        %v607 = vmul.f32 %v602, %v605
        %v608 = vmul.f32 %v601, %v605
        %s609 = scalar_lea.vmem [#allocation5], 18
        %v610 = vld [vmem:[%s609] ss:$8 sm:$0x3]
        %v612 = vlaneseq
        %v613 = vshrl.u32 %v612, 7
        %v614 = vsub.s32 0, %v613
        %v615 = vrot.slane %v610, %v614
        %v616 = vlaneseq
        %v617 = vshrl.u32 %v616, 7
        %v618 = vsub.s32 1, %v617
        %v619 = vrot.slane %v610, %v618
        %v622 = vmul.f32 %v607, %v615
        %v623 = vmul.f32 %v608, %v619
        %v624 = vadd.f32 %v594, %v622
        %v625 = vadd.f32 %v595, %v623
        %626 = vrot.lane.b32.xlu0 %v534, 31
        %v627 = vpop.permute.xlu0 %626
        %628 = vrot.lane.b32.xlu0 %v535, 31
        %v629 = vpop.permute.xlu0 %628
        %vm630 = vcmp.lt.s32.totalorder %v290, 31
        %v631 = vsel %vm630, %v627, %v629
        %v632 = vsel %vm630, %v629, %v627
        %633 = vset.pattern.permute.xlu0 11
        %634 = vperm.xlu0 %633, %v536
        %v635 = vpop.permute.xlu0 %634
        %v637 = vmul.f32 %v632, %v635
        %v638 = vmul.f32 %v631, %v635
        %s639 = scalar_lea.vmem [#allocation5], 19
        %v640 = vld [vmem:[%s639] ss:$8 sm:$0x3]
        %v642 = vlaneseq
        %v643 = vshrl.u32 %v642, 7
        %v644 = vsub.s32 0, %v643
        %v645 = vrot.slane %v640, %v644
        %v646 = vlaneseq
        %v647 = vshrl.u32 %v646, 7
        %v648 = vsub.s32 1, %v647
        %v649 = vrot.slane %v640, %v648
        %v652 = vmul.f32 %v637, %v645
        %v653 = vmul.f32 %v638, %v649
        %v654 = vadd.f32 %v624, %v652
        %v655 = vadd.f32 %v625, %v653
        %656 = vrot.lane.b32.xlu0 %v534, 30
        %v657 = vpop.permute.xlu0 %656
        %658 = vrot.lane.b32.xlu0 %v535, 30
        %v659 = vpop.permute.xlu0 %658
        %vm660 = vcmp.lt.s32.totalorder %v290, 30
        %v661 = vsel %vm660, %v657, %v659
        %v662 = vsel %vm660, %v659, %v657
        %663 = vset.pattern.permute.xlu0 12
        %664 = vperm.xlu0 %663, %v536
        %v665 = vpop.permute.xlu0 %664
        %v667 = vmul.f32 %v662, %v665
        %v668 = vmul.f32 %v661, %v665
        %s669 = scalar_lea.vmem [#allocation5], 20
        %v670 = vld [vmem:[%s669] ss:$8 sm:$0x3]
        %v672 = vlaneseq
        %v673 = vshrl.u32 %v672, 7
        %v674 = vsub.s32 0, %v673
        %v675 = vrot.slane %v670, %v674
        %v676 = vlaneseq
        %v677 = vshrl.u32 %v676, 7
        %v678 = vsub.s32 1, %v677
        %v679 = vrot.slane %v670, %v678
        %v682 = vmul.f32 %v667, %v675
        %v683 = vmul.f32 %v668, %v679
        %v684 = vadd.f32 %v654, %v682
        %v685 = vadd.f32 %v655, %v683
        %686 = vrot.lane.b32.xlu0 %v534, 18
        %v687 = vpop.permute.xlu0 %686
        %688 = vrot.lane.b32.xlu0 %v535, 18
        %v689 = vpop.permute.xlu0 %688
        %vm690 = vcmp.lt.s32.totalorder %v290, 18
        %v691 = vsel %vm690, %v687, %v689
        %v692 = vsel %vm690, %v689, %v687
        %693 = vset.pattern.permute.xlu0 15
        %694 = vperm.xlu0 %693, %v536
        %v695 = vpop.permute.xlu0 %694
        %v697 = vmul.f32 %v692, %v695
        %v698 = vmul.f32 %v691, %v695
        %s699 = scalar_lea.vmem [#allocation5], 23
        %v700 = vld [vmem:[%s699] ss:$8 sm:$0x3]
        %v702 = vlaneseq
        %v703 = vshrl.u32 %v702, 7
        %v704 = vsub.s32 0, %v703
        %v705 = vrot.slane %v700, %v704
        %v706 = vlaneseq
        %v707 = vshrl.u32 %v706, 7
        %v708 = vsub.s32 1, %v707
        %v709 = vrot.slane %v700, %v708
        %v712 = vmul.f32 %v697, %v705
        %v713 = vmul.f32 %v698, %v709
        %v714 = vadd.f32 %v684, %v712
        %v715 = vadd.f32 %v685, %v713
        %716 = vrot.lane.b32.xlu0 %v534, 17
        %v717 = vpop.permute.xlu0 %716
        %718 = vrot.lane.b32.xlu0 %v535, 17
        %v719 = vpop.permute.xlu0 %718
        %v720 = vsel %vm291, %v717, %v719
        %v721 = vsel %vm291, %v719, %v717
        %722 = vset.pattern.permute.xlu0 16
        %723 = vperm.xlu0 %722, %v536
        %v724 = vpop.permute.xlu0 %723
        %v726 = vmul.f32 %v721, %v724
        %v727 = vmul.f32 %v720, %v724
        %v728 = vmul.f32 %v726, %v307
        %v729 = vmul.f32 %v727, %v311
        %v730 = vadd.f32 %v714, %v728
        %v731 = vadd.f32 %v715, %v729
        %732 = vrot.lane.b32.xlu0 %v534, 16
        %v733 = vpop.permute.xlu0 %732
        %734 = vrot.lane.b32.xlu0 %v535, 16
        %v735 = vpop.permute.xlu0 %734
        %v736 = vsel %vm320, %v733, %v735
        %v737 = vsel %vm320, %v735, %v733
        %738 = vset.pattern.permute.xlu0 17
        %739 = vperm.xlu0 %738, %v536
        %v740 = vpop.permute.xlu0 %739
        %v742 = vmul.f32 %v737, %v740
        %v743 = vmul.f32 %v736, %v740
        %v744 = vmul.f32 %v742, %v335
        %v745 = vmul.f32 %v743, %v339
        %v746 = vadd.f32 %v730, %v744
        %v747 = vadd.f32 %v731, %v745
        %748 = vrot.lane.b32.xlu0 %v534, 15
        %v749 = vpop.permute.xlu0 %748
        %750 = vrot.lane.b32.xlu0 %v535, 15
        %v751 = vpop.permute.xlu0 %750
        %v752 = vsel %vm350, %v749, %v751
        %v753 = vsel %vm350, %v751, %v749
        %754 = vset.pattern.permute.xlu0 18
        %755 = vperm.xlu0 %754, %v536
        %v756 = vpop.permute.xlu0 %755
        %v758 = vmul.f32 %v753, %v756
        %v759 = vmul.f32 %v752, %v756
        %v760 = vmul.f32 %v758, %v365
        %v761 = vmul.f32 %v759, %v369
        %v762 = vadd.f32 %v746, %v760
        %v763 = vadd.f32 %v747, %v761
        %764 = vrot.lane.b32.xlu0 %v534, 14
        %v765 = vpop.permute.xlu0 %764
        %766 = vrot.lane.b32.xlu0 %v535, 14
        %v767 = vpop.permute.xlu0 %766
        %vm768 = vcmp.lt.s32.totalorder %v290, 14
        %v769 = vsel %vm768, %v765, %v767
        %v770 = vsel %vm768, %v767, %v765
        %771 = vset.pattern.permute.xlu0 19
        %772 = vperm.xlu0 %771, %v536
        %v773 = vpop.permute.xlu0 %772
        %v775 = vmul.f32 %v770, %v773
        %v776 = vmul.f32 %v769, %v773
        %s777 = scalar_lea.vmem [#allocation5], 35
        %v778 = vld [vmem:[%s777] ss:$8 sm:$0x3]
        %v780 = vlaneseq
        %v781 = vshrl.u32 %v780, 7
        %v782 = vsub.s32 0, %v781
        %v783 = vrot.slane %v778, %v782
        %v784 = vlaneseq
        %v785 = vshrl.u32 %v784, 7
        %v786 = vsub.s32 1, %v785
        %v787 = vrot.slane %v778, %v786
        %v790 = vmul.f32 %v775, %v783
        %v791 = vmul.f32 %v776, %v787
        %v792 = vadd.f32 %v762, %v790
        %v793 = vadd.f32 %v763, %v791
        %794 = vrot.lane.b32.xlu0 %v534, 2
        %v795 = vpop.permute.xlu0 %794
        %796 = vrot.lane.b32.xlu0 %v535, 2
        %v797 = vpop.permute.xlu0 %796
        %vm798 = vcmp.lt.s32.totalorder %v290, 2
        %v799 = vsel %vm798, %v795, %v797
        %v800 = vsel %vm798, %v797, %v795
        %801 = vset.pattern.permute.xlu0 22
        %802 = vperm.xlu0 %801, %v536
        %v803 = vpop.permute.xlu0 %802
        %v805 = vmul.f32 %v800, %v803
        %v806 = vmul.f32 %v799, %v803
        %s807 = scalar_lea.vmem [#allocation5], 38
        %v808 = vld [vmem:[%s807] ss:$8 sm:$0x3]
        %v810 = vlaneseq
        %v811 = vshrl.u32 %v810, 7
        %v812 = vsub.s32 0, %v811
        %v813 = vrot.slane %v808, %v812
        %v814 = vlaneseq
        %v815 = vshrl.u32 %v814, 7
        %v816 = vsub.s32 1, %v815
        %v817 = vrot.slane %v808, %v816
        %v820 = vmul.f32 %v805, %v813
        %v821 = vmul.f32 %v806, %v817
        %v822 = vadd.f32 %v792, %v820
        %v823 = vadd.f32 %v793, %v821
        %824 = vrot.lane.b32.xlu0 %v534, 1
        %v825 = vpop.permute.xlu0 %824
        %826 = vrot.lane.b32.xlu0 %v535, 1
        %v827 = vpop.permute.xlu0 %826
        %v828 = vsel %vm380, %v825, %v827
        %v829 = vsel %vm380, %v827, %v825
        %830 = vset.pattern.permute.xlu0 23
        %831 = vperm.xlu0 %830, %v536
        %v832 = vpop.permute.xlu0 %831
        %v834 = vmul.f32 %v829, %v832
        %v835 = vmul.f32 %v828, %v832
        %v836 = vmul.f32 %v834, %v395
        %v837 = vmul.f32 %v835, %v399
        %v838 = vadd.f32 %v822, %v836
        %v839 = vadd.f32 %v823, %v837
        %840 = vset.pattern.permute.xlu0 24
        %841 = vperm.xlu0 %840, %v536
        %v842 = vpop.permute.xlu0 %841
        %v844 = vmul.f32 %v534, %v842
        %v845 = vmul.f32 %v535, %v842
        %v846 = vadd.f32 %v838, %v844
        %v847 = vadd.f32 %v839, %v845
        %848 = vrot.lane.b32.xlu0 %v534, 127
        %v849 = vpop.permute.xlu0 %848
        %850 = vrot.lane.b32.xlu0 %v535, 127
        %v851 = vpop.permute.xlu0 %850
        %v852 = vsel %vm418, %v849, %v851
        %v853 = vsel %vm418, %v851, %v849
        %854 = vset.pattern.permute.xlu0 25
        %855 = vperm.xlu0 %854, %v536
        %v856 = vpop.permute.xlu0 %855
        %v858 = vmul.f32 %v852, %v856
        %v859 = vmul.f32 %v853, %v856
        %v860 = vmul.f32 %v858, %v433
        %v861 = vmul.f32 %v859, %v437
        %v862 = vadd.f32 %v846, %v860
        %v863 = vadd.f32 %v847, %v861
        %864 = vrot.lane.b32.xlu0 %v534, 126
        %v865 = vpop.permute.xlu0 %864
        %866 = vrot.lane.b32.xlu0 %v535, 126
        %v867 = vpop.permute.xlu0 %866
        %vm868 = vcmp.lt.s32.totalorder %v290, 126
        %v869 = vsel %vm868, %v865, %v867
        %v870 = vsel %vm868, %v867, %v865
        %871 = vset.pattern.permute.xlu0 26
        %872 = vperm.xlu0 %871, %v536
        %v873 = vpop.permute.xlu0 %872
        %v875 = vmul.f32 %v869, %v873
        %v876 = vmul.f32 %v870, %v873
        %s877 = scalar_lea.vmem [#allocation5], 50
        %v878 = vld [vmem:[%s877] ss:$8 sm:$0x3]
        %v880 = vlaneseq
        %v881 = vshrl.u32 %v880, 7
        %v882 = vsub.s32 0, %v881
        %v883 = vrot.slane %v878, %v882
        %v884 = vlaneseq
        %v885 = vshrl.u32 %v884, 7
        %v886 = vsub.s32 1, %v885
        %v887 = vrot.slane %v878, %v886
        %v890 = vmul.f32 %v875, %v883
        %v891 = vmul.f32 %v876, %v887
        %v892 = vadd.f32 %v862, %v890
        %v893 = vadd.f32 %v863, %v891
        %894 = vrot.lane.b32.xlu0 %v534, 114
        %v895 = vpop.permute.xlu0 %894
        %896 = vrot.lane.b32.xlu0 %v535, 114
        %v897 = vpop.permute.xlu0 %896
        %vm898 = vcmp.lt.s32.totalorder %v290, 114
        %v899 = vsel %vm898, %v895, %v897
        %v900 = vsel %vm898, %v897, %v895
        %901 = vset.pattern.permute.xlu0 29
        %902 = vperm.xlu0 %901, %v536
        %v903 = vpop.permute.xlu0 %902
        %v905 = vmul.f32 %v899, %v903
        %v906 = vmul.f32 %v900, %v903
        %s907 = scalar_lea.vmem [#allocation5], 53
        %v908 = vld [vmem:[%s907] ss:$8 sm:$0x3]
        %v910 = vlaneseq
        %v911 = vshrl.u32 %v910, 7
        %v912 = vsub.s32 0, %v911
        %v913 = vrot.slane %v908, %v912
        %v914 = vlaneseq
        %v915 = vshrl.u32 %v914, 7
        %v916 = vsub.s32 1, %v915
        %v917 = vrot.slane %v908, %v916
        %v920 = vmul.f32 %v905, %v913
        %v921 = vmul.f32 %v906, %v917
        %v922 = vadd.f32 %v892, %v920
        %v923 = vadd.f32 %v893, %v921
        %924 = vrot.lane.b32.xlu0 %v534, 113
        %v925 = vpop.permute.xlu0 %924
        %926 = vrot.lane.b32.xlu0 %v535, 113
        %v927 = vpop.permute.xlu0 %926
        %v928 = vsel %vm448, %v925, %v927
        %v929 = vsel %vm448, %v927, %v925
        %930 = vset.pattern.permute.xlu0 30
        %931 = vperm.xlu0 %930, %v536
        %v932 = vpop.permute.xlu0 %931
        %v934 = vmul.f32 %v928, %v932
        %v935 = vmul.f32 %v929, %v932
        %v936 = vmul.f32 %v934, %v463
        %v937 = vmul.f32 %v935, %v467
        %v938 = vadd.f32 %v922, %v936
        %v939 = vadd.f32 %v923, %v937
        %940 = vrot.lane.b32.xlu0 %v534, 112
        %v941 = vpop.permute.xlu0 %940
        %942 = vrot.lane.b32.xlu0 %v535, 112
        %v943 = vpop.permute.xlu0 %942
        %v944 = vsel %vm478, %v941, %v943
        %v945 = vsel %vm478, %v943, %v941
        %946 = vset.pattern.permute.xlu0 31
        %947 = vperm.xlu0 %946, %v536
        %v948 = vpop.permute.xlu0 %947
        %v950 = vmul.f32 %v944, %v948
        %v951 = vmul.f32 %v945, %v948
        %v952 = vmul.f32 %v950, %v493
        %v953 = vmul.f32 %v951, %v497
        %v954 = vadd.f32 %v938, %v952
        %v955 = vadd.f32 %v939, %v953
        %956 = vrot.lane.b32.xlu0 %v534, 111
        %v957 = vpop.permute.xlu0 %956
        %958 = vrot.lane.b32.xlu0 %v535, 111
        %v959 = vpop.permute.xlu0 %958
        %v960 = vsel %vm508, %v957, %v959
        %v961 = vsel %vm508, %v959, %v957
        %962 = vset.pattern.permute.xlu0 32
        %963 = vperm.xlu0 %962, %v536
        %v964 = vpop.permute.xlu0 %963
        %v966 = vmul.f32 %v960, %v964
        %v967 = vmul.f32 %v961, %v964
        %v968 = vmul.f32 %v966, %v523
        %v969 = vmul.f32 %v967, %v527
        %v970 = vadd.f32 %v954, %v968
        %v971 = vadd.f32 %v955, %v969
        %972 = vrot.lane.b32.xlu0 %v534, 110
        %v973 = vpop.permute.xlu0 %972
        %974 = vrot.lane.b32.xlu0 %v535, 110
        %v975 = vpop.permute.xlu0 %974
        %vm976 = vcmp.lt.s32.totalorder %v290, 110
        %v977 = vsel %vm976, %v973, %v975
        %v978 = vsel %vm976, %v975, %v973
        %979 = vset.pattern.permute.xlu0 33
        %980 = vperm.xlu0 %979, %v536
        %v981 = vpop.permute.xlu0 %980
        %v983 = vmul.f32 %v977, %v981
        %v984 = vmul.f32 %v978, %v981
        %s985 = scalar_lea.vmem [#allocation5], 65
        %v986 = vld [vmem:[%s985] ss:$8 sm:$0x3]
        %v988 = vlaneseq
        %v989 = vshrl.u32 %v988, 7
        %v990 = vsub.s32 0, %v989
        %v991 = vrot.slane %v986, %v990
        %v992 = vlaneseq
        %v993 = vshrl.u32 %v992, 7
        %v994 = vsub.s32 1, %v993
        %v995 = vrot.slane %v986, %v994
        %v998 = vmul.f32 %v983, %v991
        %v999 = vmul.f32 %v984, %v995
        %v1000 = vadd.f32 %v970, %v998
        %v1001 = vadd.f32 %v971, %v999
        %1002 = vrot.lane.b32.xlu0 %v534, 98
        %v1003 = vpop.permute.xlu0 %1002
        %1004 = vrot.lane.b32.xlu0 %v535, 98
        %v1005 = vpop.permute.xlu0 %1004
        %vm1006 = vcmp.lt.s32.totalorder %v290, 98
        %v1007 = vsel %vm1006, %v1003, %v1005
        %v1008 = vsel %vm1006, %v1005, %v1003
        %1009 = vset.pattern.permute.xlu0 36
        %1010 = vperm.xlu0 %1009, %v536
        %v1011 = vpop.permute.xlu0 %1010
        %v1013 = vmul.f32 %v1007, %v1011
        %v1014 = vmul.f32 %v1008, %v1011
        %s1015 = scalar_lea.vmem [#allocation5], 68
        %v1016 = vld [vmem:[%s1015] ss:$8 sm:$0x3]
        %v1018 = vlaneseq
        %v1019 = vshrl.u32 %v1018, 7
        %v1020 = vsub.s32 0, %v1019
        %v1021 = vrot.slane %v1016, %v1020
        %v1022 = vlaneseq
        %v1023 = vshrl.u32 %v1022, 7
        %v1024 = vsub.s32 1, %v1023
        %v1025 = vrot.slane %v1016, %v1024
        %v1028 = vmul.f32 %v1013, %v1021
        %v1029 = vmul.f32 %v1014, %v1025
        %v1030 = vadd.f32 %v1000, %v1028
        %v1031 = vadd.f32 %v1001, %v1029
        %1032 = vrot.lane.b32.xlu0 %v534, 97
        %v1033 = vpop.permute.xlu0 %1032
        %1034 = vrot.lane.b32.xlu0 %v535, 97
        %v1035 = vpop.permute.xlu0 %1034
        %vm1036 = vcmp.lt.s32.totalorder %v290, 97
        %v1037 = vsel %vm1036, %v1033, %v1035
        %v1038 = vsel %vm1036, %v1035, %v1033
        %1039 = vset.pattern.permute.xlu0 37
        %1040 = vperm.xlu0 %1039, %v536
        %v1041 = vpop.permute.xlu0 %1040
        %v1043 = vmul.f32 %v1037, %v1041
        %v1044 = vmul.f32 %v1038, %v1041
        %s1045 = scalar_lea.vmem [#allocation5], 69
        %v1046 = vld [vmem:[%s1045] ss:$8 sm:$0x3]
        %v1048 = vlaneseq
        %v1049 = vshrl.u32 %v1048, 7
        %v1050 = vsub.s32 0, %v1049
        %v1051 = vrot.slane %v1046, %v1050
        %v1052 = vlaneseq
        %v1053 = vshrl.u32 %v1052, 7
        %v1054 = vsub.s32 1, %v1053
        %v1055 = vrot.slane %v1046, %v1054
        %v1058 = vmul.f32 %v1043, %v1051
        %v1059 = vmul.f32 %v1044, %v1055
        %v1060 = vadd.f32 %v1030, %v1058
        %v1061 = vadd.f32 %v1031, %v1059
        %1062 = vrot.lane.b32.xlu0 %v534, 96
        %v1063 = vpop.permute.xlu0 %1062
        %1064 = vrot.lane.b32.xlu0 %v535, 96
        %v1065 = vpop.permute.xlu0 %1064
        %vm1066 = vcmp.lt.s32.totalorder %v290, 96
        %v1067 = vsel %vm1066, %v1063, %v1065
        %v1068 = vsel %vm1066, %v1065, %v1063
        %1069 = vset.pattern.permute.xlu0 38
        %1070 = vperm.xlu0 %1069, %v536
        %v1071 = vpop.permute.xlu0 %1070
        %v1073 = vmul.f32 %v1067, %v1071
        %v1074 = vmul.f32 %v1068, %v1071
        %s1075 = scalar_lea.vmem [#allocation5], 70
        %v1076 = vld [vmem:[%s1075] ss:$8 sm:$0x3]
        %v1078 = vlaneseq
        %v1079 = vshrl.u32 %v1078, 7
        %v1080 = vsub.s32 0, %v1079
        %v1081 = vrot.slane %v1076, %v1080
        %v1082 = vlaneseq
        %v1083 = vshrl.u32 %v1082, 7
        %v1084 = vsub.s32 1, %v1083
        %v1085 = vrot.slane %v1076, %v1084
        %v1088 = vmul.f32 %v1073, %v1081
        %v1089 = vmul.f32 %v1074, %v1085
        %v1090 = vadd.f32 %v1060, %v1088
        %v1091 = vadd.f32 %v1061, %v1089
        %1092 = vrot.lane.b32.xlu0 %v534, 95
        %v1093 = vpop.permute.xlu0 %1092
        %1094 = vrot.lane.b32.xlu0 %v535, 95
        %v1095 = vpop.permute.xlu0 %1094
        %vm1096 = vcmp.lt.s32.totalorder %v290, 95
        %v1097 = vsel %vm1096, %v1093, %v1095
        %v1098 = vsel %vm1096, %v1095, %v1093
        %1099 = vset.pattern.permute.xlu0 39
        %1100 = vperm.xlu0 %1099, %v536
        %v1101 = vpop.permute.xlu0 %1100
        %v1103 = vmul.f32 %v1097, %v1101
        %v1104 = vmul.f32 %v1098, %v1101
        %s1105 = scalar_lea.vmem [#allocation5], 71
        %v1106 = vld [vmem:[%s1105] ss:$8 sm:$0x3]
        %v1108 = vlaneseq
        %v1109 = vshrl.u32 %v1108, 7
        %v1110 = vsub.s32 0, %v1109
        %v1111 = vrot.slane %v1106, %v1110
        %v1112 = vlaneseq
        %v1113 = vshrl.u32 %v1112, 7
        %v1114 = vsub.s32 1, %v1113
        %v1115 = vrot.slane %v1106, %v1114
        %v1118 = vmul.f32 %v1103, %v1111
        %v1119 = vmul.f32 %v1104, %v1115
        %v1120 = vadd.f32 %v1090, %v1118
        %v1121 = vadd.f32 %v1091, %v1119
        %1122 = vrot.lane.b32.xlu0 %v534, 94
        %v1123 = vpop.permute.xlu0 %1122
        %1124 = vrot.lane.b32.xlu0 %v535, 94
        %v1125 = vpop.permute.xlu0 %1124
        %vm1126 = vcmp.lt.s32.totalorder %v290, 94
        %v1127 = vsel %vm1126, %v1123, %v1125
        %v1128 = vsel %vm1126, %v1125, %v1123
        %1129 = vset.pattern.permute.xlu0 40
        %1130 = vperm.xlu0 %1129, %v536
        %v1131 = vpop.permute.xlu0 %1130
        %v1133 = vmul.f32 %v1127, %v1131
        %v1134 = vmul.f32 %v1128, %v1131
        %s1135 = scalar_lea.vmem [#allocation5], 80
        %v1136 = vld [vmem:[%s1135] ss:$8 sm:$0x3]
        %v1138 = vlaneseq
        %v1139 = vshrl.u32 %v1138, 7
        %v1140 = vsub.s32 0, %v1139
        %v1141 = vrot.slane %v1136, %v1140
        %v1142 = vlaneseq
        %v1143 = vshrl.u32 %v1142, 7
        %v1144 = vsub.s32 1, %v1143
        %v1145 = vrot.slane %v1136, %v1144
        %v1148 = vmul.f32 %v1133, %v1141
        %v1149 = vmul.f32 %v1134, %v1145
        %v1150 = vadd.f32 %v1120, %v1148
        %v1151 = vadd.f32 %v1121, %v1149
        %v1152 = vld [vmem:[%s237 + $0x30] sm:$0xff]
        %v1153 = vld [vmem:[%s237 + $0x38] sm:$0xff]
        %v1154 = vld [vmem:[%s2 + $0x18] sm:$0xff]
        %1155 = vrot.lane.b32.xlu0 %v1152, 51
        %v1156 = vpop.permute.xlu0 %1155
        %1157 = vrot.lane.b32.xlu0 %v1153, 51
        %v1158 = vpop.permute.xlu0 %1157
        %vm1159 = vcmp.lt.s32.totalorder %v290, 51
        %v1160 = vsel %vm1159, %v1156, %v1158
        %v1161 = vsel %vm1159, %v1158, %v1156
        %1163 = vset.pattern.permute.xlu0 0
        %1164 = vperm.xlu0 %1163, %v1154
        %v1165 = vpop.permute.xlu0 %1164
        %v1167 = vmul.f32 %v1161, %v1165
        %v1168 = vmul.f32 %v1160, %v1165
        %v1169 = vld [vmem:[#allocation5] ss:$8 sm:$0x3]
        %v1171 = vlaneseq
        %v1172 = vshrl.u32 %v1171, 7
        %v1173 = vsub.s32 0, %v1172
        %v1174 = vrot.slane %v1169, %v1173
        %v1175 = vlaneseq
        %v1176 = vshrl.u32 %v1175, 7
        %v1177 = vsub.s32 1, %v1176
        %v1178 = vrot.slane %v1169, %v1177
        %v1181 = vmul.f32 %v1167, %v1174
        %v1182 = vmul.f32 %v1168, %v1178
        %1183 = vrot.lane.b32.xlu0 %v1152, 50
        %v1184 = vpop.permute.xlu0 %1183
        %1185 = vrot.lane.b32.xlu0 %v1153, 50
        %v1186 = vpop.permute.xlu0 %1185
        %vm1187 = vcmp.lt.s32.totalorder %v290, 50
        %v1188 = vsel %vm1187, %v1184, %v1186
        %v1189 = vsel %vm1187, %v1186, %v1184
        %1190 = vset.pattern.permute.xlu0 1
        %1191 = vperm.xlu0 %1190, %v1154
        %v1192 = vpop.permute.xlu0 %1191
        %v1194 = vmul.f32 %v1189, %v1192
        %v1195 = vmul.f32 %v1188, %v1192
        %s1196 = scalar_lea.vmem [#allocation5], 1
        %v1197 = vld [vmem:[%s1196] ss:$8 sm:$0x3]
        %v1199 = vlaneseq
        %v1200 = vshrl.u32 %v1199, 7
        %v1201 = vsub.s32 0, %v1200
        %v1202 = vrot.slane %v1197, %v1201
        %v1203 = vlaneseq
        %v1204 = vshrl.u32 %v1203, 7
        %v1205 = vsub.s32 1, %v1204
        %v1206 = vrot.slane %v1197, %v1205
        %v1209 = vmul.f32 %v1194, %v1202
        %v1210 = vmul.f32 %v1195, %v1206
        %v1211 = vadd.f32 %v1181, %v1209
        %v1212 = vadd.f32 %v1182, %v1210
        %1213 = vrot.lane.b32.xlu0 %v1152, 49
        %v1214 = vpop.permute.xlu0 %1213
        %1215 = vrot.lane.b32.xlu0 %v1153, 49
        %v1216 = vpop.permute.xlu0 %1215
        %vm1217 = vcmp.lt.s32.totalorder %v290, 49
        %v1218 = vsel %vm1217, %v1214, %v1216
        %v1219 = vsel %vm1217, %v1216, %v1214
        %1220 = vset.pattern.permute.xlu0 2
        %1221 = vperm.xlu0 %1220, %v1154
        %v1222 = vpop.permute.xlu0 %1221
        %v1224 = vmul.f32 %v1219, %v1222
        %v1225 = vmul.f32 %v1218, %v1222
        %s1226 = scalar_lea.vmem [#allocation5], 2
        %v1227 = vld [vmem:[%s1226] ss:$8 sm:$0x3]
        %v1229 = vlaneseq
        %v1230 = vshrl.u32 %v1229, 7
        %v1231 = vsub.s32 0, %v1230
        %v1232 = vrot.slane %v1227, %v1231
        %v1233 = vlaneseq
        %v1234 = vshrl.u32 %v1233, 7
        %v1235 = vsub.s32 1, %v1234
        %v1236 = vrot.slane %v1227, %v1235
        %v1239 = vmul.f32 %v1224, %v1232
        %v1240 = vmul.f32 %v1225, %v1236
        %v1241 = vadd.f32 %v1211, %v1239
        %v1242 = vadd.f32 %v1212, %v1240
        %1243 = vrot.lane.b32.xlu0 %v1152, 48
        %v1244 = vpop.permute.xlu0 %1243
        %1245 = vrot.lane.b32.xlu0 %v1153, 48
        %v1246 = vpop.permute.xlu0 %1245
        %vm1247 = vcmp.lt.s32.totalorder %v290, 48
        %v1248 = vsel %vm1247, %v1244, %v1246
        %v1249 = vsel %vm1247, %v1246, %v1244
        %1250 = vset.pattern.permute.xlu0 3
        %1251 = vperm.xlu0 %1250, %v1154
        %v1252 = vpop.permute.xlu0 %1251
        %v1254 = vmul.f32 %v1249, %v1252
        %v1255 = vmul.f32 %v1248, %v1252
        %s1256 = scalar_lea.vmem [#allocation5], 3
        %v1257 = vld [vmem:[%s1256] ss:$8 sm:$0x3]
        %v1259 = vlaneseq
        %v1260 = vshrl.u32 %v1259, 7
        %v1261 = vsub.s32 0, %v1260
        %v1262 = vrot.slane %v1257, %v1261
        %v1263 = vlaneseq
        %v1264 = vshrl.u32 %v1263, 7
        %v1265 = vsub.s32 1, %v1264
        %v1266 = vrot.slane %v1257, %v1265
        %v1269 = vmul.f32 %v1254, %v1262
        %v1270 = vmul.f32 %v1255, %v1266
        %v1271 = vadd.f32 %v1241, %v1269
        %v1272 = vadd.f32 %v1242, %v1270
        %1273 = vrot.lane.b32.xlu0 %v1152, 47
        %v1274 = vpop.permute.xlu0 %1273
        %1275 = vrot.lane.b32.xlu0 %v1153, 47
        %v1276 = vpop.permute.xlu0 %1275
        %vm1277 = vcmp.lt.s32.totalorder %v290, 47
        %v1278 = vsel %vm1277, %v1274, %v1276
        %v1279 = vsel %vm1277, %v1276, %v1274
        %1280 = vset.pattern.permute.xlu0 4
        %1281 = vperm.xlu0 %1280, %v1154
        %v1282 = vpop.permute.xlu0 %1281
        %v1284 = vmul.f32 %v1279, %v1282
        %v1285 = vmul.f32 %v1278, %v1282
        %s1286 = scalar_lea.vmem [#allocation5], 4
        %v1287 = vld [vmem:[%s1286] ss:$8 sm:$0x3]
        %v1289 = vlaneseq
        %v1290 = vshrl.u32 %v1289, 7
        %v1291 = vsub.s32 0, %v1290
        %v1292 = vrot.slane %v1287, %v1291
        %v1293 = vlaneseq
        %v1294 = vshrl.u32 %v1293, 7
        %v1295 = vsub.s32 1, %v1294
        %v1296 = vrot.slane %v1287, %v1295
        %v1299 = vmul.f32 %v1284, %v1292
        %v1300 = vmul.f32 %v1285, %v1296
        %v1301 = vadd.f32 %v1271, %v1299
        %v1302 = vadd.f32 %v1272, %v1300
        %1303 = vrot.lane.b32.xlu0 %v1152, 46
        %v1304 = vpop.permute.xlu0 %1303
        %1305 = vrot.lane.b32.xlu0 %v1153, 46
        %v1306 = vpop.permute.xlu0 %1305
        %vm1307 = vcmp.lt.s32.totalorder %v290, 46
        %v1308 = vsel %vm1307, %v1304, %v1306
        %v1309 = vsel %vm1307, %v1306, %v1304
        %1310 = vset.pattern.permute.xlu0 5
        %1311 = vperm.xlu0 %1310, %v1154
        %v1312 = vpop.permute.xlu0 %1311
        %v1314 = vmul.f32 %v1309, %v1312
        %v1315 = vmul.f32 %v1308, %v1312
        %s1316 = scalar_lea.vmem [#allocation5], 5
        %v1317 = vld [vmem:[%s1316] ss:$8 sm:$0x3]
        %v1319 = vlaneseq
        %v1320 = vshrl.u32 %v1319, 7
        %v1321 = vsub.s32 0, %v1320
        %v1322 = vrot.slane %v1317, %v1321
        %v1323 = vlaneseq
        %v1324 = vshrl.u32 %v1323, 7
        %v1325 = vsub.s32 1, %v1324
        %v1326 = vrot.slane %v1317, %v1325
        %v1329 = vmul.f32 %v1314, %v1322
        %v1330 = vmul.f32 %v1315, %v1326
        %v1331 = vadd.f32 %v1301, %v1329
        %v1332 = vadd.f32 %v1302, %v1330
        %1333 = vrot.lane.b32.xlu0 %v1152, 45
        %v1334 = vpop.permute.xlu0 %1333
        %1335 = vrot.lane.b32.xlu0 %v1153, 45
        %v1336 = vpop.permute.xlu0 %1335
        %vm1337 = vcmp.lt.s32.totalorder %v290, 45
        %v1338 = vsel %vm1337, %v1334, %v1336
        %v1339 = vsel %vm1337, %v1336, %v1334
        %1340 = vset.pattern.permute.xlu0 6
        %1341 = vperm.xlu0 %1340, %v1154
        %v1342 = vpop.permute.xlu0 %1341
        %v1344 = vmul.f32 %v1339, %v1342
        %v1345 = vmul.f32 %v1338, %v1342
        %s1346 = scalar_lea.vmem [#allocation5], 6
        %v1347 = vld [vmem:[%s1346] ss:$8 sm:$0x3]
        %v1349 = vlaneseq
        %v1350 = vshrl.u32 %v1349, 7
        %v1351 = vsub.s32 0, %v1350
        %v1352 = vrot.slane %v1347, %v1351
        %v1353 = vlaneseq
        %v1354 = vshrl.u32 %v1353, 7
        %v1355 = vsub.s32 1, %v1354
        %v1356 = vrot.slane %v1347, %v1355
        %v1359 = vmul.f32 %v1344, %v1352
        %v1360 = vmul.f32 %v1345, %v1356
        %v1361 = vadd.f32 %v1331, %v1359
        %v1362 = vadd.f32 %v1332, %v1360
        %1363 = vrot.lane.b32.xlu0 %v1152, 35
        %v1364 = vpop.permute.xlu0 %1363
        %1365 = vrot.lane.b32.xlu0 %v1153, 35
        %v1366 = vpop.permute.xlu0 %1365
        %vm1367 = vcmp.lt.s32.totalorder %v290, 35
        %v1368 = vsel %vm1367, %v1364, %v1366
        %v1369 = vsel %vm1367, %v1366, %v1364
        %1370 = vset.pattern.permute.xlu0 7
        %1371 = vperm.xlu0 %1370, %v1154
        %v1372 = vpop.permute.xlu0 %1371
        %v1374 = vmul.f32 %v1369, %v1372
        %v1375 = vmul.f32 %v1368, %v1372
        %s1376 = scalar_lea.vmem [#allocation5], 7
        %v1377 = vld [vmem:[%s1376] ss:$8 sm:$0x3]
        %v1379 = vlaneseq
        %v1380 = vshrl.u32 %v1379, 7
        %v1381 = vsub.s32 0, %v1380
        %v1382 = vrot.slane %v1377, %v1381
        %v1383 = vlaneseq
        %v1384 = vshrl.u32 %v1383, 7
        %v1385 = vsub.s32 1, %v1384
        %v1386 = vrot.slane %v1377, %v1385
        %v1389 = vmul.f32 %v1374, %v1382
        %v1390 = vmul.f32 %v1375, %v1386
        %v1391 = vadd.f32 %v1361, %v1389
        %v1392 = vadd.f32 %v1362, %v1390
        %1393 = vrot.lane.b32.xlu0 %v1152, 34
        %v1394 = vpop.permute.xlu0 %1393
        %1395 = vrot.lane.b32.xlu0 %v1153, 34
        %v1396 = vpop.permute.xlu0 %1395
        %v1397 = vsel %vm541, %v1394, %v1396
        %v1398 = vsel %vm541, %v1396, %v1394
        %1399 = vset.pattern.permute.xlu0 8
        %1400 = vperm.xlu0 %1399, %v1154
        %v1401 = vpop.permute.xlu0 %1400
        %v1403 = vmul.f32 %v1398, %v1401
        %v1404 = vmul.f32 %v1397, %v1401
        %v1405 = vmul.f32 %v1403, %v557
        %v1406 = vmul.f32 %v1404, %v561
        %v1407 = vadd.f32 %v1391, %v1405
        %v1408 = vadd.f32 %v1392, %v1406
        %1409 = vrot.lane.b32.xlu0 %v1152, 33
        %v1410 = vpop.permute.xlu0 %1409
        %1411 = vrot.lane.b32.xlu0 %v1153, 33
        %v1412 = vpop.permute.xlu0 %1411
        %v1413 = vsel %vm570, %v1410, %v1412
        %v1414 = vsel %vm570, %v1412, %v1410
        %1415 = vset.pattern.permute.xlu0 9
        %1416 = vperm.xlu0 %1415, %v1154
        %v1417 = vpop.permute.xlu0 %1416
        %v1419 = vmul.f32 %v1414, %v1417
        %v1420 = vmul.f32 %v1413, %v1417
        %v1421 = vmul.f32 %v1419, %v585
        %v1422 = vmul.f32 %v1420, %v589
        %v1423 = vadd.f32 %v1407, %v1421
        %v1424 = vadd.f32 %v1408, %v1422
        %1425 = vrot.lane.b32.xlu0 %v1152, 32
        %v1426 = vpop.permute.xlu0 %1425
        %1427 = vrot.lane.b32.xlu0 %v1153, 32
        %v1428 = vpop.permute.xlu0 %1427
        %v1429 = vsel %vm600, %v1426, %v1428
        %v1430 = vsel %vm600, %v1428, %v1426
        %1431 = vset.pattern.permute.xlu0 10
        %1432 = vperm.xlu0 %1431, %v1154
        %v1433 = vpop.permute.xlu0 %1432
        %v1435 = vmul.f32 %v1430, %v1433
        %v1436 = vmul.f32 %v1429, %v1433
        %v1437 = vmul.f32 %v1435, %v615
        %v1438 = vmul.f32 %v1436, %v619
        %v1439 = vadd.f32 %v1423, %v1437
        %v1440 = vadd.f32 %v1424, %v1438
        %1441 = vrot.lane.b32.xlu0 %v1152, 31
        %v1442 = vpop.permute.xlu0 %1441
        %1443 = vrot.lane.b32.xlu0 %v1153, 31
        %v1444 = vpop.permute.xlu0 %1443
        %v1445 = vsel %vm630, %v1442, %v1444
        %v1446 = vsel %vm630, %v1444, %v1442
        %1447 = vset.pattern.permute.xlu0 11
        %1448 = vperm.xlu0 %1447, %v1154
        %v1449 = vpop.permute.xlu0 %1448
        %v1451 = vmul.f32 %v1446, %v1449
        %v1452 = vmul.f32 %v1445, %v1449
        %v1453 = vmul.f32 %v1451, %v645
        %v1454 = vmul.f32 %v1452, %v649
        %v1455 = vadd.f32 %v1439, %v1453
        %v1456 = vadd.f32 %v1440, %v1454
        %1457 = vrot.lane.b32.xlu0 %v1152, 30
        %v1458 = vpop.permute.xlu0 %1457
        %1459 = vrot.lane.b32.xlu0 %v1153, 30
        %v1460 = vpop.permute.xlu0 %1459
        %v1461 = vsel %vm660, %v1458, %v1460
        %v1462 = vsel %vm660, %v1460, %v1458
        %1463 = vset.pattern.permute.xlu0 12
        %1464 = vperm.xlu0 %1463, %v1154
        %v1465 = vpop.permute.xlu0 %1464
        %v1467 = vmul.f32 %v1462, %v1465
        %v1468 = vmul.f32 %v1461, %v1465
        %v1469 = vmul.f32 %v1467, %v675
        %v1470 = vmul.f32 %v1468, %v679
        %v1471 = vadd.f32 %v1455, %v1469
        %v1472 = vadd.f32 %v1456, %v1470
        %1473 = vrot.lane.b32.xlu0 %v1152, 29
        %v1474 = vpop.permute.xlu0 %1473
        %1475 = vrot.lane.b32.xlu0 %v1153, 29
        %v1476 = vpop.permute.xlu0 %1475
        %vm1477 = vcmp.lt.s32.totalorder %v290, 29
        %v1478 = vsel %vm1477, %v1474, %v1476
        %v1479 = vsel %vm1477, %v1476, %v1474
        %1480 = vset.pattern.permute.xlu0 13
        %1481 = vperm.xlu0 %1480, %v1154
        %v1482 = vpop.permute.xlu0 %1481
        %v1484 = vmul.f32 %v1479, %v1482
        %v1485 = vmul.f32 %v1478, %v1482
        %s1486 = scalar_lea.vmem [#allocation5], 21
        %v1487 = vld [vmem:[%s1486] ss:$8 sm:$0x3]
        %v1489 = vlaneseq
        %v1490 = vshrl.u32 %v1489, 7
        %v1491 = vsub.s32 0, %v1490
        %v1492 = vrot.slane %v1487, %v1491
        %v1493 = vlaneseq
        %v1494 = vshrl.u32 %v1493, 7
        %v1495 = vsub.s32 1, %v1494
        %v1496 = vrot.slane %v1487, %v1495
        %v1499 = vmul.f32 %v1484, %v1492
        %v1500 = vmul.f32 %v1485, %v1496
        %v1501 = vadd.f32 %v1471, %v1499
        %v1502 = vadd.f32 %v1472, %v1500
        %1503 = vrot.lane.b32.xlu0 %v1152, 19
        %v1504 = vpop.permute.xlu0 %1503
        %1505 = vrot.lane.b32.xlu0 %v1153, 19
        %v1506 = vpop.permute.xlu0 %1505
        %vm1507 = vcmp.lt.s32.totalorder %v290, 19
        %v1508 = vsel %vm1507, %v1504, %v1506
        %v1509 = vsel %vm1507, %v1506, %v1504
        %1510 = vset.pattern.permute.xlu0 14
        %1511 = vperm.xlu0 %1510, %v1154
        %v1512 = vpop.permute.xlu0 %1511
        %v1514 = vmul.f32 %v1509, %v1512
        %v1515 = vmul.f32 %v1508, %v1512
        %s1516 = scalar_lea.vmem [#allocation5], 22
        %v1517 = vld [vmem:[%s1516] ss:$8 sm:$0x3]
        %v1519 = vlaneseq
        %v1520 = vshrl.u32 %v1519, 7
        %v1521 = vsub.s32 0, %v1520
        %v1522 = vrot.slane %v1517, %v1521
        %v1523 = vlaneseq
        %v1524 = vshrl.u32 %v1523, 7
        %v1525 = vsub.s32 1, %v1524
        %v1526 = vrot.slane %v1517, %v1525
        %v1529 = vmul.f32 %v1514, %v1522
        %v1530 = vmul.f32 %v1515, %v1526
        %v1531 = vadd.f32 %v1501, %v1529
        %v1532 = vadd.f32 %v1502, %v1530
        %1533 = vrot.lane.b32.xlu0 %v1152, 18
        %v1534 = vpop.permute.xlu0 %1533
        %1535 = vrot.lane.b32.xlu0 %v1153, 18
        %v1536 = vpop.permute.xlu0 %1535
        %v1537 = vsel %vm690, %v1534, %v1536
        %v1538 = vsel %vm690, %v1536, %v1534
        %1539 = vset.pattern.permute.xlu0 15
        %1540 = vperm.xlu0 %1539, %v1154
        %v1541 = vpop.permute.xlu0 %1540
        %v1543 = vmul.f32 %v1538, %v1541
        %v1544 = vmul.f32 %v1537, %v1541
        %v1545 = vmul.f32 %v1543, %v705
        %v1546 = vmul.f32 %v1544, %v709
        %v1547 = vadd.f32 %v1531, %v1545
        %v1548 = vadd.f32 %v1532, %v1546
        %1549 = vrot.lane.b32.xlu0 %v1152, 17
        %v1550 = vpop.permute.xlu0 %1549
        %1551 = vrot.lane.b32.xlu0 %v1153, 17
        %v1552 = vpop.permute.xlu0 %1551
        %v1553 = vsel %vm291, %v1550, %v1552
        %v1554 = vsel %vm291, %v1552, %v1550
        %1555 = vset.pattern.permute.xlu0 16
        %1556 = vperm.xlu0 %1555, %v1154
        %v1557 = vpop.permute.xlu0 %1556
        %v1559 = vmul.f32 %v1554, %v1557
        %v1560 = vmul.f32 %v1553, %v1557
        %v1561 = vmul.f32 %v1559, %v307
        %v1562 = vmul.f32 %v1560, %v311
        %v1563 = vadd.f32 %v1547, %v1561
        %v1564 = vadd.f32 %v1548, %v1562
        %1565 = vrot.lane.b32.xlu0 %v1152, 16
        %v1566 = vpop.permute.xlu0 %1565
        %1567 = vrot.lane.b32.xlu0 %v1153, 16
        %v1568 = vpop.permute.xlu0 %1567
        %v1569 = vsel %vm320, %v1566, %v1568
        %v1570 = vsel %vm320, %v1568, %v1566
        %1571 = vset.pattern.permute.xlu0 17
        %1572 = vperm.xlu0 %1571, %v1154
        %v1573 = vpop.permute.xlu0 %1572
        %v1575 = vmul.f32 %v1570, %v1573
        %v1576 = vmul.f32 %v1569, %v1573
        %v1577 = vmul.f32 %v1575, %v335
        %v1578 = vmul.f32 %v1576, %v339
        %v1579 = vadd.f32 %v1563, %v1577
        %v1580 = vadd.f32 %v1564, %v1578
        %1581 = vrot.lane.b32.xlu0 %v1152, 15
        %v1582 = vpop.permute.xlu0 %1581
        %1583 = vrot.lane.b32.xlu0 %v1153, 15
        %v1584 = vpop.permute.xlu0 %1583
        %v1585 = vsel %vm350, %v1582, %v1584
        %v1586 = vsel %vm350, %v1584, %v1582
        %1587 = vset.pattern.permute.xlu0 18
        %1588 = vperm.xlu0 %1587, %v1154
        %v1589 = vpop.permute.xlu0 %1588
        %v1591 = vmul.f32 %v1586, %v1589
        %v1592 = vmul.f32 %v1585, %v1589
        %v1593 = vmul.f32 %v1591, %v365
        %v1594 = vmul.f32 %v1592, %v369
        %v1595 = vadd.f32 %v1579, %v1593
        %v1596 = vadd.f32 %v1580, %v1594
        %1597 = vrot.lane.b32.xlu0 %v1152, 14
        %v1598 = vpop.permute.xlu0 %1597
        %1599 = vrot.lane.b32.xlu0 %v1153, 14
        %v1600 = vpop.permute.xlu0 %1599
        %v1601 = vsel %vm768, %v1598, %v1600
        %v1602 = vsel %vm768, %v1600, %v1598
        %1603 = vset.pattern.permute.xlu0 19
        %1604 = vperm.xlu0 %1603, %v1154
        %v1605 = vpop.permute.xlu0 %1604
        %v1607 = vmul.f32 %v1602, %v1605
        %v1608 = vmul.f32 %v1601, %v1605
        %v1609 = vmul.f32 %v1607, %v783
        %v1610 = vmul.f32 %v1608, %v787
        %v1611 = vadd.f32 %v1595, %v1609
        %v1612 = vadd.f32 %v1596, %v1610
        %1613 = vrot.lane.b32.xlu0 %v1152, 13
        %v1614 = vpop.permute.xlu0 %1613
        %1615 = vrot.lane.b32.xlu0 %v1153, 13
        %v1616 = vpop.permute.xlu0 %1615
        %vm1617 = vcmp.lt.s32.totalorder %v290, 13
        %v1618 = vsel %vm1617, %v1614, %v1616
        %v1619 = vsel %vm1617, %v1616, %v1614
        %1620 = vset.pattern.permute.xlu0 20
        %1621 = vperm.xlu0 %1620, %v1154
        %v1622 = vpop.permute.xlu0 %1621
        %v1624 = vmul.f32 %v1619, %v1622
        %v1625 = vmul.f32 %v1618, %v1622
        %s1626 = scalar_lea.vmem [#allocation5], 36
        %v1627 = vld [vmem:[%s1626] ss:$8 sm:$0x3]
        %v1629 = vlaneseq
        %v1630 = vshrl.u32 %v1629, 7
        %v1631 = vsub.s32 0, %v1630
        %v1632 = vrot.slane %v1627, %v1631
        %v1633 = vlaneseq
        %v1634 = vshrl.u32 %v1633, 7
        %v1635 = vsub.s32 1, %v1634
        %v1636 = vrot.slane %v1627, %v1635
        %v1639 = vmul.f32 %v1624, %v1632
        %v1640 = vmul.f32 %v1625, %v1636
        %v1641 = vadd.f32 %v1611, %v1639
        %v1642 = vadd.f32 %v1612, %v1640
        %1643 = vrot.lane.b32.xlu0 %v1152, 3
        %v1644 = vpop.permute.xlu0 %1643
        %1645 = vrot.lane.b32.xlu0 %v1153, 3
        %v1646 = vpop.permute.xlu0 %1645
        %vm1647 = vcmp.lt.s32.totalorder %v290, 3
        %v1648 = vsel %vm1647, %v1644, %v1646
        %v1649 = vsel %vm1647, %v1646, %v1644
        %1650 = vset.pattern.permute.xlu0 21
        %1651 = vperm.xlu0 %1650, %v1154
        %v1652 = vpop.permute.xlu0 %1651
        %v1654 = vmul.f32 %v1649, %v1652
        %v1655 = vmul.f32 %v1648, %v1652
        %s1656 = scalar_lea.vmem [#allocation5], 37
        %v1657 = vld [vmem:[%s1656] ss:$8 sm:$0x3]
        %v1659 = vlaneseq
        %v1660 = vshrl.u32 %v1659, 7
        %v1661 = vsub.s32 0, %v1660
        %v1662 = vrot.slane %v1657, %v1661
        %v1663 = vlaneseq
        %v1664 = vshrl.u32 %v1663, 7
        %v1665 = vsub.s32 1, %v1664
        %v1666 = vrot.slane %v1657, %v1665
        %v1669 = vmul.f32 %v1654, %v1662
        %v1670 = vmul.f32 %v1655, %v1666
        %v1671 = vadd.f32 %v1641, %v1669
        %v1672 = vadd.f32 %v1642, %v1670
        %1673 = vrot.lane.b32.xlu0 %v1152, 2
        %v1674 = vpop.permute.xlu0 %1673
        %1675 = vrot.lane.b32.xlu0 %v1153, 2
        %v1676 = vpop.permute.xlu0 %1675
        %v1677 = vsel %vm798, %v1674, %v1676
        %v1678 = vsel %vm798, %v1676, %v1674
        %1679 = vset.pattern.permute.xlu0 22
        %1680 = vperm.xlu0 %1679, %v1154
        %v1681 = vpop.permute.xlu0 %1680
        %v1683 = vmul.f32 %v1678, %v1681
        %v1684 = vmul.f32 %v1677, %v1681
        %v1685 = vmul.f32 %v1683, %v813
        %v1686 = vmul.f32 %v1684, %v817
        %v1687 = vadd.f32 %v1671, %v1685
        %v1688 = vadd.f32 %v1672, %v1686
        %1689 = vrot.lane.b32.xlu0 %v1152, 1
        %v1690 = vpop.permute.xlu0 %1689
        %1691 = vrot.lane.b32.xlu0 %v1153, 1
        %v1692 = vpop.permute.xlu0 %1691
        %v1693 = vsel %vm380, %v1690, %v1692
        %v1694 = vsel %vm380, %v1692, %v1690
        %1695 = vset.pattern.permute.xlu0 23
        %1696 = vperm.xlu0 %1695, %v1154
        %v1697 = vpop.permute.xlu0 %1696
        %v1699 = vmul.f32 %v1694, %v1697
        %v1700 = vmul.f32 %v1693, %v1697
        %v1701 = vmul.f32 %v1699, %v395
        %v1702 = vmul.f32 %v1700, %v399
        %v1703 = vadd.f32 %v1687, %v1701
        %v1704 = vadd.f32 %v1688, %v1702
        %1705 = vset.pattern.permute.xlu0 24
        %1706 = vperm.xlu0 %1705, %v1154
        %v1707 = vpop.permute.xlu0 %1706
        %v1709 = vmul.f32 %v1152, %v1707
        %v1710 = vmul.f32 %v1153, %v1707
        %v1711 = vadd.f32 %v1703, %v1709
        %v1712 = vadd.f32 %v1704, %v1710
        %1713 = vrot.lane.b32.xlu0 %v1152, 127
        %v1714 = vpop.permute.xlu0 %1713
        %1715 = vrot.lane.b32.xlu0 %v1153, 127
        %v1716 = vpop.permute.xlu0 %1715
        %v1717 = vsel %vm418, %v1714, %v1716
        %v1718 = vsel %vm418, %v1716, %v1714
        %1719 = vset.pattern.permute.xlu0 25
        %1720 = vperm.xlu0 %1719, %v1154
        %v1721 = vpop.permute.xlu0 %1720
        %v1723 = vmul.f32 %v1717, %v1721
        %v1724 = vmul.f32 %v1718, %v1721
        %v1725 = vmul.f32 %v1723, %v433
        %v1726 = vmul.f32 %v1724, %v437
        %v1727 = vadd.f32 %v1711, %v1725
        %v1728 = vadd.f32 %v1712, %v1726
        %1729 = vrot.lane.b32.xlu0 %v1152, 126
        %v1730 = vpop.permute.xlu0 %1729
        %1731 = vrot.lane.b32.xlu0 %v1153, 126
        %v1732 = vpop.permute.xlu0 %1731
        %v1733 = vsel %vm868, %v1730, %v1732
        %v1734 = vsel %vm868, %v1732, %v1730
        %1735 = vset.pattern.permute.xlu0 26
        %1736 = vperm.xlu0 %1735, %v1154
        %v1737 = vpop.permute.xlu0 %1736
        %v1739 = vmul.f32 %v1733, %v1737
        %v1740 = vmul.f32 %v1734, %v1737
        %v1741 = vmul.f32 %v1739, %v883
        %v1742 = vmul.f32 %v1740, %v887
        %v1743 = vadd.f32 %v1727, %v1741
        %v1744 = vadd.f32 %v1728, %v1742
        %1745 = vrot.lane.b32.xlu0 %v1152, 125
        %v1746 = vpop.permute.xlu0 %1745
        %1747 = vrot.lane.b32.xlu0 %v1153, 125
        %v1748 = vpop.permute.xlu0 %1747
        %vm1749 = vcmp.lt.s32.totalorder %v290, 125
        %v1750 = vsel %vm1749, %v1746, %v1748
        %v1751 = vsel %vm1749, %v1748, %v1746
        %1752 = vset.pattern.permute.xlu0 27
        %1753 = vperm.xlu0 %1752, %v1154
        %v1754 = vpop.permute.xlu0 %1753
        %v1756 = vmul.f32 %v1750, %v1754
        %v1757 = vmul.f32 %v1751, %v1754
        %s1758 = scalar_lea.vmem [#allocation5], 51
        %v1759 = vld [vmem:[%s1758] ss:$8 sm:$0x3]
        %v1761 = vlaneseq
        %v1762 = vshrl.u32 %v1761, 7
        %v1763 = vsub.s32 0, %v1762
        %v1764 = vrot.slane %v1759, %v1763
        %v1765 = vlaneseq
        %v1766 = vshrl.u32 %v1765, 7
        %v1767 = vsub.s32 1, %v1766
        %v1768 = vrot.slane %v1759, %v1767
        %v1771 = vmul.f32 %v1756, %v1764
        %v1772 = vmul.f32 %v1757, %v1768
        %v1773 = vadd.f32 %v1743, %v1771
        %v1774 = vadd.f32 %v1744, %v1772
        %1775 = vrot.lane.b32.xlu0 %v1152, 115
        %v1776 = vpop.permute.xlu0 %1775
        %1777 = vrot.lane.b32.xlu0 %v1153, 115
        %v1778 = vpop.permute.xlu0 %1777
        %vm1779 = vcmp.lt.s32.totalorder %v290, 115
        %v1780 = vsel %vm1779, %v1776, %v1778
        %v1781 = vsel %vm1779, %v1778, %v1776
        %1782 = vset.pattern.permute.xlu0 28
        %1783 = vperm.xlu0 %1782, %v1154
        %v1784 = vpop.permute.xlu0 %1783
        %v1786 = vmul.f32 %v1780, %v1784
        %v1787 = vmul.f32 %v1781, %v1784
        %s1788 = scalar_lea.vmem [#allocation5], 52
        %v1789 = vld [vmem:[%s1788] ss:$8 sm:$0x3]
        %v1791 = vlaneseq
        %v1792 = vshrl.u32 %v1791, 7
        %v1793 = vsub.s32 0, %v1792
        %v1794 = vrot.slane %v1789, %v1793
        %v1795 = vlaneseq
        %v1796 = vshrl.u32 %v1795, 7
        %v1797 = vsub.s32 1, %v1796
        %v1798 = vrot.slane %v1789, %v1797
        %v1801 = vmul.f32 %v1786, %v1794
        %v1802 = vmul.f32 %v1787, %v1798
        %v1803 = vadd.f32 %v1773, %v1801
        %v1804 = vadd.f32 %v1774, %v1802
        %1805 = vrot.lane.b32.xlu0 %v1152, 114
        %v1806 = vpop.permute.xlu0 %1805
        %1807 = vrot.lane.b32.xlu0 %v1153, 114
        %v1808 = vpop.permute.xlu0 %1807
        %v1809 = vsel %vm898, %v1806, %v1808
        %v1810 = vsel %vm898, %v1808, %v1806
        %1811 = vset.pattern.permute.xlu0 29
        %1812 = vperm.xlu0 %1811, %v1154
        %v1813 = vpop.permute.xlu0 %1812
        %v1815 = vmul.f32 %v1809, %v1813
        %v1816 = vmul.f32 %v1810, %v1813
        %v1817 = vmul.f32 %v1815, %v913
        %v1818 = vmul.f32 %v1816, %v917
        %v1819 = vadd.f32 %v1803, %v1817
        %v1820 = vadd.f32 %v1804, %v1818
        %1821 = vrot.lane.b32.xlu0 %v1152, 113
        %v1822 = vpop.permute.xlu0 %1821
        %1823 = vrot.lane.b32.xlu0 %v1153, 113
        %v1824 = vpop.permute.xlu0 %1823
        %v1825 = vsel %vm448, %v1822, %v1824
        %v1826 = vsel %vm448, %v1824, %v1822
        %1827 = vset.pattern.permute.xlu0 30
        %1828 = vperm.xlu0 %1827, %v1154
        %v1829 = vpop.permute.xlu0 %1828
        %v1831 = vmul.f32 %v1825, %v1829
        %v1832 = vmul.f32 %v1826, %v1829
        %v1833 = vmul.f32 %v1831, %v463
        %v1834 = vmul.f32 %v1832, %v467
        %v1835 = vadd.f32 %v1819, %v1833
        %v1836 = vadd.f32 %v1820, %v1834
        %1837 = vrot.lane.b32.xlu0 %v1152, 112
        %v1838 = vpop.permute.xlu0 %1837
        %1839 = vrot.lane.b32.xlu0 %v1153, 112
        %v1840 = vpop.permute.xlu0 %1839
        %v1841 = vsel %vm478, %v1838, %v1840
        %v1842 = vsel %vm478, %v1840, %v1838
        %1843 = vset.pattern.permute.xlu0 31
        %1844 = vperm.xlu0 %1843, %v1154
        %v1845 = vpop.permute.xlu0 %1844
        %v1847 = vmul.f32 %v1841, %v1845
        %v1848 = vmul.f32 %v1842, %v1845
        %v1849 = vmul.f32 %v1847, %v493
        %v1850 = vmul.f32 %v1848, %v497
        %v1851 = vadd.f32 %v1835, %v1849
        %v1852 = vadd.f32 %v1836, %v1850
        %1853 = vrot.lane.b32.xlu0 %v1152, 111
        %v1854 = vpop.permute.xlu0 %1853
        %1855 = vrot.lane.b32.xlu0 %v1153, 111
        %v1856 = vpop.permute.xlu0 %1855
        %v1857 = vsel %vm508, %v1854, %v1856
        %v1858 = vsel %vm508, %v1856, %v1854
        %1859 = vset.pattern.permute.xlu0 32
        %1860 = vperm.xlu0 %1859, %v1154
        %v1861 = vpop.permute.xlu0 %1860
        %v1863 = vmul.f32 %v1857, %v1861
        %v1864 = vmul.f32 %v1858, %v1861
        %v1865 = vmul.f32 %v1863, %v523
        %v1866 = vmul.f32 %v1864, %v527
        %v1867 = vadd.f32 %v1851, %v1865
        %v1868 = vadd.f32 %v1852, %v1866
        %1869 = vrot.lane.b32.xlu0 %v1152, 110
        %v1870 = vpop.permute.xlu0 %1869
        %1871 = vrot.lane.b32.xlu0 %v1153, 110
        %v1872 = vpop.permute.xlu0 %1871
        %v1873 = vsel %vm976, %v1870, %v1872
        %v1874 = vsel %vm976, %v1872, %v1870
        %1875 = vset.pattern.permute.xlu0 33
        %1876 = vperm.xlu0 %1875, %v1154
        %v1877 = vpop.permute.xlu0 %1876
        %v1879 = vmul.f32 %v1873, %v1877
        %v1880 = vmul.f32 %v1874, %v1877
        %v1881 = vmul.f32 %v1879, %v991
        %v1882 = vmul.f32 %v1880, %v995
        %v1883 = vadd.f32 %v1867, %v1881
        %v1884 = vadd.f32 %v1868, %v1882
        %1885 = vrot.lane.b32.xlu0 %v1152, 109
        %v1886 = vpop.permute.xlu0 %1885
        %1887 = vrot.lane.b32.xlu0 %v1153, 109
        %v1888 = vpop.permute.xlu0 %1887
        %vm1889 = vcmp.lt.s32.totalorder %v290, 109
        %v1890 = vsel %vm1889, %v1886, %v1888
        %v1891 = vsel %vm1889, %v1888, %v1886
        %1892 = vset.pattern.permute.xlu0 34
        %1893 = vperm.xlu0 %1892, %v1154
        %v1894 = vpop.permute.xlu0 %1893
        %v1896 = vmul.f32 %v1890, %v1894
        %v1897 = vmul.f32 %v1891, %v1894
        %s1898 = scalar_lea.vmem [#allocation5], 66
        %v1899 = vld [vmem:[%s1898] ss:$8 sm:$0x3]
        %v1901 = vlaneseq
        %v1902 = vshrl.u32 %v1901, 7
        %v1903 = vsub.s32 0, %v1902
        %v1904 = vrot.slane %v1899, %v1903
        %v1905 = vlaneseq
        %v1906 = vshrl.u32 %v1905, 7
        %v1907 = vsub.s32 1, %v1906
        %v1908 = vrot.slane %v1899, %v1907
        %v1911 = vmul.f32 %v1896, %v1904
        %v1912 = vmul.f32 %v1897, %v1908
        %v1913 = vadd.f32 %v1883, %v1911
        %v1914 = vadd.f32 %v1884, %v1912
        %1915 = vrot.lane.b32.xlu0 %v1152, 99
        %v1916 = vpop.permute.xlu0 %1915
        %1917 = vrot.lane.b32.xlu0 %v1153, 99
        %v1918 = vpop.permute.xlu0 %1917
        %vm1919 = vcmp.lt.s32.totalorder %v290, 99
        %v1920 = vsel %vm1919, %v1916, %v1918
        %v1921 = vsel %vm1919, %v1918, %v1916
        %1922 = vset.pattern.permute.xlu0 35
        %1923 = vperm.xlu0 %1922, %v1154
        %v1924 = vpop.permute.xlu0 %1923
        %v1926 = vmul.f32 %v1920, %v1924
        %v1927 = vmul.f32 %v1921, %v1924
        %s1928 = scalar_lea.vmem [#allocation5], 67
        %v1929 = vld [vmem:[%s1928] ss:$8 sm:$0x3]
        %v1931 = vlaneseq
        %v1932 = vshrl.u32 %v1931, 7
        %v1933 = vsub.s32 0, %v1932
        %v1934 = vrot.slane %v1929, %v1933
        %v1935 = vlaneseq
        %v1936 = vshrl.u32 %v1935, 7
        %v1937 = vsub.s32 1, %v1936
        %v1938 = vrot.slane %v1929, %v1937
        %v1941 = vmul.f32 %v1926, %v1934
        %v1942 = vmul.f32 %v1927, %v1938
        %v1943 = vadd.f32 %v1913, %v1941
        %v1944 = vadd.f32 %v1914, %v1942
        %1945 = vrot.lane.b32.xlu0 %v1152, 98
        %v1946 = vpop.permute.xlu0 %1945
        %1947 = vrot.lane.b32.xlu0 %v1153, 98
        %v1948 = vpop.permute.xlu0 %1947
        %v1949 = vsel %vm1006, %v1946, %v1948
        %v1950 = vsel %vm1006, %v1948, %v1946
        %1951 = vset.pattern.permute.xlu0 36
        %1952 = vperm.xlu0 %1951, %v1154
        %v1953 = vpop.permute.xlu0 %1952
        %v1955 = vmul.f32 %v1949, %v1953
        %v1956 = vmul.f32 %v1950, %v1953
        %v1957 = vmul.f32 %v1955, %v1021
        %v1958 = vmul.f32 %v1956, %v1025
        %v1959 = vadd.f32 %v1943, %v1957
        %v1960 = vadd.f32 %v1944, %v1958
        %1961 = vrot.lane.b32.xlu0 %v1152, 97
        %v1962 = vpop.permute.xlu0 %1961
        %1963 = vrot.lane.b32.xlu0 %v1153, 97
        %v1964 = vpop.permute.xlu0 %1963
        %v1965 = vsel %vm1036, %v1962, %v1964
        %v1966 = vsel %vm1036, %v1964, %v1962
        %1967 = vset.pattern.permute.xlu0 37
        %1968 = vperm.xlu0 %1967, %v1154
        %v1969 = vpop.permute.xlu0 %1968
        %v1971 = vmul.f32 %v1965, %v1969
        %v1972 = vmul.f32 %v1966, %v1969
        %v1973 = vmul.f32 %v1971, %v1051
        %v1974 = vmul.f32 %v1972, %v1055
        %v1975 = vadd.f32 %v1959, %v1973
        %v1976 = vadd.f32 %v1960, %v1974
        %1977 = vrot.lane.b32.xlu0 %v1152, 96
        %v1978 = vpop.permute.xlu0 %1977
        %1979 = vrot.lane.b32.xlu0 %v1153, 96
        %v1980 = vpop.permute.xlu0 %1979
        %v1981 = vsel %vm1066, %v1978, %v1980
        %v1982 = vsel %vm1066, %v1980, %v1978
        %1983 = vset.pattern.permute.xlu0 38
        %1984 = vperm.xlu0 %1983, %v1154
        %v1985 = vpop.permute.xlu0 %1984
        %v1987 = vmul.f32 %v1981, %v1985
        %v1988 = vmul.f32 %v1982, %v1985
        %v1989 = vmul.f32 %v1987, %v1081
        %v1990 = vmul.f32 %v1988, %v1085
        %v1991 = vadd.f32 %v1975, %v1989
        %v1992 = vadd.f32 %v1976, %v1990
        %1993 = vrot.lane.b32.xlu0 %v1152, 95
        %v1994 = vpop.permute.xlu0 %1993
        %1995 = vrot.lane.b32.xlu0 %v1153, 95
        %v1996 = vpop.permute.xlu0 %1995
        %v1997 = vsel %vm1096, %v1994, %v1996
        %v1998 = vsel %vm1096, %v1996, %v1994
        %1999 = vset.pattern.permute.xlu0 39
        %2000 = vperm.xlu0 %1999, %v1154
        %v2001 = vpop.permute.xlu0 %2000
        %v2003 = vmul.f32 %v1997, %v2001
        %v2004 = vmul.f32 %v1998, %v2001
        %v2005 = vmul.f32 %v2003, %v1111
        %v2006 = vmul.f32 %v2004, %v1115
        %v2007 = vadd.f32 %v1991, %v2005
        %v2008 = vadd.f32 %v1992, %v2006
        %2009 = vrot.lane.b32.xlu0 %v1152, 94
        %v2010 = vpop.permute.xlu0 %2009
        %2011 = vrot.lane.b32.xlu0 %v1153, 94
        %v2012 = vpop.permute.xlu0 %2011
        %v2013 = vsel %vm1126, %v2010, %v2012
        %v2014 = vsel %vm1126, %v2012, %v2010
        %2015 = vset.pattern.permute.xlu0 40
        %2016 = vperm.xlu0 %2015, %v1154
        %v2017 = vpop.permute.xlu0 %2016
        %v2019 = vmul.f32 %v2013, %v2017
        %v2020 = vmul.f32 %v2014, %v2017
        %v2021 = vmul.f32 %v2019, %v1141
        %v2022 = vmul.f32 %v2020, %v1145
        %v2023 = vadd.f32 %v2007, %v2021
        %v2024 = vadd.f32 %v2008, %v2022
        %2025 = vrot.lane.b32.xlu0 %v1152, 93
        %v2026 = vpop.permute.xlu0 %2025
        %2027 = vrot.lane.b32.xlu0 %v1153, 93
        %v2028 = vpop.permute.xlu0 %2027
        %vm2029 = vcmp.lt.s32.totalorder %v290, 93
        %v2030 = vsel %vm2029, %v2026, %v2028
        %v2031 = vsel %vm2029, %v2028, %v2026
        %2032 = vset.pattern.permute.xlu0 41
        %2033 = vperm.xlu0 %2032, %v1154
        %v2034 = vpop.permute.xlu0 %2033
        %v2036 = vmul.f32 %v2030, %v2034
        %v2037 = vmul.f32 %v2031, %v2034
        %s2038 = scalar_lea.vmem [#allocation5], 81
        %v2039 = vld [vmem:[%s2038] ss:$8 sm:$0x3]
        %v2041 = vlaneseq
        %v2042 = vshrl.u32 %v2041, 7
        %v2043 = vsub.s32 0, %v2042
        %v2044 = vrot.slane %v2039, %v2043
        %v2045 = vlaneseq
        %v2046 = vshrl.u32 %v2045, 7
        %v2047 = vsub.s32 1, %v2046
        %v2048 = vrot.slane %v2039, %v2047
        %v2051 = vmul.f32 %v2036, %v2044
        %v2052 = vmul.f32 %v2037, %v2048
        %v2053 = vadd.f32 %v2023, %v2051
        %v2054 = vadd.f32 %v2024, %v2052
        %2055 = vrot.lane.b32.xlu0 %v1152, 83
        %v2056 = vpop.permute.xlu0 %2055
        %2057 = vrot.lane.b32.xlu0 %v1153, 83
        %v2058 = vpop.permute.xlu0 %2057
        %vm2059 = vcmp.lt.s32.totalorder %v290, 83
        %v2060 = vsel %vm2059, %v2056, %v2058
        %v2061 = vsel %vm2059, %v2058, %v2056
        %2062 = vset.pattern.permute.xlu0 42
        %2063 = vperm.xlu0 %2062, %v1154
        %v2064 = vpop.permute.xlu0 %2063
        %v2066 = vmul.f32 %v2060, %v2064
        %v2067 = vmul.f32 %v2061, %v2064
        %s2068 = scalar_lea.vmem [#allocation5], 82
        %v2069 = vld [vmem:[%s2068] ss:$8 sm:$0x3]
        %v2071 = vlaneseq
        %v2072 = vshrl.u32 %v2071, 7
        %v2073 = vsub.s32 0, %v2072
        %v2074 = vrot.slane %v2069, %v2073
        %v2075 = vlaneseq
        %v2076 = vshrl.u32 %v2075, 7
        %v2077 = vsub.s32 1, %v2076
        %v2078 = vrot.slane %v2069, %v2077
        %v2081 = vmul.f32 %v2066, %v2074
        %v2082 = vmul.f32 %v2067, %v2078
        %v2083 = vadd.f32 %v2053, %v2081
        %v2084 = vadd.f32 %v2054, %v2082
        %2085 = vrot.lane.b32.xlu0 %v1152, 82
        %v2086 = vpop.permute.xlu0 %2085
        %2087 = vrot.lane.b32.xlu0 %v1153, 82
        %v2088 = vpop.permute.xlu0 %2087
        %vm2089 = vcmp.lt.s32.totalorder %v290, 82
        %v2090 = vsel %vm2089, %v2086, %v2088
        %v2091 = vsel %vm2089, %v2088, %v2086
        %2092 = vset.pattern.permute.xlu0 43
        %2093 = vperm.xlu0 %2092, %v1154
        %v2094 = vpop.permute.xlu0 %2093
        %v2096 = vmul.f32 %v2090, %v2094
        %v2097 = vmul.f32 %v2091, %v2094
        %s2098 = scalar_lea.vmem [#allocation5], 83
        %v2099 = vld [vmem:[%s2098] ss:$8 sm:$0x3]
        %v2101 = vlaneseq
        %v2102 = vshrl.u32 %v2101, 7
        %v2103 = vsub.s32 0, %v2102
        %v2104 = vrot.slane %v2099, %v2103
        %v2105 = vlaneseq
        %v2106 = vshrl.u32 %v2105, 7
        %v2107 = vsub.s32 1, %v2106
        %v2108 = vrot.slane %v2099, %v2107
        %v2111 = vmul.f32 %v2096, %v2104
        %v2112 = vmul.f32 %v2097, %v2108
        %v2113 = vadd.f32 %v2083, %v2111
        %v2114 = vadd.f32 %v2084, %v2112
        %2115 = vrot.lane.b32.xlu0 %v1152, 81
        %v2116 = vpop.permute.xlu0 %2115
        %2117 = vrot.lane.b32.xlu0 %v1153, 81
        %v2118 = vpop.permute.xlu0 %2117
        %vm2119 = vcmp.lt.s32.totalorder %v290, 81
        %v2120 = vsel %vm2119, %v2116, %v2118
        %v2121 = vsel %vm2119, %v2118, %v2116
        %2122 = vset.pattern.permute.xlu0 44
        %2123 = vperm.xlu0 %2122, %v1154
        %v2124 = vpop.permute.xlu0 %2123
        %v2126 = vmul.f32 %v2120, %v2124
        %v2127 = vmul.f32 %v2121, %v2124
        %s2128 = scalar_lea.vmem [#allocation5], 84
        %v2129 = vld [vmem:[%s2128] ss:$8 sm:$0x3]
        %v2131 = vlaneseq
        %v2132 = vshrl.u32 %v2131, 7
        %v2133 = vsub.s32 0, %v2132
        %v2134 = vrot.slane %v2129, %v2133
        %v2135 = vlaneseq
        %v2136 = vshrl.u32 %v2135, 7
        %v2137 = vsub.s32 1, %v2136
        %v2138 = vrot.slane %v2129, %v2137
        %v2141 = vmul.f32 %v2126, %v2134
        %v2142 = vmul.f32 %v2127, %v2138
        %v2143 = vadd.f32 %v2113, %v2141
        %v2144 = vadd.f32 %v2114, %v2142
        %2145 = vrot.lane.b32.xlu0 %v1152, 80
        %v2146 = vpop.permute.xlu0 %2145
        %2147 = vrot.lane.b32.xlu0 %v1153, 80
        %v2148 = vpop.permute.xlu0 %2147
        %vm2149 = vcmp.lt.s32.totalorder %v290, 80
        %v2150 = vsel %vm2149, %v2146, %v2148
        %v2151 = vsel %vm2149, %v2148, %v2146
        %2152 = vset.pattern.permute.xlu0 45
        %2153 = vperm.xlu0 %2152, %v1154
        %v2154 = vpop.permute.xlu0 %2153
        %v2156 = vmul.f32 %v2150, %v2154
        %v2157 = vmul.f32 %v2151, %v2154
        %s2158 = scalar_lea.vmem [#allocation5], 85
        %v2159 = vld [vmem:[%s2158] ss:$8 sm:$0x3]
        %v2161 = vlaneseq
        %v2162 = vshrl.u32 %v2161, 7
        %v2163 = vsub.s32 0, %v2162
        %v2164 = vrot.slane %v2159, %v2163
        %v2165 = vlaneseq
        %v2166 = vshrl.u32 %v2165, 7
        %v2167 = vsub.s32 1, %v2166
        %v2168 = vrot.slane %v2159, %v2167
        %v2171 = vmul.f32 %v2156, %v2164
        %v2172 = vmul.f32 %v2157, %v2168
        %v2173 = vadd.f32 %v2143, %v2171
        %v2174 = vadd.f32 %v2144, %v2172
        %2175 = vrot.lane.b32.xlu0 %v1152, 79
        %v2176 = vpop.permute.xlu0 %2175
        %2177 = vrot.lane.b32.xlu0 %v1153, 79
        %v2178 = vpop.permute.xlu0 %2177
        %vm2179 = vcmp.lt.s32.totalorder %v290, 79
        %v2180 = vsel %vm2179, %v2176, %v2178
        %v2181 = vsel %vm2179, %v2178, %v2176
        %2182 = vset.pattern.permute.xlu0 46
        %2183 = vperm.xlu0 %2182, %v1154
        %v2184 = vpop.permute.xlu0 %2183
        %v2186 = vmul.f32 %v2180, %v2184
        %v2187 = vmul.f32 %v2181, %v2184
        %s2188 = scalar_lea.vmem [#allocation5], 86
        %v2189 = vld [vmem:[%s2188] ss:$8 sm:$0x3]
        %v2191 = vlaneseq
        %v2192 = vshrl.u32 %v2191, 7
        %v2193 = vsub.s32 0, %v2192
        %v2194 = vrot.slane %v2189, %v2193
        %v2195 = vlaneseq
        %v2196 = vshrl.u32 %v2195, 7
        %v2197 = vsub.s32 1, %v2196
        %v2198 = vrot.slane %v2189, %v2197
        %v2201 = vmul.f32 %v2186, %v2194
        %v2202 = vmul.f32 %v2187, %v2198
        %v2203 = vadd.f32 %v2173, %v2201
        %v2204 = vadd.f32 %v2174, %v2202
        %2205 = vrot.lane.b32.xlu0 %v1152, 78
        %v2206 = vpop.permute.xlu0 %2205
        %2207 = vrot.lane.b32.xlu0 %v1153, 78
        %v2208 = vpop.permute.xlu0 %2207
        %vm2209 = vcmp.lt.s32.totalorder %v290, 78
        %v2210 = vsel %vm2209, %v2206, %v2208
        %v2211 = vsel %vm2209, %v2208, %v2206
        %2212 = vset.pattern.permute.xlu0 47
        %2213 = vperm.xlu0 %2212, %v1154
        %v2214 = vpop.permute.xlu0 %2213
        %v2216 = vmul.f32 %v2210, %v2214
        %v2217 = vmul.f32 %v2211, %v2214
        %s2218 = scalar_lea.vmem [#allocation5], 87
        %v2219 = vld [vmem:[%s2218] ss:$8 sm:$0x3]
        %v2221 = vlaneseq
        %v2222 = vshrl.u32 %v2221, 7
        %v2223 = vsub.s32 0, %v2222
        %v2224 = vrot.slane %v2219, %v2223
        %v2225 = vlaneseq
        %v2226 = vshrl.u32 %v2225, 7
        %v2227 = vsub.s32 1, %v2226
        %v2228 = vrot.slane %v2219, %v2227
        %v2231 = vmul.f32 %v2216, %v2224
        %v2232 = vmul.f32 %v2217, %v2228
        %v2233 = vadd.f32 %v2203, %v2231
        %v2234 = vadd.f32 %v2204, %v2232
        %2235 = vrot.lane.b32.xlu0 %v1152, 77
        %v2236 = vpop.permute.xlu0 %2235
        %2237 = vrot.lane.b32.xlu0 %v1153, 77
        %v2238 = vpop.permute.xlu0 %2237
        %vm2239 = vcmp.lt.s32.totalorder %v290, 77
        %v2240 = vsel %vm2239, %v2236, %v2238
        %v2241 = vsel %vm2239, %v2238, %v2236
        %2242 = vset.pattern.permute.xlu0 48
        %2243 = vperm.xlu0 %2242, %v1154
        %v2244 = vpop.permute.xlu0 %2243
        %v2246 = vmul.f32 %v2240, %v2244
        %v2247 = vmul.f32 %v2241, %v2244
        %s2248 = scalar_lea.vmem [#allocation5], 96
        %v2249 = vld [vmem:[%s2248] ss:$8 sm:$0x3]
        %v2251 = vlaneseq
        %v2252 = vshrl.u32 %v2251, 7
        %v2253 = vsub.s32 0, %v2252
        %v2254 = vrot.slane %v2249, %v2253
        %v2255 = vlaneseq
        %v2256 = vshrl.u32 %v2255, 7
        %v2257 = vsub.s32 1, %v2256
        %v2258 = vrot.slane %v2249, %v2257
        %v2261 = vmul.f32 %v2246, %v2254
        %v2262 = vmul.f32 %v2247, %v2258
        %v2263 = vadd.f32 %v2233, %v2261
        %v2264 = vadd.f32 %v2234, %v2262
        %v2265 = vld [vmem:[#allocation7] sm:$0xff]
        %v2266 = vld [vmem:[#allocation7 + $0x8] sm:$0xff]
        %v2267 = vld [vmem:[#allocation7 + $0x10] sm:$0xff]
        %v2268 = vld [vmem:[#allocation7 + $0x18] sm:$0xff]
        %v2269 = vld [vmem:[%s4] sm:$0xff]
        %v2270 = vld [vmem:[%s4 + $0x8] sm:$0xff]
        %v2271 = vld [vmem:[%s4 + $0x10] sm:$0xff]
        %v2272 = vld [vmem:[%s4 + $0x18] sm:$0xff]
        %2274 = vset.pattern.permute.xlu0 0
        %2275 = vperm.xlu0 %2274, %v2269
        %v2276 = vpop.permute.xlu0 %2275
        %2279 = vset.pattern.permute.xlu0 0
        %2280 = vperm.xlu0 %2279, %v2270
        %v2281 = vpop.permute.xlu0 %2280
        %2284 = vset.pattern.permute.xlu0 0
        %2285 = vperm.xlu0 %2284, %v2271
        %v2286 = vpop.permute.xlu0 %2285
        %2289 = vset.pattern.permute.xlu0 0
        %2290 = vperm.xlu0 %2289, %v2272
        %v2291 = vpop.permute.xlu0 %2290
        %vm2293 = vcmask 261120
        %v2295 = vsel %vm2293, %v2265, 0
        %v2298 = vsel %vm2293, %v2266, 0
        %v2301 = vsel %vm2293, %v2267, 0
        %v2304 = vsel %vm2293, %v2268, 0
        %2306 = vmatprep.subr.mxu0 %v281
        %2307 = vmatpush1.msra.mxu0 %v280
        %2308 = vmatprep.subr.mxu0 %v533
        %2309 = vmatpush1.msra.mxu0 %v532
        %2310 = vmatprep.subr.mxu0 %v1151
        %2311 = vmatpush1.msra.mxu0 %v1150
        %2312 = vmatprep.subr.mxu0 %v2264
        %2313 = vmatpush1.msra.mxu0 %v2263
        %2314 = vmatprep.subr.mxu0 0.0
        %2315 = vmatpush1.msra.mxu0 0.0
        %2316 = vmatprep.subr.mxu0 0.0
        %2317 = vmatpush1.msra.mxu0 0.0
        %2318 = vmatprep.subr.mxu0 0.0
        %2319 = vmatpush1.msra.mxu0 0.0
        %2320 = vmatprep.subr.mxu0 0.0
        %2321 = vmatpush1.msra.mxu0 0.0
        %2322 = vmatprep.subr.mxu0 0.0
        %2323 = vmatpush1.msra.mxu0 0.0
        %2324 = vmatprep.subr.mxu0 0.0
        %2325 = vmatpush1.msra.mxu0 0.0
        %2326 = vmatprep.subr.mxu0 0.0
        %2327 = vmatpush1.msra.mxu0 0.0
        %2328 = vmatprep.subr.mxu0 0.0
        %2329 = vmatpush1.msra.mxu0 0.0
        %2330 = vmatprep.subr.mxu0 0.0
        %2331 = vmatpush1.msra.mxu0 0.0
        %2332 = vmatprep.subr.mxu0 0.0
        %2333 = vmatpush1.msra.mxu0 0.0
        %2334 = vmatprep.subr.mxu0 0.0
        %2335 = vmatpush1.msra.mxu0 0.0
        %2336 = vmatprep.subr.mxu0 0.0
        %2337 = vmatpush1.msra.mxu0 0.0
        %2338 = vmatprep.subr.mxu0 0.0
        %2339 = vmatpush1.msra.mxu0 0.0
        %2340 = vmatprep.subr.mxu0 0.0
        %2341 = vmatpush1.msra.mxu0 0.0
        %2342 = vmatprep.subr.mxu0 0.0
        %2343 = vmatpush1.msra.mxu0 0.0
        %2344 = vmatprep.subr.mxu0 0.0
        %2345 = vmatpush1.msra.mxu0 0.0
        %2346 = vmatprep.subr.mxu0 0.0
        %2347 = vmatpush1.msra.mxu0 0.0
        %2348 = vmatprep.subr.mxu0 0.0
        %2349 = vmatpush1.msra.mxu0 0.0
        %2350 = vmatprep.subr.mxu0 0.0
        %2351 = vmatpush1.msra.mxu0 0.0
        %2352 = vmatprep.subr.mxu0 0.0
        %2353 = vmatpush1.msra.mxu0 0.0
        %2354 = vmatprep.subr.mxu0 0.0
        %2355 = vmatpush1.msra.mxu0 0.0
        %2356 = vmatprep.subr.mxu0 0.0
        %2357 = vmatpush1.msra.mxu0 0.0
        %2358 = vmatprep.subr.mxu0 0.0
        %2359 = vmatpush1.msra.mxu0 0.0
        %2360 = vmatprep.subr.mxu0 0.0
        %2361 = vmatpush1.msra.mxu0 0.0
        %2362 = vmatprep.subr.mxu0 0.0
        %2363 = vmatpush1.msra.mxu0 0.0
        %2364 = vmatprep.subr.mxu0 0.0
        %2365 = vmatpush1.msra.mxu0 0.0
        %2366 = vmatprep.subr.mxu0 0.0
        %2367 = vmatpush1.msra.mxu0 0.0
        %2368 = vmatprep.subr.mxu0 0.0
        %2369 = vmatpush1.msra.mxu0 0.0
        %2370 = vmatprep.mubr.f32.mxu0 0.0
        %2371 = vmatmul.mubr.f32.gmra.mrb[0].mxu0 %v2295
        %v2372 = vpop.f32.mrb[0].mxu0
        %v2373 = vadd.f32 %v2276, %v2372
        %v2374 = vpop.f32.mrb[0].mxu0
        %v2375 = vadd.f32 %v2276, %v2374
        %2376 = vmatprep.mubr.f32.mxu0 0.0
        %2377 = vmatmul.mubr.f32.gmra.mrb[0].mxu0 %v2298
        %v2378 = vpop.f32.mrb[0].mxu0
        %v2379 = vadd.f32 %v2281, %v2378
        %v2380 = vpop.f32.mrb[0].mxu0
        %v2381 = vadd.f32 %v2281, %v2380
        %2382 = vmatprep.mubr.f32.mxu0 0.0
        %2383 = vmatmul.mubr.f32.gmra.mrb[0].mxu0 %v2301
        %v2384 = vpop.f32.mrb[0].mxu0
        %v2385 = vadd.f32 %v2286, %v2384
        %v2386 = vpop.f32.mrb[0].mxu0
        %v2387 = vadd.f32 %v2286, %v2386
        %2388 = vmatprep.mubr.f32.mxu0 0.0
        %2389 = vmatmul.mubr.f32.gmra.mrb[0].mxu0 %v2304
        %v2390 = vpop.f32.mrb[0].mxu0
        %v2391 = vadd.f32 %v2291, %v2390
        %v2392 = vpop.f32.mrb[0].mxu0
        %v2393 = vadd.f32 %v2291, %v2392
        %2394 = vdwg.mxu0
        %v2395 = vadd.f32 %v2373, 3.0
        %v2396 = vadd.f32 %v2375, 3.0
        %v2397 = vadd.f32 %v2379, 3.0
        %v2398 = vadd.f32 %v2381, 3.0
        %v2399 = vadd.f32 %v2385, 3.0
        %v2400 = vadd.f32 %v2387, 3.0
        %v2401 = vadd.f32 %v2391, 3.0
        %v2402 = vadd.f32 %v2393, 3.0
        %v2403 = vmax.f32 %v2395, 0.0
        %v2404 = vmax.f32 %v2396, 0.0
        %v2405 = vmax.f32 %v2397, 0.0
        %v2406 = vmax.f32 %v2398, 0.0
        %v2407 = vmax.f32 %v2399, 0.0
        %v2408 = vmax.f32 %v2400, 0.0
        %v2409 = vmax.f32 %v2401, 0.0
        %v2410 = vmax.f32 %v2402, 0.0
        %v2411 = vmin.f32 %v2403, 6.0
        %v2412 = vmin.f32 %v2404, 6.0
        %v2413 = vmin.f32 %v2405, 6.0
        %v2414 = vmin.f32 %v2406, 6.0
        %v2415 = vmin.f32 %v2407, 6.0
        %v2416 = vmin.f32 %v2408, 6.0
        %v2417 = vmin.f32 %v2409, 6.0
        %v2418 = vmin.f32 %v2410, 6.0
        %v2419 = vmul.f32 %v2373, %v2411
        %v2420 = vmul.f32 %v2375, %v2412
        %v2421 = vmul.f32 %v2379, %v2413
        %v2422 = vmul.f32 %v2381, %v2414
        %v2423 = vmul.f32 %v2385, %v2415
        %v2424 = vmul.f32 %v2387, %v2416
        %v2425 = vmul.f32 %v2391, %v2417
        %v2426 = vmul.f32 %v2393, %v2418
        %v2427 = vmul.f32 %v2419, 0.16666667
        %v2428 = vmul.f32 %v2420, 0.16666667
        %v2429 = vmul.f32 %v2421, 0.16666667
        %v2430 = vmul.f32 %v2422, 0.16666667
        %v2431 = vmul.f32 %v2423, 0.16666667
        %v2432 = vmul.f32 %v2424, 0.16666667
        %v2433 = vmul.f32 %v2425, 0.16666667
        %v2434 = vmul.f32 %v2426, 0.16666667
        %2435 = vst [vmem:[%s271] sm:$0xff] %v2427
        %2436 = vst [vmem:[%s271 + $0x8] sm:$0xff] %v2428
        %2437 = vst [vmem:[%s271 + $0x10] sm:$0xff] %v2429
        %2438 = vst [vmem:[%s271 + $0x18] sm:$0xff] %v2430
        %2439 = vst [vmem:[%s271 + $0x20] sm:$0xff] %v2431
        %2440 = vst [vmem:[%s271 + $0x28] sm:$0xff] %v2432
        %2441 = vst [vmem:[%s271 + $0x30] sm:$0xff] %v2433
        %2442 = vst [vmem:[%s271 + $0x38] sm:$0xff] %v2434
        %s2443 = sand.u32 %s141, 1
        %s2444 = scalar_lea.sflag [#allocation4], %s2443
        %s2445 = sand.u32 %s141, 1
        %s2446 = smul.addr %s2445, 64
        %s2447 = scalar_lea.vmem [#allocation8], %s2446
        // Predicated region
        $region53: #{tpu_custom_call.1} parent=39 // pred_check
          %p2448 = pneg %p151
        $region54: #{tpu_custom_call.1} parent=39 // pred_check_branch
          %2450 = sbr.rel (%p2448) target = $region56
        $region55: #{tpu_custom_call.1} parent=39 // pred_region
          %s2452 = ssub.s32 1024, 1024
          %2453 = vsyncadd %s2444, %s2452
          %s2454 = smul.addr %s23, 8
          %s2455 = smul.addr %s2454, 128
          %s2456 = scalar_lea.hbm %s5, %s2455
          %s2457 = sshll.u32 %s2447, 4
          %s2458 = int_to_ptr.vmem [resolvable:$true] %s2457
          %2463 = dma.vmem_to_hbm [thread:$0]  %s2458, 1024, %s2456, %s2444, 256, 256, 16
        $region56: #{tpu_custom_call.1} parent=39 // pred_fallthru
          _
      $region40: #{tpu_custom_call.1} parent=5 // pred_fallthru
        _
      %p2464 = scmp.le.s32.totalorder 2, %s18
      // Predicated region
      $region57: #{tpu_custom_call.1} parent=5 // pred_check
        %p2465 = pneg %p2464
      $region58: #{tpu_custom_call.1} parent=5 // pred_check_branch
        %2467 = sbr.rel (%p2465) target = $region60
      $region59: #{tpu_custom_call.1} parent=5 // pred_region
        %s2468 = ssub.s32 %s18, 2
        // Predicated region
        $region61: #{tpu_custom_call.1} parent=59 // pred_check
          %p2469 = pneg %p157
        $region62: #{tpu_custom_call.1} parent=59 // pred_check_branch
          %2471 = sbr.rel (%p2469) target = $region64
        $region63: #{tpu_custom_call.1} parent=59 // pred_region
          %s2472 = sand.u32 %s142, 1
          %s2473 = scalar_lea.sflag [#allocation4], %s2472
          %s2474 = sand.u32 %s142, 1
          %s2475 = smul.addr %s2474, 64
          %s2476 = scalar_lea.vmem [#allocation8], %s2475
          %2477 = dma.done %s2473, 1024
        $region64: #{tpu_custom_call.1} parent=59 // pred_fallthru
          _
      $region60: #{tpu_custom_call.1} parent=5 // pred_fallthru
        _
    $region6: #{tpu_custom_call.1} parent=1 // loop_footer
      %s22 = sadd.s32 1, %s18
    $region7: #{tpu_custom_call.1} parent=1 // loop_footer_branch
      %17 = sbr.rel target = $region3
    $region8: #{tpu_custom_call.1} parent=1 // loop_exit
      _
    %2478 = vsyncpa [#allocation3], 1
    %s2479 = scalar_lea.sflag [#allocation3], 1
    %2480 = vsyncpa %s2479, 1
    %2481 = vsyncpa [#allocation6], 1
    %2482 = vsyncpa [#allocation4], 1
    %s2483 = scalar_lea.sflag [#allocation4], 1
    %2484 = vsyncpa %s2483, 1

</llo_original>
